<compile_context>
chip_gen: v7x
topology: tpu7x:2x2x1
jax: 0.10.0
libtpu: 0.0.40
codegen_flags: <defaults>
</compile_context>

<pallas_src>
import jax
import jax.numpy as jnp
from jax.experimental import pallas as pl
from jax.experimental.pallas import tpu as pltpu

K = 4                       # kernel size of every ConvTranspose2d in the module
BN_EPS = 1e-5               # PyTorch BatchNorm2d default
VMEM_LIMIT = 32 * 1024 * 1024


def _round_up(x, m):
    return (x + m - 1) // m * m


# ---------------------------------------------------------------------- Pallas kernels

def _make_convbn_kernel(num_par, count):
    """Fused ConvTranspose (as GEMM) + training-mode BatchNorm + ReLU.

    p_ref  : (G, Kd, M)  bf16 channel-major patches
    w_ref  : (G, Cp, Kd) bf16 channel-major weights
    gam/bet: (Cp, 1)     f32  BatchNorm affine parameters
    o_ref  : (G, Cp, M)  bf16 normalized activations (next layer's MXU operand)
    """
    inv_count = 1.0 / float(count)

    def kernel(p_ref, w_ref, gam_ref, bet_ref, o_ref):
        # pass A: conv (MXU, f32 accumulation) + per-channel sums (lane reduce).
        accs = []
        tot = None
        for g in range(num_par):
            acc = jnp.dot(w_ref[g], p_ref[g], preferred_element_type=jnp.float32)
            accs.append(acc)                                   # (Cp, M) f32, stays in VMEM
            s = jnp.sum(acc, axis=1, keepdims=True)            # (Cp, 1)
            tot = s if tot is None else tot + s
        mean = tot * inv_count

        # pass B: centered sum of squares (robust two-pass variance).
        ssq = None
        for g in range(num_par):
            d = accs[g] - mean
            s2 = jnp.sum(d * d, axis=1, keepdims=True)
            ssq = s2 if ssq is None else ssq + s2
        inv = jax.lax.rsqrt(ssq * inv_count + BN_EPS)

        # pass C: folded affine (y = x*scale + shift) + ReLU, bf16 out.
        scale = gam_ref[...] * inv                              # (Cp, 1)
        shift = bet_ref[...] - mean * scale
        for g in range(num_par):
            y = accs[g] * scale + shift
            o_ref[g] = jnp.maximum(y, 0.0).astype(o_ref.dtype)

    return kernel


def _conv_tanh_kernel(p_ref, w_ref, o_ref):
    """Final layer: one parity class per grid step, GEMM + tanh (no BatchNorm)."""
    acc = jnp.dot(w_ref[0], p_ref[0], preferred_element_type=jnp.float32)
    o_ref[0] = jnp.tanh(acc)


# ----------------------------------------------------------------- pallas_call wrappers

def _convbn_call(pats, wt, gamma, beta):
    """pats: (G, Kd, M) bf16, wt: (G, Cout, Kd) bf16, gamma/beta: (Cout, 1) f32."""
    g, kd, m = pats.shape
    cout = wt.shape[1]
    cpad = _round_up(cout, 8)
    if cpad != cout:                                   # padded channels stay exactly zero
        wt = jnp.pad(wt, ((0, 0), (0, cpad - cout), (0, 0)))
        gamma = jnp.pad(gamma, ((0, cpad - cout), (0, 0)))
        beta = jnp.pad(beta, ((0, cpad - cout), (0, 0)))
    pats = pats.astype(jnp.bfloat16)
    wt = wt.astype(jnp.bfloat16)

    out = pl.pallas_call(
        _make_convbn_kernel(g, g * m),
        out_shape=jax.ShapeDtypeStruct((g, cpad, m), jnp.bfloat16),
        grid_spec=pltpu.PrefetchScalarGridSpec(
            num_scalar_prefetch=0, grid=(1,),
            in_specs=[pl.BlockSpec((g, kd, m), lambda i: (0, 0, 0)),
                      pl.BlockSpec((g, cpad, kd), lambda i: (0, 0, 0)),
                      pl.BlockSpec((cpad, 1), lambda i: (0, 0)),
                      pl.BlockSpec((cpad, 1), lambda i: (0, 0))],
            out_specs=pl.BlockSpec((g, cpad, m), lambda i: (0, 0, 0))),
        compiler_params=pltpu.CompilerParams(
            dimension_semantics=("arbitrary",),
            vmem_limit_bytes=VMEM_LIMIT),
        cost_estimate=pl.CostEstimate(
            flops=2 * g * cpad * kd * m + 8 * g * cpad * m,
            transcendentals=cpad,
            bytes_accessed=pats.size * 2 + wt.size * 2 + g * cpad * m * 2 + 8 * cpad),
    )(pats, wt, gamma.astype(jnp.float32), beta.astype(jnp.float32))

    return out[:, :cout, :] if cpad != cout else out


def _conv_tanh_call(pats, wt):
    """pats: (G, Kd, M) bf16, wt: (G, Cout, Kd) -> (G, Cout, M) f32 tanh outputs."""
    g, kd, m = pats.shape
    cout = wt.shape[1]
    cpad = _round_up(cout, 8)
    wt_p = jnp.pad(wt, ((0, 0), (0, cpad - cout), (0, 0))).astype(jnp.bfloat16)
    pats = pats.astype(jnp.bfloat16)

    out = pl.pallas_call(
        _conv_tanh_kernel,
        out_shape=jax.ShapeDtypeStruct((g, cpad, m), jnp.float32),
        grid_spec=pltpu.PrefetchScalarGridSpec(
            num_scalar_prefetch=0, grid=(g,),
            in_specs=[pl.BlockSpec((1, kd, m), lambda i: (i, 0, 0)),
                      pl.BlockSpec((1, cpad, kd), lambda i: (i, 0, 0))],
            out_specs=pl.BlockSpec((1, cpad, m), lambda i: (i, 0, 0))),
        compiler_params=pltpu.CompilerParams(
            dimension_semantics=("parallel",),
            vmem_limit_bytes=VMEM_LIMIT),
        cost_estimate=pl.CostEstimate(
            flops=2 * g * cpad * kd * m, transcendentals=g * cpad * m,
            bytes_accessed=pats.size * 2 + wt_p.size * 2 + g * cpad * m * 4),
    )(pats, wt_p)
    return out[:, :cout, :]


# ------------------------------------------------------------------------ XLA glue
# (channel-major throughout: activations are (C, N, H, W) bf16)

def _parity_taps_cm(x_cm):
    """stride=2 / pad=1 / K=4 ConvTranspose taps: (C, N, H, W) -> (4, 4*C, N*H*W).

    y[c_out, n, 2h+rh, 2w+rw] = sum_{dh,dw} xpad[c_in, n, h+rh+dh, w+rw+dw] * w[3-rh-2dh, 3-rw-2dw]
    """
    c, n, h, w = x_cm.shape
    xp = jnp.pad(x_cm, ((0, 0), (0, 0), (1, 1), (1, 1)))
    pats = []
    for rh in range(2):
        for rw in range(2):
            rows = []
            for dh in range(2):
                for dw in range(2):
                    rows.append(
                        xp[:, :, rh + dh:rh + dh + h, rw + dw:rw + dw + w]
                        .reshape(c, n * h * w))
            pats.append(jnp.concatenate(rows, axis=0))          # (4*C, M)
    return jnp.stack(pats, axis=0)                              # (4, 4*C, M)


def _interleave_cm(y, n, h, w):
    """(4, C, n*h*w) parity outputs -> (C, n, 2h, 2w)."""
    c = y.shape[1]
    y = y.reshape(2, 2, c, n, h, w)                             # (rh, rw, c, n, h, w)
    y = jnp.transpose(y, (2, 3, 4, 0, 5, 1))                    # (c, n, h, rh, w, rw)
    return y.reshape(c, n, 2 * h, 2 * w)


def _prep_stride2_weight(w_pt):
    """(Cin, Cout, 4, 4) torch ConvTranspose2d weight -> (4, Cout, 4*Cin) bf16 GEMM weights."""
    gs = []
    for rh in range(2):
        for rw in range(2):
            rows = []
            for dh in range(2):
                for dw in range(2):
                    rows.append(w_pt[:, :, 3 - rh - 2 * dh, 3 - rw - 2 * dw])  # (Cin, Cout)
            gs.append(jnp.concatenate(rows, axis=0).T)           # (Cout, 4*Cin)
    return jnp.stack(gs, axis=0).astype(jnp.bfloat16)


def prepare_generator_params(params):
    """One-time weight rearrangement / cast (review item: prep once, not per call)."""
    prepped = []
    # layer 1: 1x1 input -> kernel stamp, W1^T[co, (4i+j)*nz + ci] = w[ci, co, i, j]
    w, gamma, beta = params[0]
    c1 = w.shape[1]
    w1t = jnp.transpose(w, (1, 2, 3, 0)).reshape(c1, -1).astype(jnp.bfloat16)
    prepped.append((w1t,
                    gamma.reshape(-1, 1).astype(jnp.float32),
                    beta.reshape(-1, 1).astype(jnp.float32)))
    # layers 2-4: stride-2 sub-pixel weights + BN params
    for w, gamma, beta in params[1:4]:
        prepped.append((_prep_stride2_weight(w),
                        gamma.reshape(-1, 1).astype(jnp.float32),
                        beta.reshape(-1, 1).astype(jnp.float32)))
    # layer 5: stride-2, no BN
    w, _, _ = params[4]
    prepped.append((_prep_stride2_weight(w),))
    return prepped


# -------------------------------------------------------------------------- generator

def init_generator_params(key, nz, ngf, nc):
    """Deterministic synthetic init (DCGAN-style N(0, 0.02) weights, BN gamma=1, beta=0)."""
    chans = [nz, ngf * 8, ngf * 4, ngf * 2, ngf, nc]
    params = []
    for i in range(5):
        key, sub = jax.random.split(key)
        w = 0.02 * jax.random.normal(sub, (chans[i], chans[i + 1], K, K), jnp.float32)
        gamma = jnp.ones((chans[i + 1],), jnp.float32)
        beta = jnp.zeros((chans[i + 1],), jnp.float32)
        params.append((w, gamma, beta))
    return params


def generator_forward(x_nchw, prepped):
    """Matches Generator.forward: x (N, nz, 1, 1) -> (N, nc, 64, 64) in NCHW."""
    (w1t, g1, b1), l2, l3, l4, (w5t,) = prepped
    n = x_nchw.shape[0]
    nz = x_nchw.shape[1]

    # ---- layer 1: ConvT(nz, 8ngf, 4, 1, 0) + BN + ReLU  (kernel stamp as one GEMM)
    z = x_nchw.reshape(n, nz).astype(jnp.bfloat16)
    eye16 = jnp.eye(16, dtype=jnp.bfloat16)
    p1 = jnp.einsum('pq,nc->pcnq', eye16, z).reshape(16 * nz, n * 16)   # (16*nz, N*16)
    a1 = _convbn_call(p1[None], w1t[None], g1, b1)                       # (1, 8ngf, N*16)
    x_cm = a1[0].reshape(w1t.shape[0], n, 4, 4)                          # (C, N, 4, 4)

    # ---- layers 2-4: ConvT(stride 2) + BN + ReLU, fully fused per layer
    for wt, gm, bt in (l2, l3, l4):
        _, _, h, w = x_cm.shape
        pats = _parity_taps_cm(x_cm)                                     # (4, 4C, N*h*w)
        y = _convbn_call(pats, wt, gm, bt)                               # (4, Cout, N*h*w)
        x_cm = _interleave_cm(y, n, h, w)                                # (Cout, N, 2h, 2w)

    # ---- layer 5: ConvT(stride 2) + Tanh
    _, _, h, w = x_cm.shape
    pats = _parity_taps_cm(x_cm)
    y5 = _conv_tanh_call(pats, w5t)                                      # (4, nc, N*h*w) f32
    out_cm = _interleave_cm(y5, n, h, w)                                 # (nc, N, 64, 64)
    return jnp.transpose(out_cm, (1, 0, 2, 3)).astype(jnp.float32)       # NCHW


# -------------------------------------------------------------------- pure-XLA reference

_LAYER_CFG = (
    dict(stride=1, padding=0, bn=True),
    dict(stride=2, padding=1, bn=True),
    dict(stride=2, padding=1, bn=True),
    dict(stride=2, padding=1, bn=True),
    dict(stride=2, padding=1, bn=False),
)


def _reference_generator(x_nchw, params):
    """f32 reference: lhs-dilated conv == ConvTranspose2d, training-mode BatchNorm."""
    x = jnp.transpose(x_nchw, (0, 2, 3, 1)).astype(jnp.float32)
    for (w_pt, gamma, beta), cfg in zip(params, _LAYER_CFG):
        stride, padding, bn = cfg["stride"], cfg["padding"], cfg["bn"]
        wf = jnp.transpose(w_pt[:, :, ::-1, ::-1], (2, 3, 0, 1))   # (K, K, Cin, Cout)
        pad = K - 1 - padding
        y = jax.lax.conv_general_dilated(
            x, wf, window_strides=(1, 1), padding=[(pad, pad), (pad, pad)],
            lhs_dilation=(stride, stride),
            dimension_numbers=("NHWC", "HWIO", "NHWC"),
            precision=jax.lax.Precision.HIGHEST)
        if bn:
            mean = jnp.mean(y, axis=(0, 1, 2), keepdims=True)
            var = jnp.mean(jnp.square(y - mean), axis=(0, 1, 2), keepdims=True)
            y = (y - mean) * jax.lax.rsqrt(var + BN_EPS)
            y = y * gamma.reshape(1, 1, 1, -1) + beta.reshape(1, 1, 1, -1)
            y = jnp.maximum(y, 0.0)
        else:
            y = jnp.tanh(y)
        x = y
    return jnp.transpose(x, (0, 3, 1, 2))


if __name__ == "__main__":
    nz, ngf, nc = 8, 8, 3      # small DCGAN generator
    batch = 2

    key = jax.random.PRNGKey(0)
    key, pkey, xkey = jax.random.split(key, 3)
    params = init_generator_params(pkey, nz, ngf, nc)
    prepped = prepare_generator_params(params)            # one-time GEMM-ready weights
    x = jax.random.normal(xkey, (batch, nz, 1, 1), jnp.float32)   # latent noise, NCHW

    out = jax.jit(generator_forward)(x, prepped)
    out = jax.block_until_ready(out)

    assert out.shape == (batch, nc, 64, 64), out.shape
    assert out.dtype == jnp.float32
    assert bool(jnp.all(jnp.isfinite(out)))
    assert bool(jnp.all(jnp.abs(out) <= 1.0 + 1e-6))       # tanh range

    ref = jax.block_until_ready(jax.jit(_reference_generator)(x, params))
    max_err = float(jnp.max(jnp.abs(out - ref)))
    assert max_err < 7.5e-2, f"max abs error vs XLA reference: {max_err}"

    print("KERNEL_OK")
</pallas_src>

<mosaic_0001>
module attributes {stable_mosaic.version = 11 : i64} {
  func.func @kernel(%arg0: i32, %arg1: memref<1x128x32xbf16, #tpu.memory_space<vmem>>, %arg2: memref<1x64x128xbf16, #tpu.memory_space<vmem>>, %arg3: memref<64x1xf32, #tpu.memory_space<vmem>>, %arg4: memref<64x1xf32, #tpu.memory_space<vmem>>, %arg5: memref<1x64x32xbf16, #tpu.memory_space<vmem>>) attributes {dimension_semantics = [#tpu.dimension_semantics<arbitrary>], iteration_bounds = array<i64: 1>, scalar_prefetch = 0 : i64, scratch_operands = 0 : i64, tpu.core_type = #tpu.core_type<tc>, window_params = [{pipeline_mode = #tpu.pipeline_mode<synchronous>, transform_indices = @transform_0, window_bounds = array<i64: 1, 128, 32>}, {pipeline_mode = #tpu.pipeline_mode<synchronous>, transform_indices = @transform_1, window_bounds = array<i64: 1, 64, 128>}, {pipeline_mode = #tpu.pipeline_mode<synchronous>, transform_indices = @transform_2, window_bounds = array<i64: 64, 1>}, {pipeline_mode = #tpu.pipeline_mode<synchronous>, transform_indices = @transform_3, window_bounds = array<i64: 64, 1>}, {pipeline_mode = #tpu.pipeline_mode<synchronous>, transform_indices = @transform_4, window_bounds = array<i64: 1, 64, 32>}]} {
    %c0 = arith.constant 0 : index
    %c0_0 = arith.constant 0 : index
    %c0_1 = arith.constant 0 : index
    %0 = vector.load %arg2[%c0, %c0_0, %c0_1] : memref<1x64x128xbf16, #tpu.memory_space<vmem>>, vector<1x64x128xbf16>
    %1 = vector.shape_cast %0 : vector<1x64x128xbf16> to vector<64x128xbf16>
    %c0_2 = arith.constant 0 : index
    %c0_3 = arith.constant 0 : index
    %c0_4 = arith.constant 0 : index
    %2 = vector.load %arg1[%c0_2, %c0_3, %c0_4] : memref<1x128x32xbf16, #tpu.memory_space<vmem>>, vector<1x128x32xbf16>
    %3 = vector.shape_cast %2 : vector<1x128x32xbf16> to vector<128x32xbf16>
    %cst = arith.constant dense<0.000000e+00> : vector<64x32xf32>
    %4 = tpu.matmul %1, %3, %cst {dimension_numbers = #tpu.dot_dimension_numbers<[1], [0], [0], [1], [0, 0, 1, 1], [], []>} : vector<64x128xbf16>, vector<128x32xbf16>, vector<64x32xf32> -> vector<64x32xf32>
    %cst_5 = arith.constant dense<0.000000e+00> : vector<64xf32>
    %5 = vector.multi_reduction <add>, %4, %cst_5 [1] : vector<64x32xf32> to vector<64xf32>
    %6 = vector.shape_cast %5 : vector<64xf32> to vector<64x1xf32>
    %cst_6 = arith.constant 3.125000e-02 : f32
    %7 = vector.broadcast %cst_6 : f32 to vector<64x1xf32>
    %8 = arith.mulf %6, %7 : vector<64x1xf32>
    %9 = vector.broadcast %8 : vector<64x1xf32> to vector<64x32xf32>
    %10 = arith.subf %4, %9 : vector<64x32xf32>
    %11 = arith.mulf %10, %10 : vector<64x32xf32>
    %cst_7 = arith.constant dense<0.000000e+00> : vector<64xf32>
    %12 = vector.multi_reduction <add>, %11, %cst_7 [1] : vector<64x32xf32> to vector<64xf32>
    %13 = vector.shape_cast %12 : vector<64xf32> to vector<64x1xf32>
    %cst_8 = arith.constant 3.125000e-02 : f32
    %14 = vector.broadcast %cst_8 : f32 to vector<64x1xf32>
    %15 = arith.mulf %13, %14 : vector<64x1xf32>
    %cst_9 = arith.constant 9.99999974E-6 : f32
    %16 = vector.broadcast %cst_9 : f32 to vector<64x1xf32>
    %17 = arith.addf %15, %16 : vector<64x1xf32>
    %18 = math.rsqrt %17 : vector<64x1xf32>
    %c0_10 = arith.constant 0 : index
    %c0_11 = arith.constant 0 : index
    %19 = vector.load %arg3[%c0_10, %c0_11] : memref<64x1xf32, #tpu.memory_space<vmem>>, vector<64x1xf32>
    %20 = arith.mulf %19, %18 : vector<64x1xf32>
    %c0_12 = arith.constant 0 : index
    %c0_13 = arith.constant 0 : index
    %21 = vector.load %arg4[%c0_12, %c0_13] : memref<64x1xf32, #tpu.memory_space<vmem>>, vector<64x1xf32>
    %22 = arith.mulf %8, %20 : vector<64x1xf32>
    %23 = arith.subf %21, %22 : vector<64x1xf32>
    %24 = vector.broadcast %20 : vector<64x1xf32> to vector<64x32xf32>
    %25 = arith.mulf %4, %24 : vector<64x32xf32>
    %26 = vector.broadcast %23 : vector<64x1xf32> to vector<64x32xf32>
    %27 = arith.addf %25, %26 : vector<64x32xf32>
    %cst_14 = arith.constant 0.000000e+00 : f32
    %28 = vector.broadcast %cst_14 : f32 to vector<64x32xf32>
    %29 = arith.maximumf %27, %28 : vector<64x32xf32>
    %30 = arith.truncf %29 : vector<64x32xf32> to vector<64x32xbf16>
    %c0_15 = arith.constant 0 : index
    %c0_16 = arith.constant 0 : index
    %c0_17 = arith.constant 0 : index
    %31 = vector.load %arg5[%c0_15, %c0_16, %c0_17] : memref<1x64x32xbf16, #tpu.memory_space<vmem>>, vector<1x64x32xbf16>
    %32 = vector.shape_cast %31 : vector<1x64x32xbf16> to vector<64x32xbf16>
    %33 = vector.shape_cast %30 : vector<64x32xbf16> to vector<1x64x32xbf16>
    tpu.vector_store %arg5[%c0_15, %c0_16, %c0_17], %33 {strides = array<i32>} : memref<1x64x32xbf16, #tpu.memory_space<vmem>>, vector<1x64x32xbf16>,
    return
  }
  func.func @transform_0(%arg0: i32) -> (i32, i32, i32) {
    %c0_i32 = arith.constant 0 : i32
    %c0_i32_0 = arith.constant 0 : i32
    %c0_i32_1 = arith.constant 0 : i32
    %c0_i32_2 = arith.constant 0 : i32
    return %c0_i32, %c0_i32_0, %c0_i32_1 : i32, i32, i32
  }
  func.func @transform_1(%arg0: i32) -> (i32, i32, i32) {
    %c0_i32 = arith.constant 0 : i32
    %c0_i32_0 = arith.constant 0 : i32
    %c0_i32_1 = arith.constant 0 : i32
    %c0_i32_2 = arith.constant 0 : i32
    return %c0_i32, %c0_i32_0, %c0_i32_1 : i32, i32, i32
  }
  func.func @transform_2(%arg0: i32) -> (i32, i32) {
    %c0_i32 = arith.constant 0 : i32
    %c0_i32_0 = arith.constant 0 : i32
    %c0_i32_1 = arith.constant 0 : i32
    return %c0_i32, %c0_i32_0 : i32, i32
  }
  func.func @transform_3(%arg0: i32) -> (i32, i32) {
    %c0_i32 = arith.constant 0 : i32
    %c0_i32_0 = arith.constant 0 : i32
    %c0_i32_1 = arith.constant 0 : i32
    return %c0_i32, %c0_i32_0 : i32, i32
  }
  func.func @transform_4(%arg0: i32) -> (i32, i32, i32) {
    %c0_i32 = arith.constant 0 : i32
    %c0_i32_0 = arith.constant 0 : i32
    %c0_i32_1 = arith.constant 0 : i32
    %c0_i32_2 = arith.constant 0 : i32
    return %c0_i32, %c0_i32_0, %c0_i32_1 : i32, i32, i32
  }
}

module attributes {stable_mosaic.version = 11 : i64} {
  func.func @kernel(%arg0: i32, %arg1: memref<4x256x32xbf16, #tpu.memory_space<vmem>>, %arg2: memref<4x32x256xbf16, #tpu.memory_space<vmem>>, %arg3: memref<32x1xf32, #tpu.memory_space<vmem>>, %arg4: memref<32x1xf32, #tpu.memory_space<vmem>>, %arg5: memref<4x32x32xbf16, #tpu.memory_space<vmem>>) attributes {dimension_semantics = [#tpu.dimension_semantics<arbitrary>], iteration_bounds = array<i64: 1>, scalar_prefetch = 0 : i64, scratch_operands = 0 : i64, tpu.core_type = #tpu.core_type<tc>, window_params = [{pipeline_mode = #tpu.pipeline_mode<synchronous>, transform_indices = @transform_0, window_bounds = array<i64: 4, 256, 32>}, {pipeline_mode = #tpu.pipeline_mode<synchronous>, transform_indices = @transform_1, window_bounds = array<i64: 4, 32, 256>}, {pipeline_mode = #tpu.pipeline_mode<synchronous>, transform_indices = @transform_2, window_bounds = array<i64: 32, 1>}, {pipeline_mode = #tpu.pipeline_mode<synchronous>, transform_indices = @transform_3, window_bounds = array<i64: 32, 1>}, {pipeline_mode = #tpu.pipeline_mode<synchronous>, transform_indices = @transform_4, window_bounds = array<i64: 4, 32, 32>}]} {
    %c0 = arith.constant 0 : index
    %c0_0 = arith.constant 0 : index
    %c0_1 = arith.constant 0 : index
    %0 = vector.load %arg2[%c0, %c0_0, %c0_1] : memref<4x32x256xbf16, #tpu.memory_space<vmem>>, vector<1x32x256xbf16>
    %1 = vector.shape_cast %0 : vector<1x32x256xbf16> to vector<32x256xbf16>
    %c0_2 = arith.constant 0 : index
    %c0_3 = arith.constant 0 : index
    %c0_4 = arith.constant 0 : index
    %2 = vector.load %arg1[%c0_2, %c0_3, %c0_4] : memref<4x256x32xbf16, #tpu.memory_space<vmem>>, vector<1x256x32xbf16>
    %3 = vector.shape_cast %2 : vector<1x256x32xbf16> to vector<256x32xbf16>
    %cst = arith.constant dense<0.000000e+00> : vector<32x32xf32>
    %4 = tpu.matmul %1, %3, %cst {dimension_numbers = #tpu.dot_dimension_numbers<[1], [0], [0], [1], [0, 0, 1, 1], [], []>} : vector<32x256xbf16>, vector<256x32xbf16>, vector<32x32xf32> -> vector<32x32xf32>
    %cst_5 = arith.constant dense<0.000000e+00> : vector<32xf32>
    %5 = vector.multi_reduction <add>, %4, %cst_5 [1] : vector<32x32xf32> to vector<32xf32>
    %6 = vector.shape_cast %5 : vector<32xf32> to vector<32x1xf32>
    %c1 = arith.constant 1 : index
    %c0_6 = arith.constant 0 : index
    %c0_7 = arith.constant 0 : index
    %7 = vector.load %arg2[%c1, %c0_6, %c0_7] : memref<4x32x256xbf16, #tpu.memory_space<vmem>>, vector<1x32x256xbf16>
    %8 = vector.shape_cast %7 : vector<1x32x256xbf16> to vector<32x256xbf16>
    %c1_8 = arith.constant 1 : index
    %c0_9 = arith.constant 0 : index
    %c0_10 = arith.constant 0 : index
    %9 = vector.load %arg1[%c1_8, %c0_9, %c0_10] : memref<4x256x32xbf16, #tpu.memory_space<vmem>>, vector<1x256x32xbf16>
    %10 = vector.shape_cast %9 : vector<1x256x32xbf16> to vector<256x32xbf16>
    %cst_11 = arith.constant dense<0.000000e+00> : vector<32x32xf32>
    %11 = tpu.matmul %8, %10, %cst_11 {dimension_numbers = #tpu.dot_dimension_numbers<[1], [0], [0], [1], [0, 0, 1, 1], [], []>} : vector<32x256xbf16>, vector<256x32xbf16>, vector<32x32xf32> -> vector<32x32xf32>
    %cst_12 = arith.constant dense<0.000000e+00> : vector<32xf32>
    %12 = vector.multi_reduction <add>, %11, %cst_12 [1] : vector<32x32xf32> to vector<32xf32>
    %13 = vector.shape_cast %12 : vector<32xf32> to vector<32x1xf32>
    %14 = arith.addf %6, %13 : vector<32x1xf32>
    %c2 = arith.constant 2 : index
    %c0_13 = arith.constant 0 : index
    %c0_14 = arith.constant 0 : index
    %15 = vector.load %arg2[%c2, %c0_13, %c0_14] : memref<4x32x256xbf16, #tpu.memory_space<vmem>>, vector<1x32x256xbf16>
    %16 = vector.shape_cast %15 : vector<1x32x256xbf16> to vector<32x256xbf16>
    %c2_15 = arith.constant 2 : index
    %c0_16 = arith.constant 0 : index
    %c0_17 = arith.constant 0 : index
    %17 = vector.load %arg1[%c2_15, %c0_16, %c0_17] : memref<4x256x32xbf16, #tpu.memory_space<vmem>>, vector<1x256x32xbf16>
    %18 = vector.shape_cast %17 : vector<1x256x32xbf16> to vector<256x32xbf16>
    %cst_18 = arith.constant dense<0.000000e+00> : vector<32x32xf32>
    %19 = tpu.matmul %16, %18, %cst_18 {dimension_numbers = #tpu.dot_dimension_numbers<[1], [0], [0], [1], [0, 0, 1, 1], [], []>} : vector<32x256xbf16>, vector<256x32xbf16>, vector<32x32xf32> -> vector<32x32xf32>
    %cst_19 = arith.constant dense<0.000000e+00> : vector<32xf32>
    %20 = vector.multi_reduction <add>, %19, %cst_19 [1] : vector<32x32xf32> to vector<32xf32>
    %21 = vector.shape_cast %20 : vector<32xf32> to vector<32x1xf32>
    %22 = arith.addf %14, %21 : vector<32x1xf32>
    %c3 = arith.constant 3 : index
    %c0_20 = arith.constant 0 : index
    %c0_21 = arith.constant 0 : index
    %23 = vector.load %arg2[%c3, %c0_20, %c0_21] : memref<4x32x256xbf16, #tpu.memory_space<vmem>>, vector<1x32x256xbf16>
    %24 = vector.shape_cast %23 : vector<1x32x256xbf16> to vector<32x256xbf16>
    %c3_22 = arith.constant 3 : index
    %c0_23 = arith.constant 0 : index
    %c0_24 = arith.constant 0 : index
    %25 = vector.load %arg1[%c3_22, %c0_23, %c0_24] : memref<4x256x32xbf16, #tpu.memory_space<vmem>>, vector<1x256x32xbf16>
    %26 = vector.shape_cast %25 : vector<1x256x32xbf16> to vector<256x32xbf16>
    %cst_25 = arith.constant dense<0.000000e+00> : vector<32x32xf32>
    %27 = tpu.matmul %24, %26, %cst_25 {dimension_numbers = #tpu.dot_dimension_numbers<[1], [0], [0], [1], [0, 0, 1, 1], [], []>} : vector<32x256xbf16>, vector<256x32xbf16>, vector<32x32xf32> -> vector<32x32xf32>
    %cst_26 = arith.constant dense<0.000000e+00> : vector<32xf32>
    %28 = vector.multi_reduction <add>, %27, %cst_26 [1] : vector<32x32xf32> to vector<32xf32>
    %29 = vector.shape_cast %28 : vector<32xf32> to vector<32x1xf32>
    %30 = arith.addf %22, %29 : vector<32x1xf32>
    %cst_27 = arith.constant 7.812500e-03 : f32
    %31 = vector.broadcast %cst_27 : f32 to vector<32x1xf32>
    %32 = arith.mulf %30, %31 : vector<32x1xf32>
    %33 = vector.broadcast %32 : vector<32x1xf32> to vector<32x32xf32>
    %34 = arith.subf %4, %33 : vector<32x32xf32>
    %35 = arith.mulf %34, %34 : vector<32x32xf32>
    %cst_28 = arith.constant dense<0.000000e+00> : vector<32xf32>
    %36 = vector.multi_reduction <add>, %35, %cst_28 [1] : vector<32x32xf32> to vector<32xf32>
    %37 = vector.shape_cast %36 : vector<32xf32> to vector<32x1xf32>
    %38 = vector.broadcast %32 : vector<32x1xf32> to vector<32x32xf32>
    %39 = arith.subf %11, %38 : vector<32x32xf32>
    %40 = arith.mulf %39, %39 : vector<32x32xf32>
    %cst_29 = arith.constant dense<0.000000e+00> : vector<32xf32>
    %41 = vector.multi_reduction <add>, %40, %cst_29 [1] : vector<32x32xf32> to vector<32xf32>
    %42 = vector.shape_cast %41 : vector<32xf32> to vector<32x1xf32>
    %43 = arith.addf %37, %42 : vector<32x1xf32>
    %44 = vector.broadcast %32 : vector<32x1xf32> to vector<32x32xf32>
    %45 = arith.subf %19, %44 : vector<32x32xf32>
    %46 = arith.mulf %45, %45 : vector<32x32xf32>
    %cst_30 = arith.constant dense<0.000000e+00> : vector<32xf32>
    %47 = vector.multi_reduction <add>, %46, %cst_30 [1] : vector<32x32xf32> to vector<32xf32>
    %48 = vector.shape_cast %47 : vector<32xf32> to vector<32x1xf32>
    %49 = arith.addf %43, %48 : vector<32x1xf32>
    %50 = vector.broadcast %32 : vector<32x1xf32> to vector<32x32xf32>
    %51 = arith.subf %27, %50 : vector<32x32xf32>
    %52 = arith.mulf %51, %51 : vector<32x32xf32>
    %cst_31 = arith.constant dense<0.000000e+00> : vector<32xf32>
    %53 = vector.multi_reduction <add>, %52, %cst_31 [1] : vector<32x32xf32> to vector<32xf32>
    %54 = vector.shape_cast %53 : vector<32xf32> to vector<32x1xf32>
    %55 = arith.addf %49, %54 : vector<32x1xf32>
    %cst_32 = arith.constant 7.812500e-03 : f32
    %56 = vector.broadcast %cst_32 : f32 to vector<32x1xf32>
    %57 = arith.mulf %55, %56 : vector<32x1xf32>
    %cst_33 = arith.constant 9.99999974E-6 : f32
    %58 = vector.broadcast %cst_33 : f32 to vector<32x1xf32>
    %59 = arith.addf %57, %58 : vector<32x1xf32>
    %60 = math.rsqrt %59 : vector<32x1xf32>
    %c0_34 = arith.constant 0 : index
    %c0_35 = arith.constant 0 : index
    %61 = vector.load %arg3[%c0_34, %c0_35] : memref<32x1xf32, #tpu.memory_space<vmem>>, vector<32x1xf32>
    %62 = arith.mulf %61, %60 : vector<32x1xf32>
    %c0_36 = arith.constant 0 : index
    %c0_37 = arith.constant 0 : index
    %63 = vector.load %arg4[%c0_36, %c0_37] : memref<32x1xf32, #tpu.memory_space<vmem>>, vector<32x1xf32>
    %64 = arith.mulf %32, %62 : vector<32x1xf32>
    %65 = arith.subf %63, %64 : vector<32x1xf32>
    %66 = vector.broadcast %62 : vector<32x1xf32> to vector<32x32xf32>
    %67 = arith.mulf %4, %66 : vector<32x32xf32>
    %68 = vector.broadcast %65 : vector<32x1xf32> to vector<32x32xf32>
    %69 = arith.addf %67, %68 : vector<32x32xf32>
    %cst_38 = arith.constant 0.000000e+00 : f32
    %70 = vector.broadcast %cst_38 : f32 to vector<32x32xf32>
    %71 = arith.maximumf %69, %70 : vector<32x32xf32>
    %72 = arith.truncf %71 : vector<32x32xf32> to vector<32x32xbf16>
    %c0_39 = arith.constant 0 : index
    %c0_40 = arith.constant 0 : index
    %c0_41 = arith.constant 0 : index
    %73 = vector.load %arg5[%c0_39, %c0_40, %c0_41] : memref<4x32x32xbf16, #tpu.memory_space<vmem>>, vector<1x32x32xbf16>
    %74 = vector.shape_cast %73 : vector<1x32x32xbf16> to vector<32x32xbf16>
    %75 = vector.shape_cast %72 : vector<32x32xbf16> to vector<1x32x32xbf16>
    tpu.vector_store %arg5[%c0_39, %c0_40, %c0_41], %75 {strides = array<i32>} : memref<4x32x32xbf16, #tpu.memory_space<vmem>>, vector<1x32x32xbf16>,
    %76 = vector.broadcast %62 : vector<32x1xf32> to vector<32x32xf32>
    %77 = arith.mulf %11, %76 : vector<32x32xf32>
    %78 = vector.broadcast %65 : vector<32x1xf32> to vector<32x32xf32>
    %79 = arith.addf %77, %78 : vector<32x32xf32>
    %cst_42 = arith.constant 0.000000e+00 : f32
    %80 = vector.broadcast %cst_42 : f32 to vector<32x32xf32>
    %81 = arith.maximumf %79, %80 : vector<32x32xf32>
    %82 = arith.truncf %81 : vector<32x32xf32> to vector<32x32xbf16>
    %c1_43 = arith.constant 1 : index
    %c0_44 = arith.constant 0 : index
    %c0_45 = arith.constant 0 : index
    %83 = vector.load %arg5[%c1_43, %c0_44, %c0_45] : memref<4x32x32xbf16, #tpu.memory_space<vmem>>, vector<1x32x32xbf16>
    %84 = vector.shape_cast %83 : vector<1x32x32xbf16> to vector<32x32xbf16>
    %85 = vector.shape_cast %82 : vector<32x32xbf16> to vector<1x32x32xbf16>
    tpu.vector_store %arg5[%c1_43, %c0_44, %c0_45], %85 {strides = array<i32>} : memref<4x32x32xbf16, #tpu.memory_space<vmem>>, vector<1x32x32xbf16>,
    %86 = vector.broadcast %62 : vector<32x1xf32> to vector<32x32xf32>
    %87 = arith.mulf %19, %86 : vector<32x32xf32>
    %88 = vector.broadcast %65 : vector<32x1xf32> to vector<32x32xf32>
    %89 = arith.addf %87, %88 : vector<32x32xf32>
    %cst_46 = arith.constant 0.000000e+00 : f32
    %90 = vector.broadcast %cst_46 : f32 to vector<32x32xf32>
    %91 = arith.maximumf %89, %90 : vector<32x32xf32>
    %92 = arith.truncf %91 : vector<32x32xf32> to vector<32x32xbf16>
    %c2_47 = arith.constant 2 : index
    %c0_48 = arith.constant 0 : index
    %c0_49 = arith.constant 0 : index
    %93 = vector.load %arg5[%c2_47, %c0_48, %c0_49] : memref<4x32x32xbf16, #tpu.memory_space<vmem>>, vector<1x32x32xbf16>
    %94 = vector.shape_cast %93 : vector<1x32x32xbf16> to vector<32x32xbf16>
    %95 = vector.shape_cast %92 : vector<32x32xbf16> to vector<1x32x32xbf16>
    tpu.vector_store %arg5[%c2_47, %c0_48, %c0_49], %95 {strides = array<i32>} : memref<4x32x32xbf16, #tpu.memory_space<vmem>>, vector<1x32x32xbf16>,
    %96 = vector.broadcast %62 : vector<32x1xf32> to vector<32x32xf32>
    %97 = arith.mulf %27, %96 : vector<32x32xf32>
    %98 = vector.broadcast %65 : vector<32x1xf32> to vector<32x32xf32>
    %99 = arith.addf %97, %98 : vector<32x32xf32>
    %cst_50 = arith.constant 0.000000e+00 : f32
    %100 = vector.broadcast %cst_50 : f32 to vector<32x32xf32>
    %101 = arith.maximumf %99, %100 : vector<32x32xf32>
    %102 = arith.truncf %101 : vector<32x32xf32> to vector<32x32xbf16>
    %c3_51 = arith.constant 3 : index
    %c0_52 = arith.constant 0 : index
    %c0_53 = arith.constant 0 : index
    %103 = vector.load %arg5[%c3_51, %c0_52, %c0_53] : memref<4x32x32xbf16, #tpu.memory_space<vmem>>, vector<1x32x32xbf16>
    %104 = vector.shape_cast %103 : vector<1x32x32xbf16> to vector<32x32xbf16>
    %105 = vector.shape_cast %102 : vector<32x32xbf16> to vector<1x32x32xbf16>
    tpu.vector_store %arg5[%c3_51, %c0_52, %c0_53], %105 {strides = array<i32>} : memref<4x32x32xbf16, #tpu.memory_space<vmem>>, vector<1x32x32xbf16>,
    return
  }
  func.func @transform_0(%arg0: i32) -> (i32, i32, i32) {
    %c0_i32 = arith.constant 0 : i32
    %c0_i32_0 = arith.constant 0 : i32
    %c0_i32_1 = arith.constant 0 : i32
    %c0_i32_2 = arith.constant 0 : i32
    return %c0_i32, %c0_i32_0, %c0_i32_1 : i32, i32, i32
  }
  func.func @transform_1(%arg0: i32) -> (i32, i32, i32) {
    %c0_i32 = arith.constant 0 : i32
    %c0_i32_0 = arith.constant 0 : i32
    %c0_i32_1 = arith.constant 0 : i32
    %c0_i32_2 = arith.constant 0 : i32
    return %c0_i32, %c0_i32_0, %c0_i32_1 : i32, i32, i32
  }
  func.func @transform_2(%arg0: i32) -> (i32, i32) {
    %c0_i32 = arith.constant 0 : i32
    %c0_i32_0 = arith.constant 0 : i32
    %c0_i32_1 = arith.constant 0 : i32
    return %c0_i32, %c0_i32_0 : i32, i32
  }
  func.func @transform_3(%arg0: i32) -> (i32, i32) {
    %c0_i32 = arith.constant 0 : i32
    %c0_i32_0 = arith.constant 0 : i32
    %c0_i32_1 = arith.constant 0 : i32
    return %c0_i32, %c0_i32_0 : i32, i32
  }
  func.func @transform_4(%arg0: i32) -> (i32, i32, i32) {
    %c0_i32 = arith.constant 0 : i32
    %c0_i32_0 = arith.constant 0 : i32
    %c0_i32_1 = arith.constant 0 : i32
    %c0_i32_2 = arith.constant 0 : i32
    return %c0_i32, %c0_i32_0, %c0_i32_1 : i32, i32, i32
  }
}

module attributes {stable_mosaic.version = 11 : i64} {
  func.func @kernel(%arg0: i32, %arg1: memref<4x128x128xbf16, #tpu.memory_space<vmem>>, %arg2: memref<4x16x128xbf16, #tpu.memory_space<vmem>>, %arg3: memref<16x1xf32, #tpu.memory_space<vmem>>, %arg4: memref<16x1xf32, #tpu.memory_space<vmem>>, %arg5: memref<4x16x128xbf16, #tpu.memory_space<vmem>>) attributes {dimension_semantics = [#tpu.dimension_semantics<arbitrary>], iteration_bounds = array<i64: 1>, scalar_prefetch = 0 : i64, scratch_operands = 0 : i64, tpu.core_type = #tpu.core_type<tc>, window_params = [{pipeline_mode = #tpu.pipeline_mode<synchronous>, transform_indices = @transform_0, window_bounds = array<i64: 4, 128, 128>}, {pipeline_mode = #tpu.pipeline_mode<synchronous>, transform_indices = @transform_1, window_bounds = array<i64: 4, 16, 128>}, {pipeline_mode = #tpu.pipeline_mode<synchronous>, transform_indices = @transform_2, window_bounds = array<i64: 16, 1>}, {pipeline_mode = #tpu.pipeline_mode<synchronous>, transform_indices = @transform_3, window_bounds = array<i64: 16, 1>}, {pipeline_mode = #tpu.pipeline_mode<synchronous>, transform_indices = @transform_4, window_bounds = array<i64: 4, 16, 128>}]} {
    %c0 = arith.constant 0 : index
    %c0_0 = arith.constant 0 : index
    %c0_1 = arith.constant 0 : index
    %0 = vector.load %arg2[%c0, %c0_0, %c0_1] : memref<4x16x128xbf16, #tpu.memory_space<vmem>>, vector<1x16x128xbf16>
    %1 = vector.shape_cast %0 : vector<1x16x128xbf16> to vector<16x128xbf16>
    %c0_2 = arith.constant 0 : index
    %c0_3 = arith.constant 0 : index
    %c0_4 = arith.constant 0 : index
    %2 = vector.load %arg1[%c0_2, %c0_3, %c0_4] : memref<4x128x128xbf16, #tpu.memory_space<vmem>>, vector<1x128x128xbf16>
    %3 = vector.shape_cast %2 : vector<1x128x128xbf16> to vector<128x128xbf16>
    %cst = arith.constant dense<0.000000e+00> : vector<16x128xf32>
    %4 = tpu.matmul %1, %3, %cst {dimension_numbers = #tpu.dot_dimension_numbers<[1], [0], [0], [1], [0, 0, 1, 1], [], []>} : vector<16x128xbf16>, vector<128x128xbf16>, vector<16x128xf32> -> vector<16x128xf32>
    %cst_5 = arith.constant dense<0.000000e+00> : vector<16xf32>
    %5 = vector.multi_reduction <add>, %4, %cst_5 [1] : vector<16x128xf32> to vector<16xf32>
    %6 = vector.shape_cast %5 : vector<16xf32> to vector<16x1xf32>
    %c1 = arith.constant 1 : index
    %c0_6 = arith.constant 0 : index
    %c0_7 = arith.constant 0 : index
    %7 = vector.load %arg2[%c1, %c0_6, %c0_7] : memref<4x16x128xbf16, #tpu.memory_space<vmem>>, vector<1x16x128xbf16>
    %8 = vector.shape_cast %7 : vector<1x16x128xbf16> to vector<16x128xbf16>
    %c1_8 = arith.constant 1 : index
    %c0_9 = arith.constant 0 : index
    %c0_10 = arith.constant 0 : index
    %9 = vector.load %arg1[%c1_8, %c0_9, %c0_10] : memref<4x128x128xbf16, #tpu.memory_space<vmem>>, vector<1x128x128xbf16>
    %10 = vector.shape_cast %9 : vector<1x128x128xbf16> to vector<128x128xbf16>
    %cst_11 = arith.constant dense<0.000000e+00> : vector<16x128xf32>
    %11 = tpu.matmul %8, %10, %cst_11 {dimension_numbers = #tpu.dot_dimension_numbers<[1], [0], [0], [1], [0, 0, 1, 1], [], []>} : vector<16x128xbf16>, vector<128x128xbf16>, vector<16x128xf32> -> vector<16x128xf32>
    %cst_12 = arith.constant dense<0.000000e+00> : vector<16xf32>
    %12 = vector.multi_reduction <add>, %11, %cst_12 [1] : vector<16x128xf32> to vector<16xf32>
    %13 = vector.shape_cast %12 : vector<16xf32> to vector<16x1xf32>
    %14 = arith.addf %6, %13 : vector<16x1xf32>
    %c2 = arith.constant 2 : index
    %c0_13 = arith.constant 0 : index
    %c0_14 = arith.constant 0 : index
    %15 = vector.load %arg2[%c2, %c0_13, %c0_14] : memref<4x16x128xbf16, #tpu.memory_space<vmem>>, vector<1x16x128xbf16>
    %16 = vector.shape_cast %15 : vector<1x16x128xbf16> to vector<16x128xbf16>
    %c2_15 = arith.constant 2 : index
    %c0_16 = arith.constant 0 : index
    %c0_17 = arith.constant 0 : index
    %17 = vector.load %arg1[%c2_15, %c0_16, %c0_17] : memref<4x128x128xbf16, #tpu.memory_space<vmem>>, vector<1x128x128xbf16>
    %18 = vector.shape_cast %17 : vector<1x128x128xbf16> to vector<128x128xbf16>
    %cst_18 = arith.constant dense<0.000000e+00> : vector<16x128xf32>
    %19 = tpu.matmul %16, %18, %cst_18 {dimension_numbers = #tpu.dot_dimension_numbers<[1], [0], [0], [1], [0, 0, 1, 1], [], []>} : vector<16x128xbf16>, vector<128x128xbf16>, vector<16x128xf32> -> vector<16x128xf32>
    %cst_19 = arith.constant dense<0.000000e+00> : vector<16xf32>
    %20 = vector.multi_reduction <add>, %19, %cst_19 [1] : vector<16x128xf32> to vector<16xf32>
    %21 = vector.shape_cast %20 : vector<16xf32> to vector<16x1xf32>
    %22 = arith.addf %14, %21 : vector<16x1xf32>
    %c3 = arith.constant 3 : index
    %c0_20 = arith.constant 0 : index
    %c0_21 = arith.constant 0 : index
    %23 = vector.load %arg2[%c3, %c0_20, %c0_21] : memref<4x16x128xbf16, #tpu.memory_space<vmem>>, vector<1x16x128xbf16>
    %24 = vector.shape_cast %23 : vector<1x16x128xbf16> to vector<16x128xbf16>
    %c3_22 = arith.constant 3 : index
    %c0_23 = arith.constant 0 : index
    %c0_24 = arith.constant 0 : index
    %25 = vector.load %arg1[%c3_22, %c0_23, %c0_24] : memref<4x128x128xbf16, #tpu.memory_space<vmem>>, vector<1x128x128xbf16>
    %26 = vector.shape_cast %25 : vector<1x128x128xbf16> to vector<128x128xbf16>
    %cst_25 = arith.constant dense<0.000000e+00> : vector<16x128xf32>
    %27 = tpu.matmul %24, %26, %cst_25 {dimension_numbers = #tpu.dot_dimension_numbers<[1], [0], [0], [1], [0, 0, 1, 1], [], []>} : vector<16x128xbf16>, vector<128x128xbf16>, vector<16x128xf32> -> vector<16x128xf32>
    %cst_26 = arith.constant dense<0.000000e+00> : vector<16xf32>
    %28 = vector.multi_reduction <add>, %27, %cst_26 [1] : vector<16x128xf32> to vector<16xf32>
    %29 = vector.shape_cast %28 : vector<16xf32> to vector<16x1xf32>
    %30 = arith.addf %22, %29 : vector<16x1xf32>
    %cst_27 = arith.constant 0.001953125 : f32
    %31 = vector.broadcast %cst_27 : f32 to vector<16x1xf32>
    %32 = arith.mulf %30, %31 : vector<16x1xf32>
    %33 = vector.broadcast %32 : vector<16x1xf32> to vector<16x128xf32>
    %34 = arith.subf %4, %33 : vector<16x128xf32>
    %35 = arith.mulf %34, %34 : vector<16x128xf32>
    %cst_28 = arith.constant dense<0.000000e+00> : vector<16xf32>
    %36 = vector.multi_reduction <add>, %35, %cst_28 [1] : vector<16x128xf32> to vector<16xf32>
    %37 = vector.shape_cast %36 : vector<16xf32> to vector<16x1xf32>
    %38 = vector.broadcast %32 : vector<16x1xf32> to vector<16x128xf32>
    %39 = arith.subf %11, %38 : vector<16x128xf32>
    %40 = arith.mulf %39, %39 : vector<16x128xf32>
    %cst_29 = arith.constant dense<0.000000e+00> : vector<16xf32>
    %41 = vector.multi_reduction <add>, %40, %cst_29 [1] : vector<16x128xf32> to vector<16xf32>
    %42 = vector.shape_cast %41 : vector<16xf32> to vector<16x1xf32>
    %43 = arith.addf %37, %42 : vector<16x1xf32>
    %44 = vector.broadcast %32 : vector<16x1xf32> to vector<16x128xf32>
    %45 = arith.subf %19, %44 : vector<16x128xf32>
    %46 = arith.mulf %45, %45 : vector<16x128xf32>
    %cst_30 = arith.constant dense<0.000000e+00> : vector<16xf32>
    %47 = vector.multi_reduction <add>, %46, %cst_30 [1] : vector<16x128xf32> to vector<16xf32>
    %48 = vector.shape_cast %47 : vector<16xf32> to vector<16x1xf32>
    %49 = arith.addf %43, %48 : vector<16x1xf32>
    %50 = vector.broadcast %32 : vector<16x1xf32> to vector<16x128xf32>
    %51 = arith.subf %27, %50 : vector<16x128xf32>
    %52 = arith.mulf %51, %51 : vector<16x128xf32>
    %cst_31 = arith.constant dense<0.000000e+00> : vector<16xf32>
    %53 = vector.multi_reduction <add>, %52, %cst_31 [1] : vector<16x128xf32> to vector<16xf32>
    %54 = vector.shape_cast %53 : vector<16xf32> to vector<16x1xf32>
    %55 = arith.addf %49, %54 : vector<16x1xf32>
    %cst_32 = arith.constant 0.001953125 : f32
    %56 = vector.broadcast %cst_32 : f32 to vector<16x1xf32>
    %57 = arith.mulf %55, %56 : vector<16x1xf32>
    %cst_33 = arith.constant 9.99999974E-6 : f32
    %58 = vector.broadcast %cst_33 : f32 to vector<16x1xf32>
    %59 = arith.addf %57, %58 : vector<16x1xf32>
    %60 = math.rsqrt %59 : vector<16x1xf32>
    %c0_34 = arith.constant 0 : index
    %c0_35 = arith.constant 0 : index
    %61 = vector.load %arg3[%c0_34, %c0_35] : memref<16x1xf32, #tpu.memory_space<vmem>>, vector<16x1xf32>
    %62 = arith.mulf %61, %60 : vector<16x1xf32>
    %c0_36 = arith.constant 0 : index
    %c0_37 = arith.constant 0 : index
    %63 = vector.load %arg4[%c0_36, %c0_37] : memref<16x1xf32, #tpu.memory_space<vmem>>, vector<16x1xf32>
    %64 = arith.mulf %32, %62 : vector<16x1xf32>
    %65 = arith.subf %63, %64 : vector<16x1xf32>
    %66 = vector.broadcast %62 : vector<16x1xf32> to vector<16x128xf32>
    %67 = arith.mulf %4, %66 : vector<16x128xf32>
    %68 = vector.broadcast %65 : vector<16x1xf32> to vector<16x128xf32>
    %69 = arith.addf %67, %68 : vector<16x128xf32>
    %cst_38 = arith.constant 0.000000e+00 : f32
    %70 = vector.broadcast %cst_38 : f32 to vector<16x128xf32>
    %71 = arith.maximumf %69, %70 : vector<16x128xf32>
    %72 = arith.truncf %71 : vector<16x128xf32> to vector<16x128xbf16>
    %c0_39 = arith.constant 0 : index
    %c0_40 = arith.constant 0 : index
    %c0_41 = arith.constant 0 : index
    %73 = vector.load %arg5[%c0_39, %c0_40, %c0_41] : memref<4x16x128xbf16, #tpu.memory_space<vmem>>, vector<1x16x128xbf16>
    %74 = vector.shape_cast %73 : vector<1x16x128xbf16> to vector<16x128xbf16>
    %75 = vector.shape_cast %72 : vector<16x128xbf16> to vector<1x16x128xbf16>
    tpu.vector_store %arg5[%c0_39, %c0_40, %c0_41], %75 {strides = array<i32>} : memref<4x16x128xbf16, #tpu.memory_space<vmem>>, vector<1x16x128xbf16>,
    %76 = vector.broadcast %62 : vector<16x1xf32> to vector<16x128xf32>
    %77 = arith.mulf %11, %76 : vector<16x128xf32>
    %78 = vector.broadcast %65 : vector<16x1xf32> to vector<16x128xf32>
    %79 = arith.addf %77, %78 : vector<16x128xf32>
    %cst_42 = arith.constant 0.000000e+00 : f32
    %80 = vector.broadcast %cst_42 : f32 to vector<16x128xf32>
    %81 = arith.maximumf %79, %80 : vector<16x128xf32>
    %82 = arith.truncf %81 : vector<16x128xf32> to vector<16x128xbf16>
    %c1_43 = arith.constant 1 : index
    %c0_44 = arith.constant 0 : index
    %c0_45 = arith.constant 0 : index
    %83 = vector.load %arg5[%c1_43, %c0_44, %c0_45] : memref<4x16x128xbf16, #tpu.memory_space<vmem>>, vector<1x16x128xbf16>
    %84 = vector.shape_cast %83 : vector<1x16x128xbf16> to vector<16x128xbf16>
    %85 = vector.shape_cast %82 : vector<16x128xbf16> to vector<1x16x128xbf16>
    tpu.vector_store %arg5[%c1_43, %c0_44, %c0_45], %85 {strides = array<i32>} : memref<4x16x128xbf16, #tpu.memory_space<vmem>>, vector<1x16x128xbf16>,
    %86 = vector.broadcast %62 : vector<16x1xf32> to vector<16x128xf32>
    %87 = arith.mulf %19, %86 : vector<16x128xf32>
    %88 = vector.broadcast %65 : vector<16x1xf32> to vector<16x128xf32>
    %89 = arith.addf %87, %88 : vector<16x128xf32>
    %cst_46 = arith.constant 0.000000e+00 : f32
    %90 = vector.broadcast %cst_46 : f32 to vector<16x128xf32>
    %91 = arith.maximumf %89, %90 : vector<16x128xf32>
    %92 = arith.truncf %91 : vector<16x128xf32> to vector<16x128xbf16>
    %c2_47 = arith.constant 2 : index
    %c0_48 = arith.constant 0 : index
    %c0_49 = arith.constant 0 : index
    %93 = vector.load %arg5[%c2_47, %c0_48, %c0_49] : memref<4x16x128xbf16, #tpu.memory_space<vmem>>, vector<1x16x128xbf16>
    %94 = vector.shape_cast %93 : vector<1x16x128xbf16> to vector<16x128xbf16>
    %95 = vector.shape_cast %92 : vector<16x128xbf16> to vector<1x16x128xbf16>
    tpu.vector_store %arg5[%c2_47, %c0_48, %c0_49], %95 {strides = array<i32>} : memref<4x16x128xbf16, #tpu.memory_space<vmem>>, vector<1x16x128xbf16>,
    %96 = vector.broadcast %62 : vector<16x1xf32> to vector<16x128xf32>
    %97 = arith.mulf %27, %96 : vector<16x128xf32>
    %98 = vector.broadcast %65 : vector<16x1xf32> to vector<16x128xf32>
    %99 = arith.addf %97, %98 : vector<16x128xf32>
    %cst_50 = arith.constant 0.000000e+00 : f32
    %100 = vector.broadcast %cst_50 : f32 to vector<16x128xf32>
    %101 = arith.maximumf %99, %100 : vector<16x128xf32>
    %102 = arith.truncf %101 : vector<16x128xf32> to vector<16x128xbf16>
    %c3_51 = arith.constant 3 : index
    %c0_52 = arith.constant 0 : index
    %c0_53 = arith.constant 0 : index
    %103 = vector.load %arg5[%c3_51, %c0_52, %c0_53] : memref<4x16x128xbf16, #tpu.memory_space<vmem>>, vector<1x16x128xbf16>
    %104 = vector.shape_cast %103 : vector<1x16x128xbf16> to vector<16x128xbf16>
    %105 = vector.shape_cast %102 : vector<16x128xbf16> to vector<1x16x128xbf16>
    tpu.vector_store %arg5[%c3_51, %c0_52, %c0_53], %105 {strides = array<i32>} : memref<4x16x128xbf16, #tpu.memory_space<vmem>>, vector<1x16x128xbf16>,
    return
  }
  func.func @transform_0(%arg0: i32) -> (i32, i32, i32) {
    %c0_i32 = arith.constant 0 : i32
    %c0_i32_0 = arith.constant 0 : i32
    %c0_i32_1 = arith.constant 0 : i32
    %c0_i32_2 = arith.constant 0 : i32
    return %c0_i32, %c0_i32_0, %c0_i32_1 : i32, i32, i32
  }
  func.func @transform_1(%arg0: i32) -> (i32, i32, i32) {
    %c0_i32 = arith.constant 0 : i32
    %c0_i32_0 = arith.constant 0 : i32
    %c0_i32_1 = arith.constant 0 : i32
    %c0_i32_2 = arith.constant 0 : i32
    return %c0_i32, %c0_i32_0, %c0_i32_1 : i32, i32, i32
  }
  func.func @transform_2(%arg0: i32) -> (i32, i32) {
    %c0_i32 = arith.constant 0 : i32
    %c0_i32_0 = arith.constant 0 : i32
    %c0_i32_1 = arith.constant 0 : i32
    return %c0_i32, %c0_i32_0 : i32, i32
  }
  func.func @transform_3(%arg0: i32) -> (i32, i32) {
    %c0_i32 = arith.constant 0 : i32
    %c0_i32_0 = arith.constant 0 : i32
    %c0_i32_1 = arith.constant 0 : i32
    return %c0_i32, %c0_i32_0 : i32, i32
  }
  func.func @transform_4(%arg0: i32) -> (i32, i32, i32) {
    %c0_i32 = arith.constant 0 : i32
    %c0_i32_0 = arith.constant 0 : i32
    %c0_i32_1 = arith.constant 0 : i32
    %c0_i32_2 = arith.constant 0 : i32
    return %c0_i32, %c0_i32_0, %c0_i32_1 : i32, i32, i32
  }
}

module attributes {stable_mosaic.version = 11 : i64} {
  func.func @kernel(%arg0: i32, %arg1: memref<4x64x512xbf16, #tpu.memory_space<vmem>>, %arg2: memref<4x8x64xbf16, #tpu.memory_space<vmem>>, %arg3: memref<8x1xf32, #tpu.memory_space<vmem>>, %arg4: memref<8x1xf32, #tpu.memory_space<vmem>>, %arg5: memref<4x8x512xbf16, #tpu.memory_space<vmem>>) attributes {dimension_semantics = [#tpu.dimension_semantics<arbitrary>], iteration_bounds = array<i64: 1>, scalar_prefetch = 0 : i64, scratch_operands = 0 : i64, tpu.core_type = #tpu.core_type<tc>, window_params = [{pipeline_mode = #tpu.pipeline_mode<synchronous>, transform_indices = @transform_0, window_bounds = array<i64: 4, 64, 512>}, {pipeline_mode = #tpu.pipeline_mode<synchronous>, transform_indices = @transform_1, window_bounds = array<i64: 4, 8, 64>}, {pipeline_mode = #tpu.pipeline_mode<synchronous>, transform_indices = @transform_2, window_bounds = array<i64: 8, 1>}, {pipeline_mode = #tpu.pipeline_mode<synchronous>, transform_indices = @transform_3, window_bounds = array<i64: 8, 1>}, {pipeline_mode = #tpu.pipeline_mode<synchronous>, transform_indices = @transform_4, window_bounds = array<i64: 4, 8, 512>}]} {
    %c0 = arith.constant 0 : index
    %c0_0 = arith.constant 0 : index
    %c0_1 = arith.constant 0 : index
    %0 = vector.load %arg2[%c0, %c0_0, %c0_1] : memref<4x8x64xbf16, #tpu.memory_space<vmem>>, vector<1x8x64xbf16>
    %1 = vector.shape_cast %0 : vector<1x8x64xbf16> to vector<8x64xbf16>
    %c0_2 = arith.constant 0 : index
    %c0_3 = arith.constant 0 : index
    %c0_4 = arith.constant 0 : index
    %2 = vector.load %arg1[%c0_2, %c0_3, %c0_4] : memref<4x64x512xbf16, #tpu.memory_space<vmem>>, vector<1x64x512xbf16>
    %3 = vector.shape_cast %2 : vector<1x64x512xbf16> to vector<64x512xbf16>
    %cst = arith.constant dense<0.000000e+00> : vector<8x512xf32>
    %4 = tpu.matmul %1, %3, %cst {dimension_numbers = #tpu.dot_dimension_numbers<[1], [0], [0], [1], [0, 0, 1, 1], [], []>} : vector<8x64xbf16>, vector<64x512xbf16>, vector<8x512xf32> -> vector<8x512xf32>
    %cst_5 = arith.constant dense<0.000000e+00> : vector<8xf32>
    %5 = vector.multi_reduction <add>, %4, %cst_5 [1] : vector<8x512xf32> to vector<8xf32>
    %6 = vector.shape_cast %5 : vector<8xf32> to vector<8x1xf32>
    %c1 = arith.constant 1 : index
    %c0_6 = arith.constant 0 : index
    %c0_7 = arith.constant 0 : index
    %7 = vector.load %arg2[%c1, %c0_6, %c0_7] : memref<4x8x64xbf16, #tpu.memory_space<vmem>>, vector<1x8x64xbf16>
    %8 = vector.shape_cast %7 : vector<1x8x64xbf16> to vector<8x64xbf16>
    %c1_8 = arith.constant 1 : index
    %c0_9 = arith.constant 0 : index
    %c0_10 = arith.constant 0 : index
    %9 = vector.load %arg1[%c1_8, %c0_9, %c0_10] : memref<4x64x512xbf16, #tpu.memory_space<vmem>>, vector<1x64x512xbf16>
    %10 = vector.shape_cast %9 : vector<1x64x512xbf16> to vector<64x512xbf16>
    %cst_11 = arith.constant dense<0.000000e+00> : vector<8x512xf32>
    %11 = tpu.matmul %8, %10, %cst_11 {dimension_numbers = #tpu.dot_dimension_numbers<[1], [0], [0], [1], [0, 0, 1, 1], [], []>} : vector<8x64xbf16>, vector<64x512xbf16>, vector<8x512xf32> -> vector<8x512xf32>
    %cst_12 = arith.constant dense<0.000000e+00> : vector<8xf32>
    %12 = vector.multi_reduction <add>, %11, %cst_12 [1] : vector<8x512xf32> to vector<8xf32>
    %13 = vector.shape_cast %12 : vector<8xf32> to vector<8x1xf32>
    %14 = arith.addf %6, %13 : vector<8x1xf32>
    %c2 = arith.constant 2 : index
    %c0_13 = arith.constant 0 : index
    %c0_14 = arith.constant 0 : index
    %15 = vector.load %arg2[%c2, %c0_13, %c0_14] : memref<4x8x64xbf16, #tpu.memory_space<vmem>>, vector<1x8x64xbf16>
    %16 = vector.shape_cast %15 : vector<1x8x64xbf16> to vector<8x64xbf16>
    %c2_15 = arith.constant 2 : index
    %c0_16 = arith.constant 0 : index
    %c0_17 = arith.constant 0 : index
    %17 = vector.load %arg1[%c2_15, %c0_16, %c0_17] : memref<4x64x512xbf16, #tpu.memory_space<vmem>>, vector<1x64x512xbf16>
    %18 = vector.shape_cast %17 : vector<1x64x512xbf16> to vector<64x512xbf16>
    %cst_18 = arith.constant dense<0.000000e+00> : vector<8x512xf32>
    %19 = tpu.matmul %16, %18, %cst_18 {dimension_numbers = #tpu.dot_dimension_numbers<[1], [0], [0], [1], [0, 0, 1, 1], [], []>} : vector<8x64xbf16>, vector<64x512xbf16>, vector<8x512xf32> -> vector<8x512xf32>
    %cst_19 = arith.constant dense<0.000000e+00> : vector<8xf32>
    %20 = vector.multi_reduction <add>, %19, %cst_19 [1] : vector<8x512xf32> to vector<8xf32>
    %21 = vector.shape_cast %20 : vector<8xf32> to vector<8x1xf32>
    %22 = arith.addf %14, %21 : vector<8x1xf32>
    %c3 = arith.constant 3 : index
    %c0_20 = arith.constant 0 : index
    %c0_21 = arith.constant 0 : index
    %23 = vector.load %arg2[%c3, %c0_20, %c0_21] : memref<4x8x64xbf16, #tpu.memory_space<vmem>>, vector<1x8x64xbf16>
    %24 = vector.shape_cast %23 : vector<1x8x64xbf16> to vector<8x64xbf16>
    %c3_22 = arith.constant 3 : index
    %c0_23 = arith.constant 0 : index
    %c0_24 = arith.constant 0 : index
    %25 = vector.load %arg1[%c3_22, %c0_23, %c0_24] : memref<4x64x512xbf16, #tpu.memory_space<vmem>>, vector<1x64x512xbf16>
    %26 = vector.shape_cast %25 : vector<1x64x512xbf16> to vector<64x512xbf16>
    %cst_25 = arith.constant dense<0.000000e+00> : vector<8x512xf32>
    %27 = tpu.matmul %24, %26, %cst_25 {dimension_numbers = #tpu.dot_dimension_numbers<[1], [0], [0], [1], [0, 0, 1, 1], [], []>} : vector<8x64xbf16>, vector<64x512xbf16>, vector<8x512xf32> -> vector<8x512xf32>
    %cst_26 = arith.constant dense<0.000000e+00> : vector<8xf32>
    %28 = vector.multi_reduction <add>, %27, %cst_26 [1] : vector<8x512xf32> to vector<8xf32>
    %29 = vector.shape_cast %28 : vector<8xf32> to vector<8x1xf32>
    %30 = arith.addf %22, %29 : vector<8x1xf32>
    %cst_27 = arith.constant 4.8828125E-4 : f32
    %31 = vector.broadcast %cst_27 : f32 to vector<8x1xf32>
    %32 = arith.mulf %30, %31 : vector<8x1xf32>
    %33 = vector.broadcast %32 : vector<8x1xf32> to vector<8x512xf32>
    %34 = arith.subf %4, %33 : vector<8x512xf32>
    %35 = arith.mulf %34, %34 : vector<8x512xf32>
    %cst_28 = arith.constant dense<0.000000e+00> : vector<8xf32>
    %36 = vector.multi_reduction <add>, %35, %cst_28 [1] : vector<8x512xf32> to vector<8xf32>
    %37 = vector.shape_cast %36 : vector<8xf32> to vector<8x1xf32>
    %38 = vector.broadcast %32 : vector<8x1xf32> to vector<8x512xf32>
    %39 = arith.subf %11, %38 : vector<8x512xf32>
    %40 = arith.mulf %39, %39 : vector<8x512xf32>
    %cst_29 = arith.constant dense<0.000000e+00> : vector<8xf32>
    %41 = vector.multi_reduction <add>, %40, %cst_29 [1] : vector<8x512xf32> to vector<8xf32>
    %42 = vector.shape_cast %41 : vector<8xf32> to vector<8x1xf32>
    %43 = arith.addf %37, %42 : vector<8x1xf32>
    %44 = vector.broadcast %32 : vector<8x1xf32> to vector<8x512xf32>
    %45 = arith.subf %19, %44 : vector<8x512xf32>
    %46 = arith.mulf %45, %45 : vector<8x512xf32>
    %cst_30 = arith.constant dense<0.000000e+00> : vector<8xf32>
    %47 = vector.multi_reduction <add>, %46, %cst_30 [1] : vector<8x512xf32> to vector<8xf32>
    %48 = vector.shape_cast %47 : vector<8xf32> to vector<8x1xf32>
    %49 = arith.addf %43, %48 : vector<8x1xf32>
    %50 = vector.broadcast %32 : vector<8x1xf32> to vector<8x512xf32>
    %51 = arith.subf %27, %50 : vector<8x512xf32>
    %52 = arith.mulf %51, %51 : vector<8x512xf32>
    %cst_31 = arith.constant dense<0.000000e+00> : vector<8xf32>
    %53 = vector.multi_reduction <add>, %52, %cst_31 [1] : vector<8x512xf32> to vector<8xf32>
    %54 = vector.shape_cast %53 : vector<8xf32> to vector<8x1xf32>
    %55 = arith.addf %49, %54 : vector<8x1xf32>
    %cst_32 = arith.constant 4.8828125E-4 : f32
    %56 = vector.broadcast %cst_32 : f32 to vector<8x1xf32>
    %57 = arith.mulf %55, %56 : vector<8x1xf32>
    %cst_33 = arith.constant 9.99999974E-6 : f32
    %58 = vector.broadcast %cst_33 : f32 to vector<8x1xf32>
    %59 = arith.addf %57, %58 : vector<8x1xf32>
    %60 = math.rsqrt %59 : vector<8x1xf32>
    %c0_34 = arith.constant 0 : index
    %c0_35 = arith.constant 0 : index
    %61 = vector.load %arg3[%c0_34, %c0_35] : memref<8x1xf32, #tpu.memory_space<vmem>>, vector<8x1xf32>
    %62 = arith.mulf %61, %60 : vector<8x1xf32>
    %c0_36 = arith.constant 0 : index
    %c0_37 = arith.constant 0 : index
    %63 = vector.load %arg4[%c0_36, %c0_37] : memref<8x1xf32, #tpu.memory_space<vmem>>, vector<8x1xf32>
    %64 = arith.mulf %32, %62 : vector<8x1xf32>
    %65 = arith.subf %63, %64 : vector<8x1xf32>
    %66 = vector.broadcast %62 : vector<8x1xf32> to vector<8x512xf32>
    %67 = arith.mulf %4, %66 : vector<8x512xf32>
    %68 = vector.broadcast %65 : vector<8x1xf32> to vector<8x512xf32>
    %69 = arith.addf %67, %68 : vector<8x512xf32>
    %cst_38 = arith.constant 0.000000e+00 : f32
    %70 = vector.broadcast %cst_38 : f32 to vector<8x512xf32>
    %71 = arith.maximumf %69, %70 : vector<8x512xf32>
    %72 = arith.truncf %71 : vector<8x512xf32> to vector<8x512xbf16>
    %c0_39 = arith.constant 0 : index
    %c0_40 = arith.constant 0 : index
    %c0_41 = arith.constant 0 : index
    %73 = vector.load %arg5[%c0_39, %c0_40, %c0_41] : memref<4x8x512xbf16, #tpu.memory_space<vmem>>, vector<1x8x512xbf16>
    %74 = vector.shape_cast %73 : vector<1x8x512xbf16> to vector<8x512xbf16>
    %75 = vector.shape_cast %72 : vector<8x512xbf16> to vector<1x8x512xbf16>
    tpu.vector_store %arg5[%c0_39, %c0_40, %c0_41], %75 {strides = array<i32>} : memref<4x8x512xbf16, #tpu.memory_space<vmem>>, vector<1x8x512xbf16>,
    %76 = vector.broadcast %62 : vector<8x1xf32> to vector<8x512xf32>
    %77 = arith.mulf %11, %76 : vector<8x512xf32>
    %78 = vector.broadcast %65 : vector<8x1xf32> to vector<8x512xf32>
    %79 = arith.addf %77, %78 : vector<8x512xf32>
    %cst_42 = arith.constant 0.000000e+00 : f32
    %80 = vector.broadcast %cst_42 : f32 to vector<8x512xf32>
    %81 = arith.maximumf %79, %80 : vector<8x512xf32>
    %82 = arith.truncf %81 : vector<8x512xf32> to vector<8x512xbf16>
    %c1_43 = arith.constant 1 : index
    %c0_44 = arith.constant 0 : index
    %c0_45 = arith.constant 0 : index
    %83 = vector.load %arg5[%c1_43, %c0_44, %c0_45] : memref<4x8x512xbf16, #tpu.memory_space<vmem>>, vector<1x8x512xbf16>
    %84 = vector.shape_cast %83 : vector<1x8x512xbf16> to vector<8x512xbf16>
    %85 = vector.shape_cast %82 : vector<8x512xbf16> to vector<1x8x512xbf16>
    tpu.vector_store %arg5[%c1_43, %c0_44, %c0_45], %85 {strides = array<i32>} : memref<4x8x512xbf16, #tpu.memory_space<vmem>>, vector<1x8x512xbf16>,
    %86 = vector.broadcast %62 : vector<8x1xf32> to vector<8x512xf32>
    %87 = arith.mulf %19, %86 : vector<8x512xf32>
    %88 = vector.broadcast %65 : vector<8x1xf32> to vector<8x512xf32>
    %89 = arith.addf %87, %88 : vector<8x512xf32>
    %cst_46 = arith.constant 0.000000e+00 : f32
    %90 = vector.broadcast %cst_46 : f32 to vector<8x512xf32>
    %91 = arith.maximumf %89, %90 : vector<8x512xf32>
    %92 = arith.truncf %91 : vector<8x512xf32> to vector<8x512xbf16>
    %c2_47 = arith.constant 2 : index
    %c0_48 = arith.constant 0 : index
    %c0_49 = arith.constant 0 : index
    %93 = vector.load %arg5[%c2_47, %c0_48, %c0_49] : memref<4x8x512xbf16, #tpu.memory_space<vmem>>, vector<1x8x512xbf16>
    %94 = vector.shape_cast %93 : vector<1x8x512xbf16> to vector<8x512xbf16>
    %95 = vector.shape_cast %92 : vector<8x512xbf16> to vector<1x8x512xbf16>
    tpu.vector_store %arg5[%c2_47, %c0_48, %c0_49], %95 {strides = array<i32>} : memref<4x8x512xbf16, #tpu.memory_space<vmem>>, vector<1x8x512xbf16>,
    %96 = vector.broadcast %62 : vector<8x1xf32> to vector<8x512xf32>
    %97 = arith.mulf %27, %96 : vector<8x512xf32>
    %98 = vector.broadcast %65 : vector<8x1xf32> to vector<8x512xf32>
    %99 = arith.addf %97, %98 : vector<8x512xf32>
    %cst_50 = arith.constant 0.000000e+00 : f32
    %100 = vector.broadcast %cst_50 : f32 to vector<8x512xf32>
    %101 = arith.maximumf %99, %100 : vector<8x512xf32>
    %102 = arith.truncf %101 : vector<8x512xf32> to vector<8x512xbf16>
    %c3_51 = arith.constant 3 : index
    %c0_52 = arith.constant 0 : index
    %c0_53 = arith.constant 0 : index
    %103 = vector.load %arg5[%c3_51, %c0_52, %c0_53] : memref<4x8x512xbf16, #tpu.memory_space<vmem>>, vector<1x8x512xbf16>
    %104 = vector.shape_cast %103 : vector<1x8x512xbf16> to vector<8x512xbf16>
    %105 = vector.shape_cast %102 : vector<8x512xbf16> to vector<1x8x512xbf16>
    tpu.vector_store %arg5[%c3_51, %c0_52, %c0_53], %105 {strides = array<i32>} : memref<4x8x512xbf16, #tpu.memory_space<vmem>>, vector<1x8x512xbf16>,
    return
  }
  func.func @transform_0(%arg0: i32) -> (i32, i32, i32) {
    %c0_i32 = arith.constant 0 : i32
    %c0_i32_0 = arith.constant 0 : i32
    %c0_i32_1 = arith.constant 0 : i32
    %c0_i32_2 = arith.constant 0 : i32
    return %c0_i32, %c0_i32_0, %c0_i32_1 : i32, i32, i32
  }
  func.func @transform_1(%arg0: i32) -> (i32, i32, i32) {
    %c0_i32 = arith.constant 0 : i32
    %c0_i32_0 = arith.constant 0 : i32
    %c0_i32_1 = arith.constant 0 : i32
    %c0_i32_2 = arith.constant 0 : i32
    return %c0_i32, %c0_i32_0, %c0_i32_1 : i32, i32, i32
  }
  func.func @transform_2(%arg0: i32) -> (i32, i32) {
    %c0_i32 = arith.constant 0 : i32
    %c0_i32_0 = arith.constant 0 : i32
    %c0_i32_1 = arith.constant 0 : i32
    return %c0_i32, %c0_i32_0 : i32, i32
  }
  func.func @transform_3(%arg0: i32) -> (i32, i32) {
    %c0_i32 = arith.constant 0 : i32
    %c0_i32_0 = arith.constant 0 : i32
    %c0_i32_1 = arith.constant 0 : i32
    return %c0_i32, %c0_i32_0 : i32, i32
  }
  func.func @transform_4(%arg0: i32) -> (i32, i32, i32) {
    %c0_i32 = arith.constant 0 : i32
    %c0_i32_0 = arith.constant 0 : i32
    %c0_i32_1 = arith.constant 0 : i32
    %c0_i32_2 = arith.constant 0 : i32
    return %c0_i32, %c0_i32_0, %c0_i32_1 : i32, i32, i32
  }
}

module attributes {stable_mosaic.version = 11 : i64} {
  func.func @_conv_tanh_kernel(%arg0: i32, %arg1: memref<1x32x2048xbf16, #tpu.memory_space<vmem>>, %arg2: memref<1x8x32xbf16, #tpu.memory_space<vmem>>, %arg3: memref<1x8x2048xf32, #tpu.memory_space<vmem>>) attributes {dimension_semantics = [#tpu.dimension_semantics<parallel>], iteration_bounds = array<i64: 4>, scalar_prefetch = 0 : i64, scratch_operands = 0 : i64, tpu.core_type = #tpu.core_type<tc>, window_params = [{transform_indices = @transform_0, window_bounds = array<i64: 1, 32, 2048>}, {transform_indices = @transform_1, window_bounds = array<i64: 1, 8, 32>}, {transform_indices = @transform_2, window_bounds = array<i64: 1, 8, 2048>}]} {
    %c0 = arith.constant 0 : index
    %c0_0 = arith.constant 0 : index
    %c0_1 = arith.constant 0 : index
    %0 = vector.load %arg2[%c0, %c0_0, %c0_1] : memref<1x8x32xbf16, #tpu.memory_space<vmem>>, vector<1x8x32xbf16>
    %1 = vector.shape_cast %0 : vector<1x8x32xbf16> to vector<8x32xbf16>
    %c0_2 = arith.constant 0 : index
    %c0_3 = arith.constant 0 : index
    %c0_4 = arith.constant 0 : index
    %2 = vector.load %arg1[%c0_2, %c0_3, %c0_4] : memref<1x32x2048xbf16, #tpu.memory_space<vmem>>, vector<1x32x2048xbf16>
    %3 = vector.shape_cast %2 : vector<1x32x2048xbf16> to vector<32x2048xbf16>
    %cst = arith.constant dense<0.000000e+00> : vector<8x2048xf32>
    %4 = tpu.matmul %1, %3, %cst {dimension_numbers = #tpu.dot_dimension_numbers<[1], [0], [0], [1], [0, 0, 1, 1], [], []>} : vector<8x32xbf16>, vector<32x2048xbf16>, vector<8x2048xf32> -> vector<8x2048xf32>
    %5 = math.tanh %4 : vector<8x2048xf32>
    %c0_5 = arith.constant 0 : index
    %c0_6 = arith.constant 0 : index
    %c0_7 = arith.constant 0 : index
    %6 = vector.load %arg3[%c0_5, %c0_6, %c0_7] : memref<1x8x2048xf32, #tpu.memory_space<vmem>>, vector<1x8x2048xf32>
    %7 = vector.shape_cast %6 : vector<1x8x2048xf32> to vector<8x2048xf32>
    %8 = vector.shape_cast %5 : vector<8x2048xf32> to vector<1x8x2048xf32>
    tpu.vector_store %arg3[%c0_5, %c0_6, %c0_7], %8 {strides = array<i32>} : memref<1x8x2048xf32, #tpu.memory_space<vmem>>, vector<1x8x2048xf32>,
    return
  }
  func.func @transform_0(%arg0: i32) -> (i32, i32, i32) {
    %c0_i32 = arith.constant 0 : i32
    %c0_i32_0 = arith.constant 0 : i32
    %c0_i32_1 = arith.constant 0 : i32
    return %arg0, %c0_i32, %c0_i32_0 : i32, i32, i32
  }
  func.func @transform_1(%arg0: i32) -> (i32, i32, i32) {
    %c0_i32 = arith.constant 0 : i32
    %c0_i32_0 = arith.constant 0 : i32
    %c0_i32_1 = arith.constant 0 : i32
    return %arg0, %c0_i32, %c0_i32_0 : i32, i32, i32
  }
  func.func @transform_2(%arg0: i32) -> (i32, i32, i32) {
    %c0_i32 = arith.constant 0 : i32
    %c0_i32_0 = arith.constant 0 : i32
    %c0_i32_1 = arith.constant 0 : i32
    return %arg0, %c0_i32, %c0_i32_0 : i32, i32, i32
  }
}

</mosaic_0001>

<llo_original>
// kernel: generator_forward.5
$region0: #{generator_forward.5}
  #allocation0 [shape = 'u32[]', space=smem, size = 0x4, offset = 0x4, fixed_abs, tag = 'smem constant byte address 0x4 - core index']
  #allocation1 [shape = 'u32[144,128]{1,0:T(1,128)}', space=vmem, size = 0x12000, scoped, tag = 'internal scratch']
  %s0 = inlined_call_operand.vmem [shape: bf16[1,128,32], index: 0, kind: input, shape index: {}]
  %s1 = inlined_call_operand.hbm [shape: bf16[1,64,128], index: 1, kind: input, shape index: {}]
  %s2 = inlined_call_operand.vmem [shape: f32[64,1], index: 2, kind: input, shape index: {}]
  %s3 = inlined_call_operand.vmem [shape: f32[64,1], index: 3, kind: input, shape index: {}]
  %s4 = inlined_call_operand.vmem [shape: bf16[1,64,32], index: 4, kind: output, shape index: {}]
  %s5 = sld [smem:[#allocation0]]
  $region30: #{generator_forward.5} parent=0
    _
  %s7 = ssub.s32 1, %s5
  %s8 = scalar_select 0, %s7, %s5
  $region1: #{generator_forward.5} parent=0
    #allocation2 [shape = 'u8[16384]{0}', space=vmem, size = 0x4000, scoped, tag = 'input window, operand 1, single buffered']
    #allocation3 [shape = 's32[1]{0}', space=sflag, size = 0x4, scoped, tag = 'scoped memory for generator_forward.5']
    %9 = vsyncpa [#allocation3], 0
    // Predicated region
    $region2: #{generator_forward.5} parent=1 // pred_check
      _
    $region3: #{generator_forward.5} parent=1 // pred_check_branch
      %11 = sbr.rel (0) target = $region5
    $region4: #{generator_forward.5} parent=1 // pred_region
      _
    $region5: #{generator_forward.5} parent=1 // pred_fallthru
      _
    // Predicated region
    $region6: #{generator_forward.5} parent=1 // pred_check
      _
    $region7: #{generator_forward.5} parent=1 // pred_check_branch
      %13 = sbr.rel (0) target = $region9
    $region8: #{generator_forward.5} parent=1 // pred_region
      %s15 = ssub.s32 512, 512
      %16 = vsyncadd [#allocation3], %s15
      %s17 = sshll.u32 [#allocation2], 4
      %s18 = int_to_ptr.vmem [resolvable:$true] %s17
      %23 = dma.hbm_to_vmem [thread:$0]  %s1, 512, %s18, [#allocation3], 64, 64, 4
    $region9: #{generator_forward.5} parent=1 // pred_fallthru
      _
    // Predicated region
    $region10: #{generator_forward.5} parent=1 // pred_check
      _
    $region11: #{generator_forward.5} parent=1 // pred_check_branch
      %25 = sbr.rel (0) target = $region13
    $region12: #{generator_forward.5} parent=1 // pred_region
      _
    $region13: #{generator_forward.5} parent=1 // pred_fallthru
      _
    // Predicated region
    $region14: #{generator_forward.5} parent=1 // pred_check
      _
    $region15: #{generator_forward.5} parent=1 // pred_check_branch
      %27 = sbr.rel (0) target = $region17
    $region16: #{generator_forward.5} parent=1 // pred_region
      _
    $region17: #{generator_forward.5} parent=1 // pred_fallthru
      _
    // Predicated region
    $region18: #{generator_forward.5} parent=1 // pred_check
      _
    $region19: #{generator_forward.5} parent=1 // pred_check_branch
      %29 = sbr.rel (0) target = $region21
    $region20: #{generator_forward.5} parent=1 // pred_region
      %30 = dma.done [#allocation3], 512
    $region21: #{generator_forward.5} parent=1 // pred_fallthru
      _
    %v32 = vld [vmem:[#allocation2] sm:$0xf]
    %v33 = vld [vmem:[#allocation2 + $0x4] sm:$0xf]
    %v34 = vld [vmem:[#allocation2 + $0x8] sm:$0xf]
    %v35 = vld [vmem:[#allocation2 + $0xc] sm:$0xf]
    %v36 = vld [vmem:[#allocation2 + $0x10] sm:$0xf]
    %v37 = vld [vmem:[#allocation2 + $0x14] sm:$0xf]
    %v38 = vld [vmem:[#allocation2 + $0x18] sm:$0xf]
    %v39 = vld [vmem:[#allocation2 + $0x1c] sm:$0xf]
    %v40 = vld [vmem:[%s0] sm:$0xf]
    %v41 = vld [vmem:[%s0 + $0x4] sm:$0xf]
    %v42 = vld [vmem:[%s0 + $0x8] sm:$0xf]
    %v43 = vld [vmem:[%s0 + $0xc] sm:$0xf]
    %v44 = vld [vmem:[%s0 + $0x10] sm:$0xf]
    %v45 = vld [vmem:[%s0 + $0x14] sm:$0xf]
    %v46 = vld [vmem:[%s0 + $0x18] sm:$0xf]
    %v47 = vld [vmem:[%s0 + $0x1c] sm:$0xf]
    %v48 = vld [vmem:[%s0 + $0x20] sm:$0xf]
    %v49 = vld [vmem:[%s0 + $0x24] sm:$0xf]
    %v50 = vld [vmem:[%s0 + $0x28] sm:$0xf]
    %v51 = vld [vmem:[%s0 + $0x2c] sm:$0xf]
    %v52 = vld [vmem:[%s0 + $0x30] sm:$0xf]
    %v53 = vld [vmem:[%s0 + $0x34] sm:$0xf]
    %v54 = vld [vmem:[%s0 + $0x38] sm:$0xf]
    %v55 = vld [vmem:[%s0 + $0x3c] sm:$0xf]
    %v64 = vunpack.c.l.b16 %v32
    %v65 = vunpack.c.l.b16 %v33
    %v66 = vunpack.c.l.b16 %v34
    %v67 = vunpack.c.l.b16 %v35
    %v68 = vunpack.c.l.b16 %v36
    %v69 = vunpack.c.l.b16 %v37
    %v70 = vunpack.c.l.b16 %v38
    %v71 = vunpack.c.l.b16 %v39
    %v72 = vpack.c.b16 %v65, %v64
    %v73 = vpack.c.b16 %v67, %v66
    %v74 = vpack.c.b16 %v69, %v68
    %v75 = vpack.c.b16 %v71, %v70
    %v96 = vunpack.c.l.b16 %v40
    %v97 = vunpack.c.l.b16 %v41
    %v98 = vunpack.c.l.b16 %v42
    %v99 = vunpack.c.l.b16 %v43
    %v100 = vunpack.c.l.b16 %v44
    %v101 = vunpack.c.l.b16 %v45
    %v102 = vunpack.c.l.b16 %v46
    %v103 = vunpack.c.l.b16 %v47
    %v104 = vunpack.c.l.b16 %v48
    %v105 = vunpack.c.l.b16 %v49
    %v106 = vunpack.c.l.b16 %v50
    %v107 = vunpack.c.l.b16 %v51
    %v108 = vunpack.c.l.b16 %v52
    %v109 = vunpack.c.l.b16 %v53
    %v110 = vunpack.c.l.b16 %v54
    %v111 = vunpack.c.l.b16 %v55
    %v112 = vpack.c.b16 %v97, %v96
    %v113 = vpack.c.b16 %v99, %v98
    %v114 = vpack.c.b16 %v101, %v100
    %v115 = vpack.c.b16 %v103, %v102
    %v116 = vpack.c.b16 %v105, %v104
    %v117 = vpack.c.b16 %v107, %v106
    %v118 = vpack.c.b16 %v109, %v108
    %v119 = vpack.c.b16 %v111, %v110
    %128 = vmatprep.subr.bf16.mxu0 0
    %129 = vmatpush1.bf16.msra.mxu0 %v112
    %130 = vmatprep.subr.bf16.mxu0 0
    %131 = vmatpush1.bf16.msra.mxu0 %v113
    %132 = vmatprep.subr.bf16.mxu0 0
    %133 = vmatpush1.bf16.msra.mxu0 %v114
    %134 = vmatprep.subr.bf16.mxu0 0
    %135 = vmatpush1.bf16.msra.mxu0 %v115
    %136 = vmatprep.subr.bf16.mxu0 0
    %137 = vmatpush1.bf16.msra.mxu0 %v116
    %138 = vmatprep.subr.bf16.mxu0 0
    %139 = vmatpush1.bf16.msra.mxu0 %v117
    %140 = vmatprep.subr.bf16.mxu0 0
    %141 = vmatpush1.bf16.msra.mxu0 %v118
    %142 = vmatprep.subr.bf16.mxu0 0
    %143 = vmatpush1.bf16.msra.mxu0 %v119
    %144 = vmatprep.subr.bf16.mxu0 0
    %145 = vmatpush1.bf16.msra.mxu0 0
    %146 = vmatprep.subr.bf16.mxu0 0
    %147 = vmatpush1.bf16.msra.mxu0 0
    %148 = vmatprep.subr.bf16.mxu0 0
    %149 = vmatpush1.bf16.msra.mxu0 0
    %150 = vmatprep.subr.bf16.mxu0 0
    %151 = vmatpush1.bf16.msra.mxu0 0
    %152 = vmatprep.subr.bf16.mxu0 0
    %153 = vmatpush1.bf16.msra.mxu0 0
    %154 = vmatprep.subr.bf16.mxu0 0
    %155 = vmatpush1.bf16.msra.mxu0 0
    %156 = vmatprep.subr.bf16.mxu0 0
    %157 = vmatpush1.bf16.msra.mxu0 0
    %158 = vmatprep.subr.bf16.mxu0 0
    %159 = vmatpush1.bf16.msra.mxu0 0
    %160 = vmatprep.mubr.bf16.mxu0 0
    %161 = vmatmul.mubr.bf16.gmra.mrb[0].mxu0 %v72
    %v162 = vpop.f32.mrb[0].mxu0
    %v163 = vadd.f32 0.0, %v162
    %v164 = vpop.f32.mrb[0].mxu0
    %v165 = vpop.f32.mrb[0].mxu0
    %v166 = vadd.f32 0.0, %v165
    %v167 = vpop.f32.mrb[0].mxu0
    %168 = vmatprep.mubr.bf16.mxu0 0
    %169 = vmatmul.mubr.bf16.gmra.mrb[0].mxu0 %v73
    %v170 = vpop.f32.mrb[0].mxu0
    %v171 = vadd.f32 0.0, %v170
    %v172 = vpop.f32.mrb[0].mxu0
    %v173 = vpop.f32.mrb[0].mxu0
    %v174 = vadd.f32 0.0, %v173
    %v175 = vpop.f32.mrb[0].mxu0
    %176 = vmatprep.mubr.bf16.mxu0 0
    %177 = vmatmul.mubr.bf16.gmra.mrb[0].mxu0 %v74
    %v178 = vpop.f32.mrb[0].mxu0
    %v179 = vadd.f32 0.0, %v178
    %v180 = vpop.f32.mrb[0].mxu0
    %v181 = vpop.f32.mrb[0].mxu0
    %v182 = vadd.f32 0.0, %v181
    %v183 = vpop.f32.mrb[0].mxu0
    %184 = vmatprep.mubr.bf16.mxu0 0
    %185 = vmatmul.mubr.bf16.gmra.mrb[0].mxu0 %v75
    %v186 = vpop.f32.mrb[0].mxu0
    %v187 = vadd.f32 0.0, %v186
    %v188 = vpop.f32.mrb[0].mxu0
    %v189 = vpop.f32.mrb[0].mxu0
    %v190 = vadd.f32 0.0, %v189
    %v191 = vpop.f32.mrb[0].mxu0
    %192 = vdwg.mxu0
    %vm193 = vcmask 261120
    %v194 = vsel %vm193, %v163, 0.0
    %195 = vadd.xlane.f32.xlu0 %v194
    %v196 = vpop.xlane.xlu0 %195
    %v197 = vsel %vm193, %v166, 0.0
    %198 = vadd.xlane.f32.xlu0 %v197
    %v199 = vpop.xlane.xlu0 %198
    %v200 = vsel %vm193, %v171, 0.0
    %201 = vadd.xlane.f32.xlu0 %v200
    %v202 = vpop.xlane.xlu0 %201
    %v203 = vsel %vm193, %v174, 0.0
    %204 = vadd.xlane.f32.xlu0 %v203
    %v205 = vpop.xlane.xlu0 %204
    %v206 = vsel %vm193, %v179, 0.0
    %207 = vadd.xlane.f32.xlu0 %v206
    %v208 = vpop.xlane.xlu0 %207
    %v209 = vsel %vm193, %v182, 0.0
    %210 = vadd.xlane.f32.xlu0 %v209
    %v211 = vpop.xlane.xlu0 %210
    %v212 = vsel %vm193, %v187, 0.0
    %213 = vadd.xlane.f32.xlu0 %v212
    %v214 = vpop.xlane.xlu0 %213
    %v215 = vsel %vm193, %v190, 0.0
    %216 = vadd.xlane.f32.xlu0 %v215
    %v217 = vpop.xlane.xlu0 %216
    %v218 = vmul.f32 %v196, 0.03125
    %v219 = vmul.f32 %v199, 0.03125
    %v220 = vmul.f32 %v202, 0.03125
    %v221 = vmul.f32 %v205, 0.03125
    %v222 = vmul.f32 %v208, 0.03125
    %v223 = vmul.f32 %v211, 0.03125
    %v224 = vmul.f32 %v214, 0.03125
    %v225 = vmul.f32 %v217, 0.03125
    %v226 = vsub.f32 %v163, %v218
    %v227 = vsub.f32 %v166, %v219
    %v228 = vsub.f32 %v171, %v220
    %v229 = vsub.f32 %v174, %v221
    %v230 = vsub.f32 %v179, %v222
    %v231 = vsub.f32 %v182, %v223
    %v232 = vsub.f32 %v187, %v224
    %v233 = vsub.f32 %v190, %v225
    %v234 = vmul.f32 %v226, %v226
    %v235 = vmul.f32 %v227, %v227
    %v236 = vmul.f32 %v228, %v228
    %v237 = vmul.f32 %v229, %v229
    %v238 = vmul.f32 %v230, %v230
    %v239 = vmul.f32 %v231, %v231
    %v240 = vmul.f32 %v232, %v232
    %v241 = vmul.f32 %v233, %v233
    %v242 = vsel %vm193, %v234, 0.0
    %243 = vadd.xlane.f32.xlu0 %v242
    %v244 = vpop.xlane.xlu0 %243
    %v245 = vsel %vm193, %v235, 0.0
    %246 = vadd.xlane.f32.xlu0 %v245
    %v247 = vpop.xlane.xlu0 %246
    %v248 = vsel %vm193, %v236, 0.0
    %249 = vadd.xlane.f32.xlu0 %v248
    %v250 = vpop.xlane.xlu0 %249
    %v251 = vsel %vm193, %v237, 0.0
    %252 = vadd.xlane.f32.xlu0 %v251
    %v253 = vpop.xlane.xlu0 %252
    %v254 = vsel %vm193, %v238, 0.0
    %255 = vadd.xlane.f32.xlu0 %v254
    %v256 = vpop.xlane.xlu0 %255
    %v257 = vsel %vm193, %v239, 0.0
    %258 = vadd.xlane.f32.xlu0 %v257
    %v259 = vpop.xlane.xlu0 %258
    %v260 = vsel %vm193, %v240, 0.0
    %261 = vadd.xlane.f32.xlu0 %v260
    %v262 = vpop.xlane.xlu0 %261
    %v263 = vsel %vm193, %v241, 0.0
    %264 = vadd.xlane.f32.xlu0 %v263
    %v265 = vpop.xlane.xlu0 %264
    %v266 = vmul.f32 %v244, 0.03125
    %v267 = vmul.f32 %v247, 0.03125
    %v268 = vmul.f32 %v250, 0.03125
    %v269 = vmul.f32 %v253, 0.03125
    %v270 = vmul.f32 %v256, 0.03125
    %v271 = vmul.f32 %v259, 0.03125
    %v272 = vmul.f32 %v262, 0.03125
    %v273 = vmul.f32 %v265, 0.03125
    %v274 = vadd.f32 %v266, 1e-05
    %v275 = vadd.f32 %v267, 1e-05
    %v276 = vadd.f32 %v268, 1e-05
    %v277 = vadd.f32 %v269, 1e-05
    %v278 = vadd.f32 %v270, 1e-05
    %v279 = vadd.f32 %v271, 1e-05
    %v280 = vadd.f32 %v272, 1e-05
    %v281 = vadd.f32 %v273, 1e-05
    %v282 = vrsqrt.pop %v274
    %v283 = vrsqrt.pop %v275
    %v284 = vrsqrt.pop %v276
    %v285 = vrsqrt.pop %v277
    %v286 = vrsqrt.pop %v278
    %v287 = vrsqrt.pop %v279
    %v288 = vrsqrt.pop %v280
    %v289 = vrsqrt.pop %v281
    %v290 = vld [vmem:[%s2] sm:$0xff]
    %v291 = vld [vmem:[%s2 + $0x8] sm:$0xff]
    %v292 = vld [vmem:[%s2 + $0x10] sm:$0xff]
    %v293 = vld [vmem:[%s2 + $0x18] sm:$0xff]
    %v294 = vld [vmem:[%s2 + $0x20] sm:$0xff]
    %v295 = vld [vmem:[%s2 + $0x28] sm:$0xff]
    %v296 = vld [vmem:[%s2 + $0x30] sm:$0xff]
    %v297 = vld [vmem:[%s2 + $0x38] sm:$0xff]
    %v298 = vmul.f32 %v290, %v282
    %v299 = vmul.f32 %v291, %v283
    %v300 = vmul.f32 %v292, %v284
    %v301 = vmul.f32 %v293, %v285
    %v302 = vmul.f32 %v294, %v286
    %v303 = vmul.f32 %v295, %v287
    %v304 = vmul.f32 %v296, %v288
    %v305 = vmul.f32 %v297, %v289
    %v306 = vld [vmem:[%s3] sm:$0xff]
    %v307 = vld [vmem:[%s3 + $0x8] sm:$0xff]
    %v308 = vld [vmem:[%s3 + $0x10] sm:$0xff]
    %v309 = vld [vmem:[%s3 + $0x18] sm:$0xff]
    %v310 = vld [vmem:[%s3 + $0x20] sm:$0xff]
    %v311 = vld [vmem:[%s3 + $0x28] sm:$0xff]
    %v312 = vld [vmem:[%s3 + $0x30] sm:$0xff]
    %v313 = vld [vmem:[%s3 + $0x38] sm:$0xff]
    %v314 = vmul.f32 %v218, %v298
    %v315 = vmul.f32 %v219, %v299
    %v316 = vmul.f32 %v220, %v300
    %v317 = vmul.f32 %v221, %v301
    %v318 = vmul.f32 %v222, %v302
    %v319 = vmul.f32 %v223, %v303
    %v320 = vmul.f32 %v224, %v304
    %v321 = vmul.f32 %v225, %v305
    %v322 = vsub.f32 %v306, %v314
    %v323 = vsub.f32 %v307, %v315
    %v324 = vsub.f32 %v308, %v316
    %v325 = vsub.f32 %v309, %v317
    %v326 = vsub.f32 %v310, %v318
    %v327 = vsub.f32 %v311, %v319
    %v328 = vsub.f32 %v312, %v320
    %v329 = vsub.f32 %v313, %v321
    %331 = vset.pattern.permute.xlu0 0
    %332 = vperm.xlu0 %331, %v298
    %v333 = vpop.permute.xlu0 %332
    %336 = vset.pattern.permute.xlu0 0
    %337 = vperm.xlu0 %336, %v299
    %v338 = vpop.permute.xlu0 %337
    %341 = vset.pattern.permute.xlu0 0
    %342 = vperm.xlu0 %341, %v300
    %v343 = vpop.permute.xlu0 %342
    %346 = vset.pattern.permute.xlu0 0
    %347 = vperm.xlu0 %346, %v301
    %v348 = vpop.permute.xlu0 %347
    %351 = vset.pattern.permute.xlu0 0
    %352 = vperm.xlu0 %351, %v302
    %v353 = vpop.permute.xlu0 %352
    %356 = vset.pattern.permute.xlu0 0
    %357 = vperm.xlu0 %356, %v303
    %v358 = vpop.permute.xlu0 %357
    %361 = vset.pattern.permute.xlu0 0
    %362 = vperm.xlu0 %361, %v304
    %v363 = vpop.permute.xlu0 %362
    %366 = vset.pattern.permute.xlu0 0
    %367 = vperm.xlu0 %366, %v305
    %v368 = vpop.permute.xlu0 %367
    %v370 = vmul.f32 %v163, %v333
    %v371 = vmul.f32 %v166, %v338
    %v372 = vmul.f32 %v171, %v343
    %v373 = vmul.f32 %v174, %v348
    %v374 = vmul.f32 %v179, %v353
    %v375 = vmul.f32 %v182, %v358
    %v376 = vmul.f32 %v187, %v363
    %v377 = vmul.f32 %v190, %v368
    %379 = vset.pattern.permute.xlu0 0
    %380 = vperm.xlu0 %379, %v322
    %v381 = vpop.permute.xlu0 %380
    %384 = vset.pattern.permute.xlu0 0
    %385 = vperm.xlu0 %384, %v323
    %v386 = vpop.permute.xlu0 %385
    %389 = vset.pattern.permute.xlu0 0
    %390 = vperm.xlu0 %389, %v324
    %v391 = vpop.permute.xlu0 %390
    %394 = vset.pattern.permute.xlu0 0
    %395 = vperm.xlu0 %394, %v325
    %v396 = vpop.permute.xlu0 %395
    %399 = vset.pattern.permute.xlu0 0
    %400 = vperm.xlu0 %399, %v326
    %v401 = vpop.permute.xlu0 %400
    %404 = vset.pattern.permute.xlu0 0
    %405 = vperm.xlu0 %404, %v327
    %v406 = vpop.permute.xlu0 %405
    %409 = vset.pattern.permute.xlu0 0
    %410 = vperm.xlu0 %409, %v328
    %v411 = vpop.permute.xlu0 %410
    %414 = vset.pattern.permute.xlu0 0
    %415 = vperm.xlu0 %414, %v329
    %v416 = vpop.permute.xlu0 %415
    %v418 = vadd.f32 %v370, %v381
    %v419 = vadd.f32 %v371, %v386
    %v420 = vadd.f32 %v372, %v391
    %v421 = vadd.f32 %v373, %v396
    %v422 = vadd.f32 %v374, %v401
    %v423 = vadd.f32 %v375, %v406
    %v424 = vadd.f32 %v376, %v411
    %v425 = vadd.f32 %v377, %v416
    %v426 = vmax.f32 %v418, 0.0
    %v427 = vmax.f32 %v419, 0.0
    %v428 = vmax.f32 %v420, 0.0
    %v429 = vmax.f32 %v421, 0.0
    %v430 = vmax.f32 %v422, 0.0
    %v431 = vmax.f32 %v423, 0.0
    %v432 = vmax.f32 %v424, 0.0
    %v433 = vmax.f32 %v425, 0.0
    %v434 = vpack.c.bf16 %v427, %v426
    %v435 = vpack.c.bf16 %v429, %v428
    %v436 = vpack.c.bf16 %v431, %v430
    %v437 = vpack.c.bf16 %v433, %v432
    %v442 = vunpack.c.l.b16 %v434
    %v443 = vunpack.c.h.b16 %v434
    %v444 = vunpack.c.l.b16 %v435
    %v445 = vunpack.c.h.b16 %v435
    %v446 = vunpack.c.l.b16 %v436
    %v447 = vunpack.c.h.b16 %v436
    %v448 = vunpack.c.l.b16 %v437
    %v449 = vunpack.c.h.b16 %v437
    %v450 = vpack.c.b16 %v442, %v442
    %v451 = vpack.c.b16 %v443, %v443
    %v452 = vpack.c.b16 %v444, %v444
    %v453 = vpack.c.b16 %v445, %v445
    %v454 = vpack.c.b16 %v446, %v446
    %v455 = vpack.c.b16 %v447, %v447
    %v456 = vpack.c.b16 %v448, %v448
    %v457 = vpack.c.b16 %v449, %v449
    %vm466 = vcmask 257024
    %467 = vst.msk [vmem:[%s4] sm:$0xf] %vm466, %v450
    %468 = vst.msk [vmem:[%s4 + $0x4] sm:$0xf] %vm466, %v451
    %469 = vst.msk [vmem:[%s4 + $0x8] sm:$0xf] %vm466, %v452
    %470 = vst.msk [vmem:[%s4 + $0xc] sm:$0xf] %vm466, %v453
    %471 = vst.msk [vmem:[%s4 + $0x10] sm:$0xf] %vm466, %v454
    %472 = vst.msk [vmem:[%s4 + $0x14] sm:$0xf] %vm466, %v455
    %473 = vst.msk [vmem:[%s4 + $0x18] sm:$0xf] %vm466, %v456
    %474 = vst.msk [vmem:[%s4 + $0x1c] sm:$0xf] %vm466, %v457
    // Predicated region
    $region22: #{generator_forward.5} parent=1 // pred_check
      _
    $region23: #{generator_forward.5} parent=1 // pred_check_branch
      %476 = sbr.rel (0) target = $region25
    $region24: #{generator_forward.5} parent=1 // pred_region
      _
    $region25: #{generator_forward.5} parent=1 // pred_fallthru
      _
    // Predicated region
    $region26: #{generator_forward.5} parent=1 // pred_check
      _
    $region27: #{generator_forward.5} parent=1 // pred_check_branch
      %478 = sbr.rel (0) target = $region29
    $region28: #{generator_forward.5} parent=1 // pred_region
      _
    $region29: #{generator_forward.5} parent=1 // pred_fallthru
      _
    %479 = vsyncpa [#allocation3], 1

// kernel: generator_forward.6
$region0: #{generator_forward.6}
  #allocation0 [shape = 'u32[]', space=smem, size = 0x4, offset = 0x4, fixed_abs, tag = 'smem constant byte address 0x4 - core index']
  #allocation1 [shape = 'u32[144,128]{1,0:T(1,128)}', space=vmem, size = 0x12000, scoped, tag = 'internal scratch']
  %s0 = inlined_call_operand.vmem [shape: bf16[4,256,32], index: 0, kind: input, shape index: {}]
  %s1 = inlined_call_operand.hbm [shape: bf16[4,32,256], index: 1, kind: input, shape index: {}]
  %s2 = inlined_call_operand.vmem [shape: f32[32,1], index: 2, kind: input, shape index: {}]
  %s3 = inlined_call_operand.vmem [shape: f32[32,1], index: 3, kind: input, shape index: {}]
  %s4 = inlined_call_operand.vmem [shape: bf16[4,32,32], index: 4, kind: output, shape index: {}]
  %s5 = sld [smem:[#allocation0]]
  $region30: #{generator_forward.6} parent=0
    _
  %s7 = ssub.s32 1, %s5
  %s8 = scalar_select 0, %s7, %s5
  $region1: #{generator_forward.6} parent=0
    #allocation2 [shape = 'u8[65536]{0}', space=vmem, size = 0x10000, scoped, tag = 'input window, operand 1, single buffered']
    #allocation3 [shape = 's32[1]{0}', space=sflag, size = 0x4, scoped, tag = 'scoped memory for generator_forward.6']
    %9 = vsyncpa [#allocation3], 0
    // Predicated region
    $region2: #{generator_forward.6} parent=1 // pred_check
      _
    $region3: #{generator_forward.6} parent=1 // pred_check_branch
      %11 = sbr.rel (0) target = $region5
    $region4: #{generator_forward.6} parent=1 // pred_region
      _
    $region5: #{generator_forward.6} parent=1 // pred_fallthru
      _
    // Predicated region
    $region6: #{generator_forward.6} parent=1 // pred_check
      _
    $region7: #{generator_forward.6} parent=1 // pred_check_branch
      %13 = sbr.rel (0) target = $region9
    $region8: #{generator_forward.6} parent=1 // pred_region
      %s15 = ssub.s32 2048, 2048
      %16 = vsyncadd [#allocation3], %s15
      %s17 = sshll.u32 [#allocation2], 4
      %s18 = int_to_ptr.vmem [resolvable:$true] %s17
      %23 = dma.hbm_to_vmem [thread:$0]  %s1, 2048, %s18, [#allocation3], 128, 128, 8
    $region9: #{generator_forward.6} parent=1 // pred_fallthru
      _
    // Predicated region
    $region10: #{generator_forward.6} parent=1 // pred_check
      _
    $region11: #{generator_forward.6} parent=1 // pred_check_branch
      %25 = sbr.rel (0) target = $region13
    $region12: #{generator_forward.6} parent=1 // pred_region
      _
    $region13: #{generator_forward.6} parent=1 // pred_fallthru
      _
    // Predicated region
    $region14: #{generator_forward.6} parent=1 // pred_check
      _
    $region15: #{generator_forward.6} parent=1 // pred_check_branch
      %27 = sbr.rel (0) target = $region17
    $region16: #{generator_forward.6} parent=1 // pred_region
      _
    $region17: #{generator_forward.6} parent=1 // pred_fallthru
      _
    // Predicated region
    $region18: #{generator_forward.6} parent=1 // pred_check
      _
    $region19: #{generator_forward.6} parent=1 // pred_check_branch
      %29 = sbr.rel (0) target = $region21
    $region20: #{generator_forward.6} parent=1 // pred_region
      %30 = dma.done [#allocation3], 2048
    $region21: #{generator_forward.6} parent=1 // pred_fallthru
      _
    %v32 = vld [vmem:[#allocation2] sm:$0xff]
    %v33 = vld [vmem:[#allocation2 + $0x8] sm:$0xff]
    %v34 = vld [vmem:[#allocation2 + $0x10] sm:$0xff]
    %v35 = vld [vmem:[#allocation2 + $0x18] sm:$0xff]
    %v36 = vld [vmem:[%s0] sm:$0xf]
    %v37 = vld [vmem:[%s0 + $0x4] sm:$0xf]
    %v38 = vld [vmem:[%s0 + $0x8] sm:$0xf]
    %v39 = vld [vmem:[%s0 + $0xc] sm:$0xf]
    %v40 = vld [vmem:[%s0 + $0x10] sm:$0xf]
    %v41 = vld [vmem:[%s0 + $0x14] sm:$0xf]
    %v42 = vld [vmem:[%s0 + $0x18] sm:$0xf]
    %v43 = vld [vmem:[%s0 + $0x1c] sm:$0xf]
    %v44 = vld [vmem:[%s0 + $0x20] sm:$0xf]
    %v45 = vld [vmem:[%s0 + $0x24] sm:$0xf]
    %v46 = vld [vmem:[%s0 + $0x28] sm:$0xf]
    %v47 = vld [vmem:[%s0 + $0x2c] sm:$0xf]
    %v48 = vld [vmem:[%s0 + $0x30] sm:$0xf]
    %v49 = vld [vmem:[%s0 + $0x34] sm:$0xf]
    %v50 = vld [vmem:[%s0 + $0x38] sm:$0xf]
    %v51 = vld [vmem:[%s0 + $0x3c] sm:$0xf]
    %v52 = vld [vmem:[%s0 + $0x40] sm:$0xf]
    %v53 = vld [vmem:[%s0 + $0x44] sm:$0xf]
    %v54 = vld [vmem:[%s0 + $0x48] sm:$0xf]
    %v55 = vld [vmem:[%s0 + $0x4c] sm:$0xf]
    %v56 = vld [vmem:[%s0 + $0x50] sm:$0xf]
    %v57 = vld [vmem:[%s0 + $0x54] sm:$0xf]
    %v58 = vld [vmem:[%s0 + $0x58] sm:$0xf]
    %v59 = vld [vmem:[%s0 + $0x5c] sm:$0xf]
    %v60 = vld [vmem:[%s0 + $0x60] sm:$0xf]
    %v61 = vld [vmem:[%s0 + $0x64] sm:$0xf]
    %v62 = vld [vmem:[%s0 + $0x68] sm:$0xf]
    %v63 = vld [vmem:[%s0 + $0x6c] sm:$0xf]
    %v64 = vld [vmem:[%s0 + $0x70] sm:$0xf]
    %v65 = vld [vmem:[%s0 + $0x74] sm:$0xf]
    %v66 = vld [vmem:[%s0 + $0x78] sm:$0xf]
    %v67 = vld [vmem:[%s0 + $0x7c] sm:$0xf]
    %v72 = vunpack.c.l.b16 %v32
    %v73 = vunpack.c.h.b16 %v32
    %v74 = vunpack.c.l.b16 %v33
    %v75 = vunpack.c.h.b16 %v33
    %v76 = vunpack.c.l.b16 %v34
    %v77 = vunpack.c.h.b16 %v34
    %v78 = vunpack.c.l.b16 %v35
    %v79 = vunpack.c.h.b16 %v35
    %v80 = vpack.c.b16 %v74, %v72
    %v81 = vpack.c.b16 %v75, %v73
    %v82 = vpack.c.b16 %v78, %v76
    %v83 = vpack.c.b16 %v79, %v77
    %v120 = vunpack.c.l.b16 %v36
    %v121 = vunpack.c.l.b16 %v37
    %v122 = vunpack.c.l.b16 %v38
    %v123 = vunpack.c.l.b16 %v39
    %v124 = vunpack.c.l.b16 %v40
    %v125 = vunpack.c.l.b16 %v41
    %v126 = vunpack.c.l.b16 %v42
    %v127 = vunpack.c.l.b16 %v43
    %v128 = vunpack.c.l.b16 %v44
    %v129 = vunpack.c.l.b16 %v45
    %v130 = vunpack.c.l.b16 %v46
    %v131 = vunpack.c.l.b16 %v47
    %v132 = vunpack.c.l.b16 %v48
    %v133 = vunpack.c.l.b16 %v49
    %v134 = vunpack.c.l.b16 %v50
    %v135 = vunpack.c.l.b16 %v51
    %v136 = vunpack.c.l.b16 %v52
    %v137 = vunpack.c.l.b16 %v53
    %v138 = vunpack.c.l.b16 %v54
    %v139 = vunpack.c.l.b16 %v55
    %v140 = vunpack.c.l.b16 %v56
    %v141 = vunpack.c.l.b16 %v57
    %v142 = vunpack.c.l.b16 %v58
    %v143 = vunpack.c.l.b16 %v59
    %v144 = vunpack.c.l.b16 %v60
    %v145 = vunpack.c.l.b16 %v61
    %v146 = vunpack.c.l.b16 %v62
    %v147 = vunpack.c.l.b16 %v63
    %v148 = vunpack.c.l.b16 %v64
    %v149 = vunpack.c.l.b16 %v65
    %v150 = vunpack.c.l.b16 %v66
    %v151 = vunpack.c.l.b16 %v67
    %v152 = vpack.c.b16 %v121, %v120
    %v153 = vpack.c.b16 %v123, %v122
    %v154 = vpack.c.b16 %v125, %v124
    %v155 = vpack.c.b16 %v127, %v126
    %v156 = vpack.c.b16 %v129, %v128
    %v157 = vpack.c.b16 %v131, %v130
    %v158 = vpack.c.b16 %v133, %v132
    %v159 = vpack.c.b16 %v135, %v134
    %v160 = vpack.c.b16 %v137, %v136
    %v161 = vpack.c.b16 %v139, %v138
    %v162 = vpack.c.b16 %v141, %v140
    %v163 = vpack.c.b16 %v143, %v142
    %v164 = vpack.c.b16 %v145, %v144
    %v165 = vpack.c.b16 %v147, %v146
    %v166 = vpack.c.b16 %v149, %v148
    %v167 = vpack.c.b16 %v151, %v150
    %184 = vmatprep.subr.bf16.mxu0 0
    %185 = vmatpush1.bf16.msra.mxu0 %v152
    %186 = vmatprep.subr.bf16.mxu0 0
    %187 = vmatpush1.bf16.msra.mxu0 %v153
    %188 = vmatprep.subr.bf16.mxu0 0
    %189 = vmatpush1.bf16.msra.mxu0 %v154
    %190 = vmatprep.subr.bf16.mxu0 0
    %191 = vmatpush1.bf16.msra.mxu0 %v155
    %192 = vmatprep.subr.bf16.mxu0 0
    %193 = vmatpush1.bf16.msra.mxu0 %v156
    %194 = vmatprep.subr.bf16.mxu0 0
    %195 = vmatpush1.bf16.msra.mxu0 %v157
    %196 = vmatprep.subr.bf16.mxu0 0
    %197 = vmatpush1.bf16.msra.mxu0 %v158
    %198 = vmatprep.subr.bf16.mxu0 0
    %199 = vmatpush1.bf16.msra.mxu0 %v159
    %200 = vmatprep.subr.bf16.mxu0 0
    %201 = vmatpush1.bf16.msra.mxu0 %v160
    %202 = vmatprep.subr.bf16.mxu0 0
    %203 = vmatpush1.bf16.msra.mxu0 %v161
    %204 = vmatprep.subr.bf16.mxu0 0
    %205 = vmatpush1.bf16.msra.mxu0 %v162
    %206 = vmatprep.subr.bf16.mxu0 0
    %207 = vmatpush1.bf16.msra.mxu0 %v163
    %208 = vmatprep.subr.bf16.mxu0 0
    %209 = vmatpush1.bf16.msra.mxu0 %v164
    %210 = vmatprep.subr.bf16.mxu0 0
    %211 = vmatpush1.bf16.msra.mxu0 %v165
    %212 = vmatprep.subr.bf16.mxu0 0
    %213 = vmatpush1.bf16.msra.mxu0 %v166
    %214 = vmatprep.subr.bf16.mxu0 0
    %215 = vmatpush1.bf16.msra.mxu0 %v167
    %216 = vmatprep.mubr.bf16.mxu0 %v81
    %217 = vmatmul.mubr.bf16.gmra.mrb[0].mxu0 %v80
    %v218 = vpop.f32.mrb[0].mxu0
    %v219 = vadd.f32 0.0, %v218
    %v220 = vpop.f32.mrb[0].mxu0
    %v221 = vpop.f32.mrb[0].mxu0
    %v222 = vadd.f32 0.0, %v221
    %v223 = vpop.f32.mrb[0].mxu0
    %224 = vmatprep.mubr.bf16.mxu0 %v83
    %225 = vmatmul.mubr.bf16.gmra.mrb[0].mxu0 %v82
    %v226 = vpop.f32.mrb[0].mxu0
    %v227 = vadd.f32 0.0, %v226
    %v228 = vpop.f32.mrb[0].mxu0
    %v229 = vpop.f32.mrb[0].mxu0
    %v230 = vadd.f32 0.0, %v229
    %v231 = vpop.f32.mrb[0].mxu0
    %232 = vdwg.mxu0
    %vm233 = vcmask 261120
    %v234 = vsel %vm233, %v219, 0.0
    %235 = vadd.xlane.f32.xlu0 %v234
    %v236 = vpop.xlane.xlu0 %235
    %v237 = vsel %vm233, %v222, 0.0
    %238 = vadd.xlane.f32.xlu0 %v237
    %v239 = vpop.xlane.xlu0 %238
    %v240 = vsel %vm233, %v227, 0.0
    %241 = vadd.xlane.f32.xlu0 %v240
    %v242 = vpop.xlane.xlu0 %241
    %v243 = vsel %vm233, %v230, 0.0
    %244 = vadd.xlane.f32.xlu0 %v243
    %v245 = vpop.xlane.xlu0 %244
    %s246 = scalar_lea.vmem [#allocation2], 32
    %v247 = vld [vmem:[%s246] sm:$0xff]
    %v248 = vld [vmem:[%s246 + $0x8] sm:$0xff]
    %v249 = vld [vmem:[%s246 + $0x10] sm:$0xff]
    %v250 = vld [vmem:[%s246 + $0x18] sm:$0xff]
    %s251 = scalar_lea.vmem %s0, 128
    %v252 = vld [vmem:[%s251] sm:$0xf]
    %v253 = vld [vmem:[%s251 + $0x4] sm:$0xf]
    %v254 = vld [vmem:[%s251 + $0x8] sm:$0xf]
    %v255 = vld [vmem:[%s251 + $0xc] sm:$0xf]
    %v256 = vld [vmem:[%s251 + $0x10] sm:$0xf]
    %v257 = vld [vmem:[%s251 + $0x14] sm:$0xf]
    %v258 = vld [vmem:[%s251 + $0x18] sm:$0xf]
    %v259 = vld [vmem:[%s251 + $0x1c] sm:$0xf]
    %v260 = vld [vmem:[%s251 + $0x20] sm:$0xf]
    %v261 = vld [vmem:[%s251 + $0x24] sm:$0xf]
    %v262 = vld [vmem:[%s251 + $0x28] sm:$0xf]
    %v263 = vld [vmem:[%s251 + $0x2c] sm:$0xf]
    %v264 = vld [vmem:[%s251 + $0x30] sm:$0xf]
    %v265 = vld [vmem:[%s251 + $0x34] sm:$0xf]
    %v266 = vld [vmem:[%s251 + $0x38] sm:$0xf]
    %v267 = vld [vmem:[%s251 + $0x3c] sm:$0xf]
    %v268 = vld [vmem:[%s251 + $0x40] sm:$0xf]
    %v269 = vld [vmem:[%s251 + $0x44] sm:$0xf]
    %v270 = vld [vmem:[%s251 + $0x48] sm:$0xf]
    %v271 = vld [vmem:[%s251 + $0x4c] sm:$0xf]
    %v272 = vld [vmem:[%s251 + $0x50] sm:$0xf]
    %v273 = vld [vmem:[%s251 + $0x54] sm:$0xf]
    %v274 = vld [vmem:[%s251 + $0x58] sm:$0xf]
    %v275 = vld [vmem:[%s251 + $0x5c] sm:$0xf]
    %v276 = vld [vmem:[%s251 + $0x60] sm:$0xf]
    %v277 = vld [vmem:[%s251 + $0x64] sm:$0xf]
    %v278 = vld [vmem:[%s251 + $0x68] sm:$0xf]
    %v279 = vld [vmem:[%s251 + $0x6c] sm:$0xf]
    %v280 = vld [vmem:[%s251 + $0x70] sm:$0xf]
    %v281 = vld [vmem:[%s251 + $0x74] sm:$0xf]
    %v282 = vld [vmem:[%s251 + $0x78] sm:$0xf]
    %v283 = vld [vmem:[%s251 + $0x7c] sm:$0xf]
    %v288 = vunpack.c.l.b16 %v247
    %v289 = vunpack.c.h.b16 %v247
    %v290 = vunpack.c.l.b16 %v248
    %v291 = vunpack.c.h.b16 %v248
    %v292 = vunpack.c.l.b16 %v249
    %v293 = vunpack.c.h.b16 %v249
    %v294 = vunpack.c.l.b16 %v250
    %v295 = vunpack.c.h.b16 %v250
    %v296 = vpack.c.b16 %v290, %v288
    %v297 = vpack.c.b16 %v291, %v289
    %v298 = vpack.c.b16 %v294, %v292
    %v299 = vpack.c.b16 %v295, %v293
    %v336 = vunpack.c.l.b16 %v252
    %v337 = vunpack.c.l.b16 %v253
    %v338 = vunpack.c.l.b16 %v254
    %v339 = vunpack.c.l.b16 %v255
    %v340 = vunpack.c.l.b16 %v256
    %v341 = vunpack.c.l.b16 %v257
    %v342 = vunpack.c.l.b16 %v258
    %v343 = vunpack.c.l.b16 %v259
    %v344 = vunpack.c.l.b16 %v260
    %v345 = vunpack.c.l.b16 %v261
    %v346 = vunpack.c.l.b16 %v262
    %v347 = vunpack.c.l.b16 %v263
    %v348 = vunpack.c.l.b16 %v264
    %v349 = vunpack.c.l.b16 %v265
    %v350 = vunpack.c.l.b16 %v266
    %v351 = vunpack.c.l.b16 %v267
    %v352 = vunpack.c.l.b16 %v268
    %v353 = vunpack.c.l.b16 %v269
    %v354 = vunpack.c.l.b16 %v270
    %v355 = vunpack.c.l.b16 %v271
    %v356 = vunpack.c.l.b16 %v272
    %v357 = vunpack.c.l.b16 %v273
    %v358 = vunpack.c.l.b16 %v274
    %v359 = vunpack.c.l.b16 %v275
    %v360 = vunpack.c.l.b16 %v276
    %v361 = vunpack.c.l.b16 %v277
    %v362 = vunpack.c.l.b16 %v278
    %v363 = vunpack.c.l.b16 %v279
    %v364 = vunpack.c.l.b16 %v280
    %v365 = vunpack.c.l.b16 %v281
    %v366 = vunpack.c.l.b16 %v282
    %v367 = vunpack.c.l.b16 %v283
    %v368 = vpack.c.b16 %v337, %v336
    %v369 = vpack.c.b16 %v339, %v338
    %v370 = vpack.c.b16 %v341, %v340
    %v371 = vpack.c.b16 %v343, %v342
    %v372 = vpack.c.b16 %v345, %v344
    %v373 = vpack.c.b16 %v347, %v346
    %v374 = vpack.c.b16 %v349, %v348
    %v375 = vpack.c.b16 %v351, %v350
    %v376 = vpack.c.b16 %v353, %v352
    %v377 = vpack.c.b16 %v355, %v354
    %v378 = vpack.c.b16 %v357, %v356
    %v379 = vpack.c.b16 %v359, %v358
    %v380 = vpack.c.b16 %v361, %v360
    %v381 = vpack.c.b16 %v363, %v362
    %v382 = vpack.c.b16 %v365, %v364
    %v383 = vpack.c.b16 %v367, %v366
    %400 = vmatprep.subr.bf16.mxu0 0
    %401 = vmatpush1.bf16.msra.mxu0 %v368
    %402 = vmatprep.subr.bf16.mxu0 0
    %403 = vmatpush1.bf16.msra.mxu0 %v369
    %404 = vmatprep.subr.bf16.mxu0 0
    %405 = vmatpush1.bf16.msra.mxu0 %v370
    %406 = vmatprep.subr.bf16.mxu0 0
    %407 = vmatpush1.bf16.msra.mxu0 %v371
    %408 = vmatprep.subr.bf16.mxu0 0
    %409 = vmatpush1.bf16.msra.mxu0 %v372
    %410 = vmatprep.subr.bf16.mxu0 0
    %411 = vmatpush1.bf16.msra.mxu0 %v373
    %412 = vmatprep.subr.bf16.mxu0 0
    %413 = vmatpush1.bf16.msra.mxu0 %v374
    %414 = vmatprep.subr.bf16.mxu0 0
    %415 = vmatpush1.bf16.msra.mxu0 %v375
    %416 = vmatprep.subr.bf16.mxu0 0
    %417 = vmatpush1.bf16.msra.mxu0 %v376
    %418 = vmatprep.subr.bf16.mxu0 0
    %419 = vmatpush1.bf16.msra.mxu0 %v377
    %420 = vmatprep.subr.bf16.mxu0 0
    %421 = vmatpush1.bf16.msra.mxu0 %v378
    %422 = vmatprep.subr.bf16.mxu0 0
    %423 = vmatpush1.bf16.msra.mxu0 %v379
    %424 = vmatprep.subr.bf16.mxu0 0
    %425 = vmatpush1.bf16.msra.mxu0 %v380
    %426 = vmatprep.subr.bf16.mxu0 0
    %427 = vmatpush1.bf16.msra.mxu0 %v381
    %428 = vmatprep.subr.bf16.mxu0 0
    %429 = vmatpush1.bf16.msra.mxu0 %v382
    %430 = vmatprep.subr.bf16.mxu0 0
    %431 = vmatpush1.bf16.msra.mxu0 %v383
    %432 = vmatprep.mubr.bf16.mxu0 %v297
    %433 = vmatmul.mubr.bf16.gmra.mrb[0].mxu0 %v296
    %v434 = vpop.f32.mrb[0].mxu0
    %v435 = vadd.f32 0.0, %v434
    %v436 = vpop.f32.mrb[0].mxu0
    %v437 = vpop.f32.mrb[0].mxu0
    %v438 = vadd.f32 0.0, %v437
    %v439 = vpop.f32.mrb[0].mxu0
    %440 = vmatprep.mubr.bf16.mxu0 %v299
    %441 = vmatmul.mubr.bf16.gmra.mrb[0].mxu0 %v298
    %v442 = vpop.f32.mrb[0].mxu0
    %v443 = vadd.f32 0.0, %v442
    %v444 = vpop.f32.mrb[0].mxu0
    %v445 = vpop.f32.mrb[0].mxu0
    %v446 = vadd.f32 0.0, %v445
    %v447 = vpop.f32.mrb[0].mxu0
    %448 = vdwg.mxu0
    %v449 = vsel %vm233, %v435, 0.0
    %450 = vadd.xlane.f32.xlu0 %v449
    %v451 = vpop.xlane.xlu0 %450
    %v452 = vsel %vm233, %v438, 0.0
    %453 = vadd.xlane.f32.xlu0 %v452
    %v454 = vpop.xlane.xlu0 %453
    %v455 = vsel %vm233, %v443, 0.0
    %456 = vadd.xlane.f32.xlu0 %v455
    %v457 = vpop.xlane.xlu0 %456
    %v458 = vsel %vm233, %v446, 0.0
    %459 = vadd.xlane.f32.xlu0 %v458
    %v460 = vpop.xlane.xlu0 %459
    %v461 = vadd.f32 %v236, %v451
    %v462 = vadd.f32 %v239, %v454
    %v463 = vadd.f32 %v242, %v457
    %v464 = vadd.f32 %v245, %v460
    %s465 = scalar_lea.vmem [#allocation2], 64
    %v466 = vld [vmem:[%s465] sm:$0xff]
    %v467 = vld [vmem:[%s465 + $0x8] sm:$0xff]
    %v468 = vld [vmem:[%s465 + $0x10] sm:$0xff]
    %v469 = vld [vmem:[%s465 + $0x18] sm:$0xff]
    %s470 = scalar_lea.vmem %s0, 256
    %v471 = vld [vmem:[%s470] sm:$0xf]
    %v472 = vld [vmem:[%s470 + $0x4] sm:$0xf]
    %v473 = vld [vmem:[%s470 + $0x8] sm:$0xf]
    %v474 = vld [vmem:[%s470 + $0xc] sm:$0xf]
    %v475 = vld [vmem:[%s470 + $0x10] sm:$0xf]
    %v476 = vld [vmem:[%s470 + $0x14] sm:$0xf]
    %v477 = vld [vmem:[%s470 + $0x18] sm:$0xf]
    %v478 = vld [vmem:[%s470 + $0x1c] sm:$0xf]
    %v479 = vld [vmem:[%s470 + $0x20] sm:$0xf]
    %v480 = vld [vmem:[%s470 + $0x24] sm:$0xf]
    %v481 = vld [vmem:[%s470 + $0x28] sm:$0xf]
    %v482 = vld [vmem:[%s470 + $0x2c] sm:$0xf]
    %v483 = vld [vmem:[%s470 + $0x30] sm:$0xf]
    %v484 = vld [vmem:[%s470 + $0x34] sm:$0xf]
    %v485 = vld [vmem:[%s470 + $0x38] sm:$0xf]
    %v486 = vld [vmem:[%s470 + $0x3c] sm:$0xf]
    %v487 = vld [vmem:[%s470 + $0x40] sm:$0xf]
    %v488 = vld [vmem:[%s470 + $0x44] sm:$0xf]
    %v489 = vld [vmem:[%s470 + $0x48] sm:$0xf]
    %v490 = vld [vmem:[%s470 + $0x4c] sm:$0xf]
    %v491 = vld [vmem:[%s470 + $0x50] sm:$0xf]
    %v492 = vld [vmem:[%s470 + $0x54] sm:$0xf]
    %v493 = vld [vmem:[%s470 + $0x58] sm:$0xf]
    %v494 = vld [vmem:[%s470 + $0x5c] sm:$0xf]
    %v495 = vld [vmem:[%s470 + $0x60] sm:$0xf]
    %v496 = vld [vmem:[%s470 + $0x64] sm:$0xf]
    %v497 = vld [vmem:[%s470 + $0x68] sm:$0xf]
    %v498 = vld [vmem:[%s470 + $0x6c] sm:$0xf]
    %v499 = vld [vmem:[%s470 + $0x70] sm:$0xf]
    %v500 = vld [vmem:[%s470 + $0x74] sm:$0xf]
    %v501 = vld [vmem:[%s470 + $0x78] sm:$0xf]
    %v502 = vld [vmem:[%s470 + $0x7c] sm:$0xf]
    %v507 = vunpack.c.l.b16 %v466
    %v508 = vunpack.c.h.b16 %v466
    %v509 = vunpack.c.l.b16 %v467
    %v510 = vunpack.c.h.b16 %v467
    %v511 = vunpack.c.l.b16 %v468
    %v512 = vunpack.c.h.b16 %v468
    %v513 = vunpack.c.l.b16 %v469
    %v514 = vunpack.c.h.b16 %v469
    %v515 = vpack.c.b16 %v509, %v507
    %v516 = vpack.c.b16 %v510, %v508
    %v517 = vpack.c.b16 %v513, %v511
    %v518 = vpack.c.b16 %v514, %v512
    %v555 = vunpack.c.l.b16 %v471
    %v556 = vunpack.c.l.b16 %v472
    %v557 = vunpack.c.l.b16 %v473
    %v558 = vunpack.c.l.b16 %v474
    %v559 = vunpack.c.l.b16 %v475
    %v560 = vunpack.c.l.b16 %v476
    %v561 = vunpack.c.l.b16 %v477
    %v562 = vunpack.c.l.b16 %v478
    %v563 = vunpack.c.l.b16 %v479
    %v564 = vunpack.c.l.b16 %v480
    %v565 = vunpack.c.l.b16 %v481
    %v566 = vunpack.c.l.b16 %v482
    %v567 = vunpack.c.l.b16 %v483
    %v568 = vunpack.c.l.b16 %v484
    %v569 = vunpack.c.l.b16 %v485
    %v570 = vunpack.c.l.b16 %v486
    %v571 = vunpack.c.l.b16 %v487
    %v572 = vunpack.c.l.b16 %v488
    %v573 = vunpack.c.l.b16 %v489
    %v574 = vunpack.c.l.b16 %v490
    %v575 = vunpack.c.l.b16 %v491
    %v576 = vunpack.c.l.b16 %v492
    %v577 = vunpack.c.l.b16 %v493
    %v578 = vunpack.c.l.b16 %v494
    %v579 = vunpack.c.l.b16 %v495
    %v580 = vunpack.c.l.b16 %v496
    %v581 = vunpack.c.l.b16 %v497
    %v582 = vunpack.c.l.b16 %v498
    %v583 = vunpack.c.l.b16 %v499
    %v584 = vunpack.c.l.b16 %v500
    %v585 = vunpack.c.l.b16 %v501
    %v586 = vunpack.c.l.b16 %v502
    %v587 = vpack.c.b16 %v556, %v555
    %v588 = vpack.c.b16 %v558, %v557
    %v589 = vpack.c.b16 %v560, %v559
    %v590 = vpack.c.b16 %v562, %v561
    %v591 = vpack.c.b16 %v564, %v563
    %v592 = vpack.c.b16 %v566, %v565
    %v593 = vpack.c.b16 %v568, %v567
    %v594 = vpack.c.b16 %v570, %v569
    %v595 = vpack.c.b16 %v572, %v571
    %v596 = vpack.c.b16 %v574, %v573
    %v597 = vpack.c.b16 %v576, %v575
    %v598 = vpack.c.b16 %v578, %v577
    %v599 = vpack.c.b16 %v580, %v579
    %v600 = vpack.c.b16 %v582, %v581
    %v601 = vpack.c.b16 %v584, %v583
    %v602 = vpack.c.b16 %v586, %v585
    %619 = vmatprep.subr.bf16.mxu0 0
    %620 = vmatpush1.bf16.msra.mxu0 %v587
    %621 = vmatprep.subr.bf16.mxu0 0
    %622 = vmatpush1.bf16.msra.mxu0 %v588
    %623 = vmatprep.subr.bf16.mxu0 0
    %624 = vmatpush1.bf16.msra.mxu0 %v589
    %625 = vmatprep.subr.bf16.mxu0 0
    %626 = vmatpush1.bf16.msra.mxu0 %v590
    %627 = vmatprep.subr.bf16.mxu0 0
    %628 = vmatpush1.bf16.msra.mxu0 %v591
    %629 = vmatprep.subr.bf16.mxu0 0
    %630 = vmatpush1.bf16.msra.mxu0 %v592
    %631 = vmatprep.subr.bf16.mxu0 0
    %632 = vmatpush1.bf16.msra.mxu0 %v593
    %633 = vmatprep.subr.bf16.mxu0 0
    %634 = vmatpush1.bf16.msra.mxu0 %v594
    %635 = vmatprep.subr.bf16.mxu0 0
    %636 = vmatpush1.bf16.msra.mxu0 %v595
    %637 = vmatprep.subr.bf16.mxu0 0
    %638 = vmatpush1.bf16.msra.mxu0 %v596
    %639 = vmatprep.subr.bf16.mxu0 0
    %640 = vmatpush1.bf16.msra.mxu0 %v597
    %641 = vmatprep.subr.bf16.mxu0 0
    %642 = vmatpush1.bf16.msra.mxu0 %v598
    %643 = vmatprep.subr.bf16.mxu0 0
    %644 = vmatpush1.bf16.msra.mxu0 %v599
    %645 = vmatprep.subr.bf16.mxu0 0
    %646 = vmatpush1.bf16.msra.mxu0 %v600
    %647 = vmatprep.subr.bf16.mxu0 0
    %648 = vmatpush1.bf16.msra.mxu0 %v601
    %649 = vmatprep.subr.bf16.mxu0 0
    %650 = vmatpush1.bf16.msra.mxu0 %v602
    %651 = vmatprep.mubr.bf16.mxu0 %v516
    %652 = vmatmul.mubr.bf16.gmra.mrb[0].mxu0 %v515
    %v653 = vpop.f32.mrb[0].mxu0
    %v654 = vadd.f32 0.0, %v653
    %v655 = vpop.f32.mrb[0].mxu0
    %v656 = vpop.f32.mrb[0].mxu0
    %v657 = vadd.f32 0.0, %v656
    %v658 = vpop.f32.mrb[0].mxu0
    %659 = vmatprep.mubr.bf16.mxu0 %v518
    %660 = vmatmul.mubr.bf16.gmra.mrb[0].mxu0 %v517
    %v661 = vpop.f32.mrb[0].mxu0
    %v662 = vadd.f32 0.0, %v661
    %v663 = vpop.f32.mrb[0].mxu0
    %v664 = vpop.f32.mrb[0].mxu0
    %v665 = vadd.f32 0.0, %v664
    %v666 = vpop.f32.mrb[0].mxu0
    %667 = vdwg.mxu0
    %v668 = vsel %vm233, %v654, 0.0
    %669 = vadd.xlane.f32.xlu0 %v668
    %v670 = vpop.xlane.xlu0 %669
    %v671 = vsel %vm233, %v657, 0.0
    %672 = vadd.xlane.f32.xlu0 %v671
    %v673 = vpop.xlane.xlu0 %672
    %v674 = vsel %vm233, %v662, 0.0
    %675 = vadd.xlane.f32.xlu0 %v674
    %v676 = vpop.xlane.xlu0 %675
    %v677 = vsel %vm233, %v665, 0.0
    %678 = vadd.xlane.f32.xlu0 %v677
    %v679 = vpop.xlane.xlu0 %678
    %v680 = vadd.f32 %v461, %v670
    %v681 = vadd.f32 %v462, %v673
    %v682 = vadd.f32 %v463, %v676
    %v683 = vadd.f32 %v464, %v679
    %s684 = scalar_lea.vmem [#allocation2], 96
    %v685 = vld [vmem:[%s684] sm:$0xff]
    %v686 = vld [vmem:[%s684 + $0x8] sm:$0xff]
    %v687 = vld [vmem:[%s684 + $0x10] sm:$0xff]
    %v688 = vld [vmem:[%s684 + $0x18] sm:$0xff]
    %s689 = scalar_lea.vmem %s0, 384
    %v690 = vld [vmem:[%s689] sm:$0xf]
    %v691 = vld [vmem:[%s689 + $0x4] sm:$0xf]
    %v692 = vld [vmem:[%s689 + $0x8] sm:$0xf]
    %v693 = vld [vmem:[%s689 + $0xc] sm:$0xf]
    %v694 = vld [vmem:[%s689 + $0x10] sm:$0xf]
    %v695 = vld [vmem:[%s689 + $0x14] sm:$0xf]
    %v696 = vld [vmem:[%s689 + $0x18] sm:$0xf]
    %v697 = vld [vmem:[%s689 + $0x1c] sm:$0xf]
    %v698 = vld [vmem:[%s689 + $0x20] sm:$0xf]
    %v699 = vld [vmem:[%s689 + $0x24] sm:$0xf]
    %v700 = vld [vmem:[%s689 + $0x28] sm:$0xf]
    %v701 = vld [vmem:[%s689 + $0x2c] sm:$0xf]
    %v702 = vld [vmem:[%s689 + $0x30] sm:$0xf]
    %v703 = vld [vmem:[%s689 + $0x34] sm:$0xf]
    %v704 = vld [vmem:[%s689 + $0x38] sm:$0xf]
    %v705 = vld [vmem:[%s689 + $0x3c] sm:$0xf]
    %v706 = vld [vmem:[%s689 + $0x40] sm:$0xf]
    %v707 = vld [vmem:[%s689 + $0x44] sm:$0xf]
    %v708 = vld [vmem:[%s689 + $0x48] sm:$0xf]
    %v709 = vld [vmem:[%s689 + $0x4c] sm:$0xf]
    %v710 = vld [vmem:[%s689 + $0x50] sm:$0xf]
    %v711 = vld [vmem:[%s689 + $0x54] sm:$0xf]
    %v712 = vld [vmem:[%s689 + $0x58] sm:$0xf]
    %v713 = vld [vmem:[%s689 + $0x5c] sm:$0xf]
    %v714 = vld [vmem:[%s689 + $0x60] sm:$0xf]
    %v715 = vld [vmem:[%s689 + $0x64] sm:$0xf]
    %v716 = vld [vmem:[%s689 + $0x68] sm:$0xf]
    %v717 = vld [vmem:[%s689 + $0x6c] sm:$0xf]
    %v718 = vld [vmem:[%s689 + $0x70] sm:$0xf]
    %v719 = vld [vmem:[%s689 + $0x74] sm:$0xf]
    %v720 = vld [vmem:[%s689 + $0x78] sm:$0xf]
    %v721 = vld [vmem:[%s689 + $0x7c] sm:$0xf]
    %v726 = vunpack.c.l.b16 %v685
    %v727 = vunpack.c.h.b16 %v685
    %v728 = vunpack.c.l.b16 %v686
    %v729 = vunpack.c.h.b16 %v686
    %v730 = vunpack.c.l.b16 %v687
    %v731 = vunpack.c.h.b16 %v687
    %v732 = vunpack.c.l.b16 %v688
    %v733 = vunpack.c.h.b16 %v688
    %v734 = vpack.c.b16 %v728, %v726
    %v735 = vpack.c.b16 %v729, %v727
    %v736 = vpack.c.b16 %v732, %v730
    %v737 = vpack.c.b16 %v733, %v731
    %v774 = vunpack.c.l.b16 %v690
    %v775 = vunpack.c.l.b16 %v691
    %v776 = vunpack.c.l.b16 %v692
    %v777 = vunpack.c.l.b16 %v693
    %v778 = vunpack.c.l.b16 %v694
    %v779 = vunpack.c.l.b16 %v695
    %v780 = vunpack.c.l.b16 %v696
    %v781 = vunpack.c.l.b16 %v697
    %v782 = vunpack.c.l.b16 %v698
    %v783 = vunpack.c.l.b16 %v699
    %v784 = vunpack.c.l.b16 %v700
    %v785 = vunpack.c.l.b16 %v701
    %v786 = vunpack.c.l.b16 %v702
    %v787 = vunpack.c.l.b16 %v703
    %v788 = vunpack.c.l.b16 %v704
    %v789 = vunpack.c.l.b16 %v705
    %v790 = vunpack.c.l.b16 %v706
    %v791 = vunpack.c.l.b16 %v707
    %v792 = vunpack.c.l.b16 %v708
    %v793 = vunpack.c.l.b16 %v709
    %v794 = vunpack.c.l.b16 %v710
    %v795 = vunpack.c.l.b16 %v711
    %v796 = vunpack.c.l.b16 %v712
    %v797 = vunpack.c.l.b16 %v713
    %v798 = vunpack.c.l.b16 %v714
    %v799 = vunpack.c.l.b16 %v715
    %v800 = vunpack.c.l.b16 %v716
    %v801 = vunpack.c.l.b16 %v717
    %v802 = vunpack.c.l.b16 %v718
    %v803 = vunpack.c.l.b16 %v719
    %v804 = vunpack.c.l.b16 %v720
    %v805 = vunpack.c.l.b16 %v721
    %v806 = vpack.c.b16 %v775, %v774
    %v807 = vpack.c.b16 %v777, %v776
    %v808 = vpack.c.b16 %v779, %v778
    %v809 = vpack.c.b16 %v781, %v780
    %v810 = vpack.c.b16 %v783, %v782
    %v811 = vpack.c.b16 %v785, %v784
    %v812 = vpack.c.b16 %v787, %v786
    %v813 = vpack.c.b16 %v789, %v788
    %v814 = vpack.c.b16 %v791, %v790
    %v815 = vpack.c.b16 %v793, %v792
    %v816 = vpack.c.b16 %v795, %v794
    %v817 = vpack.c.b16 %v797, %v796
    %v818 = vpack.c.b16 %v799, %v798
    %v819 = vpack.c.b16 %v801, %v800
    %v820 = vpack.c.b16 %v803, %v802
    %v821 = vpack.c.b16 %v805, %v804
    %838 = vmatprep.subr.bf16.mxu0 0
    %839 = vmatpush1.bf16.msra.mxu0 %v806
    %840 = vmatprep.subr.bf16.mxu0 0
    %841 = vmatpush1.bf16.msra.mxu0 %v807
    %842 = vmatprep.subr.bf16.mxu0 0
    %843 = vmatpush1.bf16.msra.mxu0 %v808
    %844 = vmatprep.subr.bf16.mxu0 0
    %845 = vmatpush1.bf16.msra.mxu0 %v809
    %846 = vmatprep.subr.bf16.mxu0 0
    %847 = vmatpush1.bf16.msra.mxu0 %v810
    %848 = vmatprep.subr.bf16.mxu0 0
    %849 = vmatpush1.bf16.msra.mxu0 %v811
    %850 = vmatprep.subr.bf16.mxu0 0
    %851 = vmatpush1.bf16.msra.mxu0 %v812
    %852 = vmatprep.subr.bf16.mxu0 0
    %853 = vmatpush1.bf16.msra.mxu0 %v813
    %854 = vmatprep.subr.bf16.mxu0 0
    %855 = vmatpush1.bf16.msra.mxu0 %v814
    %856 = vmatprep.subr.bf16.mxu0 0
    %857 = vmatpush1.bf16.msra.mxu0 %v815
    %858 = vmatprep.subr.bf16.mxu0 0
    %859 = vmatpush1.bf16.msra.mxu0 %v816
    %860 = vmatprep.subr.bf16.mxu0 0
    %861 = vmatpush1.bf16.msra.mxu0 %v817
    %862 = vmatprep.subr.bf16.mxu0 0
    %863 = vmatpush1.bf16.msra.mxu0 %v818
    %864 = vmatprep.subr.bf16.mxu0 0
    %865 = vmatpush1.bf16.msra.mxu0 %v819
    %866 = vmatprep.subr.bf16.mxu0 0
    %867 = vmatpush1.bf16.msra.mxu0 %v820
    %868 = vmatprep.subr.bf16.mxu0 0
    %869 = vmatpush1.bf16.msra.mxu0 %v821
    %870 = vmatprep.mubr.bf16.mxu0 %v735
    %871 = vmatmul.mubr.bf16.gmra.mrb[0].mxu0 %v734
    %v872 = vpop.f32.mrb[0].mxu0
    %v873 = vadd.f32 0.0, %v872
    %v874 = vpop.f32.mrb[0].mxu0
    %v875 = vpop.f32.mrb[0].mxu0
    %v876 = vadd.f32 0.0, %v875
    %v877 = vpop.f32.mrb[0].mxu0
    %878 = vmatprep.mubr.bf16.mxu0 %v737
    %879 = vmatmul.mubr.bf16.gmra.mrb[0].mxu0 %v736
    %v880 = vpop.f32.mrb[0].mxu0
    %v881 = vadd.f32 0.0, %v880
    %v882 = vpop.f32.mrb[0].mxu0
    %v883 = vpop.f32.mrb[0].mxu0
    %v884 = vadd.f32 0.0, %v883
    %v885 = vpop.f32.mrb[0].mxu0
    %886 = vdwg.mxu0
    %v887 = vsel %vm233, %v873, 0.0
    %888 = vadd.xlane.f32.xlu0 %v887
    %v889 = vpop.xlane.xlu0 %888
    %v890 = vsel %vm233, %v876, 0.0
    %891 = vadd.xlane.f32.xlu0 %v890
    %v892 = vpop.xlane.xlu0 %891
    %v893 = vsel %vm233, %v881, 0.0
    %894 = vadd.xlane.f32.xlu0 %v893
    %v895 = vpop.xlane.xlu0 %894
    %v896 = vsel %vm233, %v884, 0.0
    %897 = vadd.xlane.f32.xlu0 %v896
    %v898 = vpop.xlane.xlu0 %897
    %v899 = vadd.f32 %v680, %v889
    %v900 = vadd.f32 %v681, %v892
    %v901 = vadd.f32 %v682, %v895
    %v902 = vadd.f32 %v683, %v898
    %v903 = vmul.f32 %v899, 0.0078125
    %v904 = vmul.f32 %v900, 0.0078125
    %v905 = vmul.f32 %v901, 0.0078125
    %v906 = vmul.f32 %v902, 0.0078125
    %v907 = vsub.f32 %v219, %v903
    %v908 = vsub.f32 %v222, %v904
    %v909 = vsub.f32 %v227, %v905
    %v910 = vsub.f32 %v230, %v906
    %v911 = vmul.f32 %v907, %v907
    %v912 = vmul.f32 %v908, %v908
    %v913 = vmul.f32 %v909, %v909
    %v914 = vmul.f32 %v910, %v910
    %v915 = vsel %vm233, %v911, 0.0
    %916 = vadd.xlane.f32.xlu0 %v915
    %v917 = vpop.xlane.xlu0 %916
    %v918 = vsel %vm233, %v912, 0.0
    %919 = vadd.xlane.f32.xlu0 %v918
    %v920 = vpop.xlane.xlu0 %919
    %v921 = vsel %vm233, %v913, 0.0
    %922 = vadd.xlane.f32.xlu0 %v921
    %v923 = vpop.xlane.xlu0 %922
    %v924 = vsel %vm233, %v914, 0.0
    %925 = vadd.xlane.f32.xlu0 %v924
    %v926 = vpop.xlane.xlu0 %925
    %v927 = vsub.f32 %v435, %v903
    %v928 = vsub.f32 %v438, %v904
    %v929 = vsub.f32 %v443, %v905
    %v930 = vsub.f32 %v446, %v906
    %v931 = vmul.f32 %v927, %v927
    %v932 = vmul.f32 %v928, %v928
    %v933 = vmul.f32 %v929, %v929
    %v934 = vmul.f32 %v930, %v930
    %v935 = vsel %vm233, %v931, 0.0
    %936 = vadd.xlane.f32.xlu0 %v935
    %v937 = vpop.xlane.xlu0 %936
    %v938 = vsel %vm233, %v932, 0.0
    %939 = vadd.xlane.f32.xlu0 %v938
    %v940 = vpop.xlane.xlu0 %939
    %v941 = vsel %vm233, %v933, 0.0
    %942 = vadd.xlane.f32.xlu0 %v941
    %v943 = vpop.xlane.xlu0 %942
    %v944 = vsel %vm233, %v934, 0.0
    %945 = vadd.xlane.f32.xlu0 %v944
    %v946 = vpop.xlane.xlu0 %945
    %v947 = vadd.f32 %v917, %v937
    %v948 = vadd.f32 %v920, %v940
    %v949 = vadd.f32 %v923, %v943
    %v950 = vadd.f32 %v926, %v946
    %v951 = vsub.f32 %v654, %v903
    %v952 = vsub.f32 %v657, %v904
    %v953 = vsub.f32 %v662, %v905
    %v954 = vsub.f32 %v665, %v906
    %v955 = vmul.f32 %v951, %v951
    %v956 = vmul.f32 %v952, %v952
    %v957 = vmul.f32 %v953, %v953
    %v958 = vmul.f32 %v954, %v954
    %v959 = vsel %vm233, %v955, 0.0
    %960 = vadd.xlane.f32.xlu0 %v959
    %v961 = vpop.xlane.xlu0 %960
    %v962 = vsel %vm233, %v956, 0.0
    %963 = vadd.xlane.f32.xlu0 %v962
    %v964 = vpop.xlane.xlu0 %963
    %v965 = vsel %vm233, %v957, 0.0
    %966 = vadd.xlane.f32.xlu0 %v965
    %v967 = vpop.xlane.xlu0 %966
    %v968 = vsel %vm233, %v958, 0.0
    %969 = vadd.xlane.f32.xlu0 %v968
    %v970 = vpop.xlane.xlu0 %969
    %v971 = vadd.f32 %v947, %v961
    %v972 = vadd.f32 %v948, %v964
    %v973 = vadd.f32 %v949, %v967
    %v974 = vadd.f32 %v950, %v970
    %v975 = vsub.f32 %v873, %v903
    %v976 = vsub.f32 %v876, %v904
    %v977 = vsub.f32 %v881, %v905
    %v978 = vsub.f32 %v884, %v906
    %v979 = vmul.f32 %v975, %v975
    %v980 = vmul.f32 %v976, %v976
    %v981 = vmul.f32 %v977, %v977
    %v982 = vmul.f32 %v978, %v978
    %v983 = vsel %vm233, %v979, 0.0
    %984 = vadd.xlane.f32.xlu0 %v983
    %v985 = vpop.xlane.xlu0 %984
    %v986 = vsel %vm233, %v980, 0.0
    %987 = vadd.xlane.f32.xlu0 %v986
    %v988 = vpop.xlane.xlu0 %987
    %v989 = vsel %vm233, %v981, 0.0
    %990 = vadd.xlane.f32.xlu0 %v989
    %v991 = vpop.xlane.xlu0 %990
    %v992 = vsel %vm233, %v982, 0.0
    %993 = vadd.xlane.f32.xlu0 %v992
    %v994 = vpop.xlane.xlu0 %993
    %v995 = vadd.f32 %v971, %v985
    %v996 = vadd.f32 %v972, %v988
    %v997 = vadd.f32 %v973, %v991
    %v998 = vadd.f32 %v974, %v994
    %v999 = vmul.f32 %v995, 0.0078125
    %v1000 = vmul.f32 %v996, 0.0078125
    %v1001 = vmul.f32 %v997, 0.0078125
    %v1002 = vmul.f32 %v998, 0.0078125
    %v1003 = vadd.f32 %v999, 1e-05
    %v1004 = vadd.f32 %v1000, 1e-05
    %v1005 = vadd.f32 %v1001, 1e-05
    %v1006 = vadd.f32 %v1002, 1e-05
    %v1007 = vrsqrt.pop %v1003
    %v1008 = vrsqrt.pop %v1004
    %v1009 = vrsqrt.pop %v1005
    %v1010 = vrsqrt.pop %v1006
    %v1011 = vld [vmem:[%s2] sm:$0xff]
    %v1012 = vld [vmem:[%s2 + $0x8] sm:$0xff]
    %v1013 = vld [vmem:[%s2 + $0x10] sm:$0xff]
    %v1014 = vld [vmem:[%s2 + $0x18] sm:$0xff]
    %v1015 = vmul.f32 %v1011, %v1007
    %v1016 = vmul.f32 %v1012, %v1008
    %v1017 = vmul.f32 %v1013, %v1009
    %v1018 = vmul.f32 %v1014, %v1010
    %v1019 = vld [vmem:[%s3] sm:$0xff]
    %v1020 = vld [vmem:[%s3 + $0x8] sm:$0xff]
    %v1021 = vld [vmem:[%s3 + $0x10] sm:$0xff]
    %v1022 = vld [vmem:[%s3 + $0x18] sm:$0xff]
    %v1023 = vmul.f32 %v903, %v1015
    %v1024 = vmul.f32 %v904, %v1016
    %v1025 = vmul.f32 %v905, %v1017
    %v1026 = vmul.f32 %v906, %v1018
    %v1027 = vsub.f32 %v1019, %v1023
    %v1028 = vsub.f32 %v1020, %v1024
    %v1029 = vsub.f32 %v1021, %v1025
    %v1030 = vsub.f32 %v1022, %v1026
    %1032 = vset.pattern.permute.xlu0 0
    %1033 = vperm.xlu0 %1032, %v1015
    %v1034 = vpop.permute.xlu0 %1033
    %1037 = vset.pattern.permute.xlu0 0
    %1038 = vperm.xlu0 %1037, %v1016
    %v1039 = vpop.permute.xlu0 %1038
    %1042 = vset.pattern.permute.xlu0 0
    %1043 = vperm.xlu0 %1042, %v1017
    %v1044 = vpop.permute.xlu0 %1043
    %1047 = vset.pattern.permute.xlu0 0
    %1048 = vperm.xlu0 %1047, %v1018
    %v1049 = vpop.permute.xlu0 %1048
    %v1051 = vmul.f32 %v219, %v1034
    %v1052 = vmul.f32 %v222, %v1039
    %v1053 = vmul.f32 %v227, %v1044
    %v1054 = vmul.f32 %v230, %v1049
    %1056 = vset.pattern.permute.xlu0 0
    %1057 = vperm.xlu0 %1056, %v1027
    %v1058 = vpop.permute.xlu0 %1057
    %1061 = vset.pattern.permute.xlu0 0
    %1062 = vperm.xlu0 %1061, %v1028
    %v1063 = vpop.permute.xlu0 %1062
    %1066 = vset.pattern.permute.xlu0 0
    %1067 = vperm.xlu0 %1066, %v1029
    %v1068 = vpop.permute.xlu0 %1067
    %1071 = vset.pattern.permute.xlu0 0
    %1072 = vperm.xlu0 %1071, %v1030
    %v1073 = vpop.permute.xlu0 %1072
    %v1075 = vadd.f32 %v1051, %v1058
    %v1076 = vadd.f32 %v1052, %v1063
    %v1077 = vadd.f32 %v1053, %v1068
    %v1078 = vadd.f32 %v1054, %v1073
    %v1079 = vmax.f32 %v1075, 0.0
    %v1080 = vmax.f32 %v1076, 0.0
    %v1081 = vmax.f32 %v1077, 0.0
    %v1082 = vmax.f32 %v1078, 0.0
    %v1083 = vpack.c.bf16 %v1080, %v1079
    %v1084 = vpack.c.bf16 %v1082, %v1081
    %v1087 = vunpack.c.l.b16 %v1083
    %v1088 = vunpack.c.h.b16 %v1083
    %v1089 = vunpack.c.l.b16 %v1084
    %v1090 = vunpack.c.h.b16 %v1084
    %v1091 = vpack.c.b16 %v1087, %v1087
    %v1092 = vpack.c.b16 %v1088, %v1088
    %v1093 = vpack.c.b16 %v1089, %v1089
    %v1094 = vpack.c.b16 %v1090, %v1090
    %vm1099 = vcmask 257024
    %1100 = vst.msk [vmem:[%s4] sm:$0xf] %vm1099, %v1091
    %1101 = vst.msk [vmem:[%s4 + $0x4] sm:$0xf] %vm1099, %v1092
    %1102 = vst.msk [vmem:[%s4 + $0x8] sm:$0xf] %vm1099, %v1093
    %1103 = vst.msk [vmem:[%s4 + $0xc] sm:$0xf] %vm1099, %v1094
    %v1104 = vmul.f32 %v435, %v1034
    %v1105 = vmul.f32 %v438, %v1039
    %v1106 = vmul.f32 %v443, %v1044
    %v1107 = vmul.f32 %v446, %v1049
    %v1108 = vadd.f32 %v1104, %v1058
    %v1109 = vadd.f32 %v1105, %v1063
    %v1110 = vadd.f32 %v1106, %v1068
    %v1111 = vadd.f32 %v1107, %v1073
    %v1112 = vmax.f32 %v1108, 0.0
    %v1113 = vmax.f32 %v1109, 0.0
    %v1114 = vmax.f32 %v1110, 0.0
    %v1115 = vmax.f32 %v1111, 0.0
    %v1116 = vpack.c.bf16 %v1113, %v1112
    %v1117 = vpack.c.bf16 %v1115, %v1114
    %v1120 = vunpack.c.l.b16 %v1116
    %v1121 = vunpack.c.h.b16 %v1116
    %v1122 = vunpack.c.l.b16 %v1117
    %v1123 = vunpack.c.h.b16 %v1117
    %v1124 = vpack.c.b16 %v1120, %v1120
    %v1125 = vpack.c.b16 %v1121, %v1121
    %v1126 = vpack.c.b16 %v1122, %v1122
    %v1127 = vpack.c.b16 %v1123, %v1123
    %s1132 = scalar_lea.vmem %s4, 16
    %1133 = vst.msk [vmem:[%s1132] sm:$0xf] %vm1099, %v1124
    %1134 = vst.msk [vmem:[%s1132 + $0x4] sm:$0xf] %vm1099, %v1125
    %1135 = vst.msk [vmem:[%s1132 + $0x8] sm:$0xf] %vm1099, %v1126
    %1136 = vst.msk [vmem:[%s1132 + $0xc] sm:$0xf] %vm1099, %v1127
    %v1137 = vmul.f32 %v654, %v1034
    %v1138 = vmul.f32 %v657, %v1039
    %v1139 = vmul.f32 %v662, %v1044
    %v1140 = vmul.f32 %v665, %v1049
    %v1141 = vadd.f32 %v1137, %v1058
    %v1142 = vadd.f32 %v1138, %v1063
    %v1143 = vadd.f32 %v1139, %v1068
    %v1144 = vadd.f32 %v1140, %v1073
    %v1145 = vmax.f32 %v1141, 0.0
    %v1146 = vmax.f32 %v1142, 0.0
    %v1147 = vmax.f32 %v1143, 0.0
    %v1148 = vmax.f32 %v1144, 0.0
    %v1149 = vpack.c.bf16 %v1146, %v1145
    %v1150 = vpack.c.bf16 %v1148, %v1147
    %v1153 = vunpack.c.l.b16 %v1149
    %v1154 = vunpack.c.h.b16 %v1149
    %v1155 = vunpack.c.l.b16 %v1150
    %v1156 = vunpack.c.h.b16 %v1150
    %v1157 = vpack.c.b16 %v1153, %v1153
    %v1158 = vpack.c.b16 %v1154, %v1154
    %v1159 = vpack.c.b16 %v1155, %v1155
    %v1160 = vpack.c.b16 %v1156, %v1156
    %s1165 = scalar_lea.vmem %s4, 32
    %1166 = vst.msk [vmem:[%s1165] sm:$0xf] %vm1099, %v1157
    %1167 = vst.msk [vmem:[%s1165 + $0x4] sm:$0xf] %vm1099, %v1158
    %1168 = vst.msk [vmem:[%s1165 + $0x8] sm:$0xf] %vm1099, %v1159
    %1169 = vst.msk [vmem:[%s1165 + $0xc] sm:$0xf] %vm1099, %v1160
    %v1170 = vmul.f32 %v873, %v1034
    %v1171 = vmul.f32 %v876, %v1039
    %v1172 = vmul.f32 %v881, %v1044
    %v1173 = vmul.f32 %v884, %v1049
    %v1174 = vadd.f32 %v1170, %v1058
    %v1175 = vadd.f32 %v1171, %v1063
    %v1176 = vadd.f32 %v1172, %v1068
    %v1177 = vadd.f32 %v1173, %v1073
    %v1178 = vmax.f32 %v1174, 0.0
    %v1179 = vmax.f32 %v1175, 0.0
    %v1180 = vmax.f32 %v1176, 0.0
    %v1181 = vmax.f32 %v1177, 0.0
    %v1182 = vpack.c.bf16 %v1179, %v1178
    %v1183 = vpack.c.bf16 %v1181, %v1180
    %v1186 = vunpack.c.l.b16 %v1182
    %v1187 = vunpack.c.h.b16 %v1182
    %v1188 = vunpack.c.l.b16 %v1183
    %v1189 = vunpack.c.h.b16 %v1183
    %v1190 = vpack.c.b16 %v1186, %v1186
    %v1191 = vpack.c.b16 %v1187, %v1187
    %v1192 = vpack.c.b16 %v1188, %v1188
    %v1193 = vpack.c.b16 %v1189, %v1189
    %s1198 = scalar_lea.vmem %s4, 48
    %1199 = vst.msk [vmem:[%s1198] sm:$0xf] %vm1099, %v1190
    %1200 = vst.msk [vmem:[%s1198 + $0x4] sm:$0xf] %vm1099, %v1191
    %1201 = vst.msk [vmem:[%s1198 + $0x8] sm:$0xf] %vm1099, %v1192
    %1202 = vst.msk [vmem:[%s1198 + $0xc] sm:$0xf] %vm1099, %v1193
    // Predicated region
    $region22: #{generator_forward.6} parent=1 // pred_check
      _
    $region23: #{generator_forward.6} parent=1 // pred_check_branch
      %1204 = sbr.rel (0) target = $region25
    $region24: #{generator_forward.6} parent=1 // pred_region
      _
    $region25: #{generator_forward.6} parent=1 // pred_fallthru
      _
    // Predicated region
    $region26: #{generator_forward.6} parent=1 // pred_check
      _
    $region27: #{generator_forward.6} parent=1 // pred_check_branch
      %1206 = sbr.rel (0) target = $region29
    $region28: #{generator_forward.6} parent=1 // pred_region
      _
    $region29: #{generator_forward.6} parent=1 // pred_fallthru
      _
    %1207 = vsyncpa [#allocation3], 1

// kernel: generator_forward.7
$region0: #{generator_forward.7}
  #allocation0 [shape = 'u32[]', space=smem, size = 0x4, offset = 0x4, fixed_abs, tag = 'smem constant byte address 0x4 - core index']
  #allocation1 [shape = 'u32[144,128]{1,0:T(1,128)}', space=vmem, size = 0x12000, scoped, tag = 'internal scratch']
  %s0 = inlined_call_operand.vmem [shape: bf16[4,128,128], index: 0, kind: input, shape index: {}]
  %s1 = inlined_call_operand.hbm [shape: bf16[4,16,128], index: 1, kind: input, shape index: {}]
  %s2 = inlined_call_operand.vmem [shape: f32[16,1], index: 2, kind: input, shape index: {}]
  %s3 = inlined_call_operand.vmem [shape: f32[16,1], index: 3, kind: input, shape index: {}]
  %s4 = inlined_call_operand.vmem [shape: bf16[4,16,128], index: 4, kind: output, shape index: {}]
  %s5 = sld [smem:[#allocation0]]
  $region30: #{generator_forward.7} parent=0
    _
  %s7 = ssub.s32 1, %s5
  %s8 = scalar_select 0, %s7, %s5
  $region1: #{generator_forward.7} parent=0
    #allocation2 [shape = 'u8[16384]{0}', space=vmem, size = 0x4000, scoped, tag = 'input window, operand 1, single buffered']
    #allocation3 [shape = 's32[1]{0}', space=sflag, size = 0x4, scoped, tag = 'scoped memory for generator_forward.7']
    %9 = vsyncpa [#allocation3], 0
    // Predicated region
    $region2: #{generator_forward.7} parent=1 // pred_check
      _
    $region3: #{generator_forward.7} parent=1 // pred_check_branch
      %11 = sbr.rel (0) target = $region5
    $region4: #{generator_forward.7} parent=1 // pred_region
      _
    $region5: #{generator_forward.7} parent=1 // pred_fallthru
      _
    // Predicated region
    $region6: #{generator_forward.7} parent=1 // pred_check
      _
    $region7: #{generator_forward.7} parent=1 // pred_check_branch
      %13 = sbr.rel (0) target = $region9
    $region8: #{generator_forward.7} parent=1 // pred_region
      %s15 = ssub.s32 512, 512
      %16 = vsyncadd [#allocation3], %s15
      %s17 = sshll.u32 [#allocation2], 4
      %s18 = int_to_ptr.vmem [resolvable:$true] %s17
      %23 = dma.hbm_to_vmem [thread:$0]  %s1, 512, %s18, [#allocation3], 64, 64, 4
    $region9: #{generator_forward.7} parent=1 // pred_fallthru
      _
    // Predicated region
    $region10: #{generator_forward.7} parent=1 // pred_check
      _
    $region11: #{generator_forward.7} parent=1 // pred_check_branch
      %25 = sbr.rel (0) target = $region13
    $region12: #{generator_forward.7} parent=1 // pred_region
      _
    $region13: #{generator_forward.7} parent=1 // pred_fallthru
      _
    // Predicated region
    $region14: #{generator_forward.7} parent=1 // pred_check
      _
    $region15: #{generator_forward.7} parent=1 // pred_check_branch
      %27 = sbr.rel (0) target = $region17
    $region16: #{generator_forward.7} parent=1 // pred_region
      _
    $region17: #{generator_forward.7} parent=1 // pred_fallthru
      _
    // Predicated region
    $region18: #{generator_forward.7} parent=1 // pred_check
      _
    $region19: #{generator_forward.7} parent=1 // pred_check_branch
      %29 = sbr.rel (0) target = $region21
    $region20: #{generator_forward.7} parent=1 // pred_region
      %30 = dma.done [#allocation3], 512
    $region21: #{generator_forward.7} parent=1 // pred_fallthru
      _
    %v32 = vld [vmem:[#allocation2] sm:$0xf]
    %v33 = vld [vmem:[#allocation2 + $0x4] sm:$0xf]
    %v34 = vld [vmem:[%s0] sm:$0xf]
    %v35 = vld [vmem:[%s0 + $0x4] sm:$0xf]
    %v36 = vld [vmem:[%s0 + $0x8] sm:$0xf]
    %v37 = vld [vmem:[%s0 + $0xc] sm:$0xf]
    %v38 = vld [vmem:[%s0 + $0x10] sm:$0xf]
    %v39 = vld [vmem:[%s0 + $0x14] sm:$0xf]
    %v40 = vld [vmem:[%s0 + $0x18] sm:$0xf]
    %v41 = vld [vmem:[%s0 + $0x1c] sm:$0xf]
    %v42 = vld [vmem:[%s0 + $0x20] sm:$0xf]
    %v43 = vld [vmem:[%s0 + $0x24] sm:$0xf]
    %v44 = vld [vmem:[%s0 + $0x28] sm:$0xf]
    %v45 = vld [vmem:[%s0 + $0x2c] sm:$0xf]
    %v46 = vld [vmem:[%s0 + $0x30] sm:$0xf]
    %v47 = vld [vmem:[%s0 + $0x34] sm:$0xf]
    %v48 = vld [vmem:[%s0 + $0x38] sm:$0xf]
    %v49 = vld [vmem:[%s0 + $0x3c] sm:$0xf]
    %v52 = vunpack.c.l.b16 %v32
    %v53 = vunpack.c.l.b16 %v33
    %v54 = vpack.c.b16 %v53, %v52
    %v72 = vunpack.c.l.b16 %v34
    %v73 = vunpack.c.l.b16 %v35
    %v74 = vunpack.c.l.b16 %v36
    %v75 = vunpack.c.l.b16 %v37
    %v76 = vunpack.c.l.b16 %v38
    %v77 = vunpack.c.l.b16 %v39
    %v78 = vunpack.c.l.b16 %v40
    %v79 = vunpack.c.l.b16 %v41
    %v80 = vunpack.c.l.b16 %v42
    %v81 = vunpack.c.l.b16 %v43
    %v82 = vunpack.c.l.b16 %v44
    %v83 = vunpack.c.l.b16 %v45
    %v84 = vunpack.c.l.b16 %v46
    %v85 = vunpack.c.l.b16 %v47
    %v86 = vunpack.c.l.b16 %v48
    %v87 = vunpack.c.l.b16 %v49
    %v88 = vpack.c.b16 %v73, %v72
    %v89 = vpack.c.b16 %v75, %v74
    %v90 = vpack.c.b16 %v77, %v76
    %v91 = vpack.c.b16 %v79, %v78
    %v92 = vpack.c.b16 %v81, %v80
    %v93 = vpack.c.b16 %v83, %v82
    %v94 = vpack.c.b16 %v85, %v84
    %v95 = vpack.c.b16 %v87, %v86
    %104 = vmatprep.subr.bf16.mxu0 0
    %105 = vmatpush1.bf16.msra.mxu0 %v88
    %106 = vmatprep.subr.bf16.mxu0 0
    %107 = vmatpush1.bf16.msra.mxu0 %v89
    %108 = vmatprep.subr.bf16.mxu0 0
    %109 = vmatpush1.bf16.msra.mxu0 %v90
    %110 = vmatprep.subr.bf16.mxu0 0
    %111 = vmatpush1.bf16.msra.mxu0 %v91
    %112 = vmatprep.subr.bf16.mxu0 0
    %113 = vmatpush1.bf16.msra.mxu0 %v92
    %114 = vmatprep.subr.bf16.mxu0 0
    %115 = vmatpush1.bf16.msra.mxu0 %v93
    %116 = vmatprep.subr.bf16.mxu0 0
    %117 = vmatpush1.bf16.msra.mxu0 %v94
    %118 = vmatprep.subr.bf16.mxu0 0
    %119 = vmatpush1.bf16.msra.mxu0 %v95
    %120 = vmatprep.subr.bf16.mxu0 0
    %121 = vmatpush1.bf16.msra.mxu0 0
    %122 = vmatprep.subr.bf16.mxu0 0
    %123 = vmatpush1.bf16.msra.mxu0 0
    %124 = vmatprep.subr.bf16.mxu0 0
    %125 = vmatpush1.bf16.msra.mxu0 0
    %126 = vmatprep.subr.bf16.mxu0 0
    %127 = vmatpush1.bf16.msra.mxu0 0
    %128 = vmatprep.subr.bf16.mxu0 0
    %129 = vmatpush1.bf16.msra.mxu0 0
    %130 = vmatprep.subr.bf16.mxu0 0
    %131 = vmatpush1.bf16.msra.mxu0 0
    %132 = vmatprep.subr.bf16.mxu0 0
    %133 = vmatpush1.bf16.msra.mxu0 0
    %134 = vmatprep.subr.bf16.mxu0 0
    %135 = vmatpush1.bf16.msra.mxu0 0
    %136 = vmatprep.mubr.bf16.mxu0 0
    %137 = vmatmul.mubr.bf16.gmra.mrb[0].mxu0 %v54
    %v138 = vpop.f32.mrb[0].mxu0
    %v139 = vadd.f32 0.0, %v138
    %v140 = vpop.f32.mrb[0].mxu0
    %v141 = vpop.f32.mrb[0].mxu0
    %v142 = vadd.f32 0.0, %v141
    %v143 = vpop.f32.mrb[0].mxu0
    %144 = vdwg.mxu0
    %145 = vadd.xlane.f32.xlu0 %v139
    %v146 = vpop.xlane.xlu0 %145
    %147 = vadd.xlane.f32.xlu0 %v142
    %v148 = vpop.xlane.xlu0 %147
    %s149 = scalar_lea.vmem [#allocation2], 8
    %v150 = vld [vmem:[%s149] sm:$0xf]
    %v151 = vld [vmem:[%s149 + $0x4] sm:$0xf]
    %s152 = scalar_lea.vmem %s0, 64
    %v153 = vld [vmem:[%s152] sm:$0xf]
    %v154 = vld [vmem:[%s152 + $0x4] sm:$0xf]
    %v155 = vld [vmem:[%s152 + $0x8] sm:$0xf]
    %v156 = vld [vmem:[%s152 + $0xc] sm:$0xf]
    %v157 = vld [vmem:[%s152 + $0x10] sm:$0xf]
    %v158 = vld [vmem:[%s152 + $0x14] sm:$0xf]
    %v159 = vld [vmem:[%s152 + $0x18] sm:$0xf]
    %v160 = vld [vmem:[%s152 + $0x1c] sm:$0xf]
    %v161 = vld [vmem:[%s152 + $0x20] sm:$0xf]
    %v162 = vld [vmem:[%s152 + $0x24] sm:$0xf]
    %v163 = vld [vmem:[%s152 + $0x28] sm:$0xf]
    %v164 = vld [vmem:[%s152 + $0x2c] sm:$0xf]
    %v165 = vld [vmem:[%s152 + $0x30] sm:$0xf]
    %v166 = vld [vmem:[%s152 + $0x34] sm:$0xf]
    %v167 = vld [vmem:[%s152 + $0x38] sm:$0xf]
    %v168 = vld [vmem:[%s152 + $0x3c] sm:$0xf]
    %v171 = vunpack.c.l.b16 %v150
    %v172 = vunpack.c.l.b16 %v151
    %v173 = vpack.c.b16 %v172, %v171
    %v191 = vunpack.c.l.b16 %v153
    %v192 = vunpack.c.l.b16 %v154
    %v193 = vunpack.c.l.b16 %v155
    %v194 = vunpack.c.l.b16 %v156
    %v195 = vunpack.c.l.b16 %v157
    %v196 = vunpack.c.l.b16 %v158
    %v197 = vunpack.c.l.b16 %v159
    %v198 = vunpack.c.l.b16 %v160
    %v199 = vunpack.c.l.b16 %v161
    %v200 = vunpack.c.l.b16 %v162
    %v201 = vunpack.c.l.b16 %v163
    %v202 = vunpack.c.l.b16 %v164
    %v203 = vunpack.c.l.b16 %v165
    %v204 = vunpack.c.l.b16 %v166
    %v205 = vunpack.c.l.b16 %v167
    %v206 = vunpack.c.l.b16 %v168
    %v207 = vpack.c.b16 %v192, %v191
    %v208 = vpack.c.b16 %v194, %v193
    %v209 = vpack.c.b16 %v196, %v195
    %v210 = vpack.c.b16 %v198, %v197
    %v211 = vpack.c.b16 %v200, %v199
    %v212 = vpack.c.b16 %v202, %v201
    %v213 = vpack.c.b16 %v204, %v203
    %v214 = vpack.c.b16 %v206, %v205
    %223 = vmatprep.subr.bf16.mxu0 0
    %224 = vmatpush1.bf16.msra.mxu0 %v207
    %225 = vmatprep.subr.bf16.mxu0 0
    %226 = vmatpush1.bf16.msra.mxu0 %v208
    %227 = vmatprep.subr.bf16.mxu0 0
    %228 = vmatpush1.bf16.msra.mxu0 %v209
    %229 = vmatprep.subr.bf16.mxu0 0
    %230 = vmatpush1.bf16.msra.mxu0 %v210
    %231 = vmatprep.subr.bf16.mxu0 0
    %232 = vmatpush1.bf16.msra.mxu0 %v211
    %233 = vmatprep.subr.bf16.mxu0 0
    %234 = vmatpush1.bf16.msra.mxu0 %v212
    %235 = vmatprep.subr.bf16.mxu0 0
    %236 = vmatpush1.bf16.msra.mxu0 %v213
    %237 = vmatprep.subr.bf16.mxu0 0
    %238 = vmatpush1.bf16.msra.mxu0 %v214
    %239 = vmatprep.subr.bf16.mxu0 0
    %240 = vmatpush1.bf16.msra.mxu0 0
    %241 = vmatprep.subr.bf16.mxu0 0
    %242 = vmatpush1.bf16.msra.mxu0 0
    %243 = vmatprep.subr.bf16.mxu0 0
    %244 = vmatpush1.bf16.msra.mxu0 0
    %245 = vmatprep.subr.bf16.mxu0 0
    %246 = vmatpush1.bf16.msra.mxu0 0
    %247 = vmatprep.subr.bf16.mxu0 0
    %248 = vmatpush1.bf16.msra.mxu0 0
    %249 = vmatprep.subr.bf16.mxu0 0
    %250 = vmatpush1.bf16.msra.mxu0 0
    %251 = vmatprep.subr.bf16.mxu0 0
    %252 = vmatpush1.bf16.msra.mxu0 0
    %253 = vmatprep.subr.bf16.mxu0 0
    %254 = vmatpush1.bf16.msra.mxu0 0
    %255 = vmatprep.mubr.bf16.mxu0 0
    %256 = vmatmul.mubr.bf16.gmra.mrb[0].mxu0 %v173
    %v257 = vpop.f32.mrb[0].mxu0
    %v258 = vadd.f32 0.0, %v257
    %v259 = vpop.f32.mrb[0].mxu0
    %v260 = vpop.f32.mrb[0].mxu0
    %v261 = vadd.f32 0.0, %v260
    %v262 = vpop.f32.mrb[0].mxu0
    %263 = vdwg.mxu0
    %264 = vadd.xlane.f32.xlu0 %v258
    %v265 = vpop.xlane.xlu0 %264
    %266 = vadd.xlane.f32.xlu0 %v261
    %v267 = vpop.xlane.xlu0 %266
    %v268 = vadd.f32 %v146, %v265
    %v269 = vadd.f32 %v148, %v267
    %s270 = scalar_lea.vmem [#allocation2], 16
    %v271 = vld [vmem:[%s270] sm:$0xf]
    %v272 = vld [vmem:[%s270 + $0x4] sm:$0xf]
    %s273 = scalar_lea.vmem %s0, 128
    %v274 = vld [vmem:[%s273] sm:$0xf]
    %v275 = vld [vmem:[%s273 + $0x4] sm:$0xf]
    %v276 = vld [vmem:[%s273 + $0x8] sm:$0xf]
    %v277 = vld [vmem:[%s273 + $0xc] sm:$0xf]
    %v278 = vld [vmem:[%s273 + $0x10] sm:$0xf]
    %v279 = vld [vmem:[%s273 + $0x14] sm:$0xf]
    %v280 = vld [vmem:[%s273 + $0x18] sm:$0xf]
    %v281 = vld [vmem:[%s273 + $0x1c] sm:$0xf]
    %v282 = vld [vmem:[%s273 + $0x20] sm:$0xf]
    %v283 = vld [vmem:[%s273 + $0x24] sm:$0xf]
    %v284 = vld [vmem:[%s273 + $0x28] sm:$0xf]
    %v285 = vld [vmem:[%s273 + $0x2c] sm:$0xf]
    %v286 = vld [vmem:[%s273 + $0x30] sm:$0xf]
    %v287 = vld [vmem:[%s273 + $0x34] sm:$0xf]
    %v288 = vld [vmem:[%s273 + $0x38] sm:$0xf]
    %v289 = vld [vmem:[%s273 + $0x3c] sm:$0xf]
    %v292 = vunpack.c.l.b16 %v271
    %v293 = vunpack.c.l.b16 %v272
    %v294 = vpack.c.b16 %v293, %v292
    %v312 = vunpack.c.l.b16 %v274
    %v313 = vunpack.c.l.b16 %v275
    %v314 = vunpack.c.l.b16 %v276
    %v315 = vunpack.c.l.b16 %v277
    %v316 = vunpack.c.l.b16 %v278
    %v317 = vunpack.c.l.b16 %v279
    %v318 = vunpack.c.l.b16 %v280
    %v319 = vunpack.c.l.b16 %v281
    %v320 = vunpack.c.l.b16 %v282
    %v321 = vunpack.c.l.b16 %v283
    %v322 = vunpack.c.l.b16 %v284
    %v323 = vunpack.c.l.b16 %v285
    %v324 = vunpack.c.l.b16 %v286
    %v325 = vunpack.c.l.b16 %v287
    %v326 = vunpack.c.l.b16 %v288
    %v327 = vunpack.c.l.b16 %v289
    %v328 = vpack.c.b16 %v313, %v312
    %v329 = vpack.c.b16 %v315, %v314
    %v330 = vpack.c.b16 %v317, %v316
    %v331 = vpack.c.b16 %v319, %v318
    %v332 = vpack.c.b16 %v321, %v320
    %v333 = vpack.c.b16 %v323, %v322
    %v334 = vpack.c.b16 %v325, %v324
    %v335 = vpack.c.b16 %v327, %v326
    %344 = vmatprep.subr.bf16.mxu0 0
    %345 = vmatpush1.bf16.msra.mxu0 %v328
    %346 = vmatprep.subr.bf16.mxu0 0
    %347 = vmatpush1.bf16.msra.mxu0 %v329
    %348 = vmatprep.subr.bf16.mxu0 0
    %349 = vmatpush1.bf16.msra.mxu0 %v330
    %350 = vmatprep.subr.bf16.mxu0 0
    %351 = vmatpush1.bf16.msra.mxu0 %v331
    %352 = vmatprep.subr.bf16.mxu0 0
    %353 = vmatpush1.bf16.msra.mxu0 %v332
    %354 = vmatprep.subr.bf16.mxu0 0
    %355 = vmatpush1.bf16.msra.mxu0 %v333
    %356 = vmatprep.subr.bf16.mxu0 0
    %357 = vmatpush1.bf16.msra.mxu0 %v334
    %358 = vmatprep.subr.bf16.mxu0 0
    %359 = vmatpush1.bf16.msra.mxu0 %v335
    %360 = vmatprep.subr.bf16.mxu0 0
    %361 = vmatpush1.bf16.msra.mxu0 0
    %362 = vmatprep.subr.bf16.mxu0 0
    %363 = vmatpush1.bf16.msra.mxu0 0
    %364 = vmatprep.subr.bf16.mxu0 0
    %365 = vmatpush1.bf16.msra.mxu0 0
    %366 = vmatprep.subr.bf16.mxu0 0
    %367 = vmatpush1.bf16.msra.mxu0 0
    %368 = vmatprep.subr.bf16.mxu0 0
    %369 = vmatpush1.bf16.msra.mxu0 0
    %370 = vmatprep.subr.bf16.mxu0 0
    %371 = vmatpush1.bf16.msra.mxu0 0
    %372 = vmatprep.subr.bf16.mxu0 0
    %373 = vmatpush1.bf16.msra.mxu0 0
    %374 = vmatprep.subr.bf16.mxu0 0
    %375 = vmatpush1.bf16.msra.mxu0 0
    %376 = vmatprep.mubr.bf16.mxu0 0
    %377 = vmatmul.mubr.bf16.gmra.mrb[0].mxu0 %v294
    %v378 = vpop.f32.mrb[0].mxu0
    %v379 = vadd.f32 0.0, %v378
    %v380 = vpop.f32.mrb[0].mxu0
    %v381 = vpop.f32.mrb[0].mxu0
    %v382 = vadd.f32 0.0, %v381
    %v383 = vpop.f32.mrb[0].mxu0
    %384 = vdwg.mxu0
    %385 = vadd.xlane.f32.xlu0 %v379
    %v386 = vpop.xlane.xlu0 %385
    %387 = vadd.xlane.f32.xlu0 %v382
    %v388 = vpop.xlane.xlu0 %387
    %v389 = vadd.f32 %v268, %v386
    %v390 = vadd.f32 %v269, %v388
    %s391 = scalar_lea.vmem [#allocation2], 24
    %v392 = vld [vmem:[%s391] sm:$0xf]
    %v393 = vld [vmem:[%s391 + $0x4] sm:$0xf]
    %s394 = scalar_lea.vmem %s0, 192
    %v395 = vld [vmem:[%s394] sm:$0xf]
    %v396 = vld [vmem:[%s394 + $0x4] sm:$0xf]
    %v397 = vld [vmem:[%s394 + $0x8] sm:$0xf]
    %v398 = vld [vmem:[%s394 + $0xc] sm:$0xf]
    %v399 = vld [vmem:[%s394 + $0x10] sm:$0xf]
    %v400 = vld [vmem:[%s394 + $0x14] sm:$0xf]
    %v401 = vld [vmem:[%s394 + $0x18] sm:$0xf]
    %v402 = vld [vmem:[%s394 + $0x1c] sm:$0xf]
    %v403 = vld [vmem:[%s394 + $0x20] sm:$0xf]
    %v404 = vld [vmem:[%s394 + $0x24] sm:$0xf]
    %v405 = vld [vmem:[%s394 + $0x28] sm:$0xf]
    %v406 = vld [vmem:[%s394 + $0x2c] sm:$0xf]
    %v407 = vld [vmem:[%s394 + $0x30] sm:$0xf]
    %v408 = vld [vmem:[%s394 + $0x34] sm:$0xf]
    %v409 = vld [vmem:[%s394 + $0x38] sm:$0xf]
    %v410 = vld [vmem:[%s394 + $0x3c] sm:$0xf]
    %v413 = vunpack.c.l.b16 %v392
    %v414 = vunpack.c.l.b16 %v393
    %v415 = vpack.c.b16 %v414, %v413
    %v433 = vunpack.c.l.b16 %v395
    %v434 = vunpack.c.l.b16 %v396
    %v435 = vunpack.c.l.b16 %v397
    %v436 = vunpack.c.l.b16 %v398
    %v437 = vunpack.c.l.b16 %v399
    %v438 = vunpack.c.l.b16 %v400
    %v439 = vunpack.c.l.b16 %v401
    %v440 = vunpack.c.l.b16 %v402
    %v441 = vunpack.c.l.b16 %v403
    %v442 = vunpack.c.l.b16 %v404
    %v443 = vunpack.c.l.b16 %v405
    %v444 = vunpack.c.l.b16 %v406
    %v445 = vunpack.c.l.b16 %v407
    %v446 = vunpack.c.l.b16 %v408
    %v447 = vunpack.c.l.b16 %v409
    %v448 = vunpack.c.l.b16 %v410
    %v449 = vpack.c.b16 %v434, %v433
    %v450 = vpack.c.b16 %v436, %v435
    %v451 = vpack.c.b16 %v438, %v437
    %v452 = vpack.c.b16 %v440, %v439
    %v453 = vpack.c.b16 %v442, %v441
    %v454 = vpack.c.b16 %v444, %v443
    %v455 = vpack.c.b16 %v446, %v445
    %v456 = vpack.c.b16 %v448, %v447
    %465 = vmatprep.subr.bf16.mxu0 0
    %466 = vmatpush1.bf16.msra.mxu0 %v449
    %467 = vmatprep.subr.bf16.mxu0 0
    %468 = vmatpush1.bf16.msra.mxu0 %v450
    %469 = vmatprep.subr.bf16.mxu0 0
    %470 = vmatpush1.bf16.msra.mxu0 %v451
    %471 = vmatprep.subr.bf16.mxu0 0
    %472 = vmatpush1.bf16.msra.mxu0 %v452
    %473 = vmatprep.subr.bf16.mxu0 0
    %474 = vmatpush1.bf16.msra.mxu0 %v453
    %475 = vmatprep.subr.bf16.mxu0 0
    %476 = vmatpush1.bf16.msra.mxu0 %v454
    %477 = vmatprep.subr.bf16.mxu0 0
    %478 = vmatpush1.bf16.msra.mxu0 %v455
    %479 = vmatprep.subr.bf16.mxu0 0
    %480 = vmatpush1.bf16.msra.mxu0 %v456
    %481 = vmatprep.subr.bf16.mxu0 0
    %482 = vmatpush1.bf16.msra.mxu0 0
    %483 = vmatprep.subr.bf16.mxu0 0
    %484 = vmatpush1.bf16.msra.mxu0 0
    %485 = vmatprep.subr.bf16.mxu0 0
    %486 = vmatpush1.bf16.msra.mxu0 0
    %487 = vmatprep.subr.bf16.mxu0 0
    %488 = vmatpush1.bf16.msra.mxu0 0
    %489 = vmatprep.subr.bf16.mxu0 0
    %490 = vmatpush1.bf16.msra.mxu0 0
    %491 = vmatprep.subr.bf16.mxu0 0
    %492 = vmatpush1.bf16.msra.mxu0 0
    %493 = vmatprep.subr.bf16.mxu0 0
    %494 = vmatpush1.bf16.msra.mxu0 0
    %495 = vmatprep.subr.bf16.mxu0 0
    %496 = vmatpush1.bf16.msra.mxu0 0
    %497 = vmatprep.mubr.bf16.mxu0 0
    %498 = vmatmul.mubr.bf16.gmra.mrb[0].mxu0 %v415
    %v499 = vpop.f32.mrb[0].mxu0
    %v500 = vadd.f32 0.0, %v499
    %v501 = vpop.f32.mrb[0].mxu0
    %v502 = vpop.f32.mrb[0].mxu0
    %v503 = vadd.f32 0.0, %v502
    %v504 = vpop.f32.mrb[0].mxu0
    %505 = vdwg.mxu0
    %506 = vadd.xlane.f32.xlu0 %v500
    %v507 = vpop.xlane.xlu0 %506
    %508 = vadd.xlane.f32.xlu0 %v503
    %v509 = vpop.xlane.xlu0 %508
    %v510 = vadd.f32 %v389, %v507
    %v511 = vadd.f32 %v390, %v509
    %v512 = vmul.f32 %v510, 0.001953125
    %v513 = vmul.f32 %v511, 0.001953125
    %v514 = vsub.f32 %v139, %v512
    %v515 = vsub.f32 %v142, %v513
    %v516 = vmul.f32 %v514, %v514
    %v517 = vmul.f32 %v515, %v515
    %518 = vadd.xlane.f32.xlu0 %v516
    %v519 = vpop.xlane.xlu0 %518
    %520 = vadd.xlane.f32.xlu0 %v517
    %v521 = vpop.xlane.xlu0 %520
    %v522 = vsub.f32 %v258, %v512
    %v523 = vsub.f32 %v261, %v513
    %v524 = vmul.f32 %v522, %v522
    %v525 = vmul.f32 %v523, %v523
    %526 = vadd.xlane.f32.xlu0 %v524
    %v527 = vpop.xlane.xlu0 %526
    %528 = vadd.xlane.f32.xlu0 %v525
    %v529 = vpop.xlane.xlu0 %528
    %v530 = vadd.f32 %v519, %v527
    %v531 = vadd.f32 %v521, %v529
    %v532 = vsub.f32 %v379, %v512
    %v533 = vsub.f32 %v382, %v513
    %v534 = vmul.f32 %v532, %v532
    %v535 = vmul.f32 %v533, %v533
    %536 = vadd.xlane.f32.xlu0 %v534
    %v537 = vpop.xlane.xlu0 %536
    %538 = vadd.xlane.f32.xlu0 %v535
    %v539 = vpop.xlane.xlu0 %538
    %v540 = vadd.f32 %v530, %v537
    %v541 = vadd.f32 %v531, %v539
    %v542 = vsub.f32 %v500, %v512
    %v543 = vsub.f32 %v503, %v513
    %v544 = vmul.f32 %v542, %v542
    %v545 = vmul.f32 %v543, %v543
    %546 = vadd.xlane.f32.xlu0 %v544
    %v547 = vpop.xlane.xlu0 %546
    %548 = vadd.xlane.f32.xlu0 %v545
    %v549 = vpop.xlane.xlu0 %548
    %v550 = vadd.f32 %v540, %v547
    %v551 = vadd.f32 %v541, %v549
    %v552 = vmul.f32 %v550, 0.001953125
    %v553 = vmul.f32 %v551, 0.001953125
    %v554 = vadd.f32 %v552, 1e-05
    %v555 = vadd.f32 %v553, 1e-05
    %v556 = vrsqrt.pop %v554
    %v557 = vrsqrt.pop %v555
    %v558 = vld [vmem:[%s2] sm:$0xff]
    %v559 = vld [vmem:[%s2 + $0x8] sm:$0xff]
    %v560 = vmul.f32 %v558, %v556
    %v561 = vmul.f32 %v559, %v557
    %v562 = vld [vmem:[%s3] sm:$0xff]
    %v563 = vld [vmem:[%s3 + $0x8] sm:$0xff]
    %v564 = vmul.f32 %v512, %v560
    %v565 = vmul.f32 %v513, %v561
    %v566 = vsub.f32 %v562, %v564
    %v567 = vsub.f32 %v563, %v565
    %569 = vset.pattern.permute.xlu0 0
    %570 = vperm.xlu0 %569, %v560
    %v571 = vpop.permute.xlu0 %570
    %574 = vset.pattern.permute.xlu0 0
    %575 = vperm.xlu0 %574, %v561
    %v576 = vpop.permute.xlu0 %575
    %v578 = vmul.f32 %v139, %v571
    %v579 = vmul.f32 %v142, %v576
    %581 = vset.pattern.permute.xlu0 0
    %582 = vperm.xlu0 %581, %v566
    %v583 = vpop.permute.xlu0 %582
    %586 = vset.pattern.permute.xlu0 0
    %587 = vperm.xlu0 %586, %v567
    %v588 = vpop.permute.xlu0 %587
    %v590 = vadd.f32 %v578, %v583
    %v591 = vadd.f32 %v579, %v588
    %v592 = vmax.f32 %v590, 0.0
    %v593 = vmax.f32 %v591, 0.0
    %v594 = vpack.c.bf16 %v593, %v592
    %v596 = vunpack.c.l.b16 %v594
    %v597 = vunpack.c.h.b16 %v594
    %v598 = vpack.c.b16 %v596, %v596
    %v599 = vpack.c.b16 %v597, %v597
    %602 = vst [vmem:[%s4] sm:$0xf] %v598
    %603 = vst [vmem:[%s4 + $0x4] sm:$0xf] %v599
    %v604 = vmul.f32 %v258, %v571
    %v605 = vmul.f32 %v261, %v576
    %v606 = vadd.f32 %v604, %v583
    %v607 = vadd.f32 %v605, %v588
    %v608 = vmax.f32 %v606, 0.0
    %v609 = vmax.f32 %v607, 0.0
    %v610 = vpack.c.bf16 %v609, %v608
    %v612 = vunpack.c.l.b16 %v610
    %v613 = vunpack.c.h.b16 %v610
    %v614 = vpack.c.b16 %v612, %v612
    %v615 = vpack.c.b16 %v613, %v613
    %s618 = scalar_lea.vmem %s4, 8
    %619 = vst [vmem:[%s618] sm:$0xf] %v614
    %620 = vst [vmem:[%s618 + $0x4] sm:$0xf] %v615
    %v621 = vmul.f32 %v379, %v571
    %v622 = vmul.f32 %v382, %v576
    %v623 = vadd.f32 %v621, %v583
    %v624 = vadd.f32 %v622, %v588
    %v625 = vmax.f32 %v623, 0.0
    %v626 = vmax.f32 %v624, 0.0
    %v627 = vpack.c.bf16 %v626, %v625
    %v629 = vunpack.c.l.b16 %v627
    %v630 = vunpack.c.h.b16 %v627
    %v631 = vpack.c.b16 %v629, %v629
    %v632 = vpack.c.b16 %v630, %v630
    %s635 = scalar_lea.vmem %s4, 16
    %636 = vst [vmem:[%s635] sm:$0xf] %v631
    %637 = vst [vmem:[%s635 + $0x4] sm:$0xf] %v632
    %v638 = vmul.f32 %v500, %v571
    %v639 = vmul.f32 %v503, %v576
    %v640 = vadd.f32 %v638, %v583
    %v641 = vadd.f32 %v639, %v588
    %v642 = vmax.f32 %v640, 0.0
    %v643 = vmax.f32 %v641, 0.0
    %v644 = vpack.c.bf16 %v643, %v642
    %v646 = vunpack.c.l.b16 %v644
    %v647 = vunpack.c.h.b16 %v644
    %v648 = vpack.c.b16 %v646, %v646
    %v649 = vpack.c.b16 %v647, %v647
    %s652 = scalar_lea.vmem %s4, 24
    %653 = vst [vmem:[%s652] sm:$0xf] %v648
    %654 = vst [vmem:[%s652 + $0x4] sm:$0xf] %v649
    // Predicated region
    $region22: #{generator_forward.7} parent=1 // pred_check
      _
    $region23: #{generator_forward.7} parent=1 // pred_check_branch
      %656 = sbr.rel (0) target = $region25
    $region24: #{generator_forward.7} parent=1 // pred_region
      _
    $region25: #{generator_forward.7} parent=1 // pred_fallthru
      _
    // Predicated region
    $region26: #{generator_forward.7} parent=1 // pred_check
      _
    $region27: #{generator_forward.7} parent=1 // pred_check_branch
      %658 = sbr.rel (0) target = $region29
    $region28: #{generator_forward.7} parent=1 // pred_region
      _
    $region29: #{generator_forward.7} parent=1 // pred_fallthru
      _
    %659 = vsyncpa [#allocation3], 1

// kernel: generator_forward.8
$region0: #{generator_forward.8}
  #allocation0 [shape = 'u32[]', space=smem, size = 0x4, offset = 0x4, fixed_abs, tag = 'smem constant byte address 0x4 - core index']
  #allocation1 [shape = 'u32[144,128]{1,0:T(1,128)}', space=vmem, size = 0x12000, scoped, tag = 'internal scratch']
  %s0 = inlined_call_operand.vmem [shape: bf16[4,64,512], index: 0, kind: input, shape index: {}]
  %s1 = inlined_call_operand.vmem [shape: bf16[4,8,64], index: 1, kind: input, shape index: {}]
  %s2 = inlined_call_operand.vmem [shape: f32[8,1], index: 2, kind: input, shape index: {}]
  %s3 = inlined_call_operand.vmem [shape: f32[8,1], index: 3, kind: input, shape index: {}]
  %s4 = inlined_call_operand.vmem [shape: bf16[4,8,512], index: 4, kind: output, shape index: {}]
  %s5 = sld [smem:[#allocation0]]
  $region26: #{generator_forward.8} parent=0
    _
  %s7 = ssub.s32 1, %s5
  %s8 = scalar_select 0, %s7, %s5
  // Predicated region
  $region2: #{generator_forward.8} parent=0 // pred_check
    _
  $region3: #{generator_forward.8} parent=0 // pred_check_branch
    %10 = sbr.rel (0) target = $region5
  $region4: #{generator_forward.8} parent=0 // pred_region
    _
  $region5: #{generator_forward.8} parent=0 // pred_fallthru
    _
  // Predicated region
  $region6: #{generator_forward.8} parent=0 // pred_check
    _
  $region7: #{generator_forward.8} parent=0 // pred_check_branch
    %12 = sbr.rel (0) target = $region9
  $region8: #{generator_forward.8} parent=0 // pred_region
    _
  $region9: #{generator_forward.8} parent=0 // pred_fallthru
    _
  // Predicated region
  $region10: #{generator_forward.8} parent=0 // pred_check
    _
  $region11: #{generator_forward.8} parent=0 // pred_check_branch
    %14 = sbr.rel (0) target = $region13
  $region12: #{generator_forward.8} parent=0 // pred_region
    _
  $region13: #{generator_forward.8} parent=0 // pred_fallthru
    _
  // Predicated region
  $region14: #{generator_forward.8} parent=0 // pred_check
    _
  $region15: #{generator_forward.8} parent=0 // pred_check_branch
    %16 = sbr.rel (0) target = $region17
  $region16: #{generator_forward.8} parent=0 // pred_region
    _
  $region17: #{generator_forward.8} parent=0 // pred_fallthru
    _
  %v18 = vld [vmem:[%s1] sm:$0xf]
  %v19 = vld [vmem:[%s0] sm:$0xff]
  %v20 = vld [vmem:[%s0 + $0x8] sm:$0xff]
  %v21 = vld [vmem:[%s0 + $0x10] sm:$0xff]
  %v22 = vld [vmem:[%s0 + $0x18] sm:$0xff]
  %v23 = vld [vmem:[%s0 + $0x20] sm:$0xff]
  %v24 = vld [vmem:[%s0 + $0x28] sm:$0xff]
  %v25 = vld [vmem:[%s0 + $0x30] sm:$0xff]
  %v26 = vld [vmem:[%s0 + $0x38] sm:$0xff]
  %v27 = vld [vmem:[%s0 + $0x40] sm:$0xff]
  %v28 = vld [vmem:[%s0 + $0x48] sm:$0xff]
  %v29 = vld [vmem:[%s0 + $0x50] sm:$0xff]
  %v30 = vld [vmem:[%s0 + $0x58] sm:$0xff]
  %v31 = vld [vmem:[%s0 + $0x60] sm:$0xff]
  %v32 = vld [vmem:[%s0 + $0x68] sm:$0xff]
  %v33 = vld [vmem:[%s0 + $0x70] sm:$0xff]
  %v34 = vld [vmem:[%s0 + $0x78] sm:$0xff]
  %v51 = vunpack.c.l.b16 %v19
  %v52 = vunpack.c.h.b16 %v19
  %v53 = vunpack.c.l.b16 %v20
  %v54 = vunpack.c.h.b16 %v20
  %v55 = vunpack.c.l.b16 %v21
  %v56 = vunpack.c.h.b16 %v21
  %v57 = vunpack.c.l.b16 %v22
  %v58 = vunpack.c.h.b16 %v22
  %v59 = vunpack.c.l.b16 %v23
  %v60 = vunpack.c.h.b16 %v23
  %v61 = vunpack.c.l.b16 %v24
  %v62 = vunpack.c.h.b16 %v24
  %v63 = vunpack.c.l.b16 %v25
  %v64 = vunpack.c.h.b16 %v25
  %v65 = vunpack.c.l.b16 %v26
  %v66 = vunpack.c.h.b16 %v26
  %v67 = vunpack.c.l.b16 %v27
  %v68 = vunpack.c.h.b16 %v27
  %v69 = vunpack.c.l.b16 %v28
  %v70 = vunpack.c.h.b16 %v28
  %v71 = vunpack.c.l.b16 %v29
  %v72 = vunpack.c.h.b16 %v29
  %v73 = vunpack.c.l.b16 %v30
  %v74 = vunpack.c.h.b16 %v30
  %v75 = vunpack.c.l.b16 %v31
  %v76 = vunpack.c.h.b16 %v31
  %v77 = vunpack.c.l.b16 %v32
  %v78 = vunpack.c.h.b16 %v32
  %v79 = vunpack.c.l.b16 %v33
  %v80 = vunpack.c.h.b16 %v33
  %v81 = vunpack.c.l.b16 %v34
  %v82 = vunpack.c.h.b16 %v34
  %v83 = vpack.c.b16 %v55, %v51
  %v84 = vpack.c.b16 %v56, %v52
  %v85 = vpack.c.b16 %v57, %v53
  %v86 = vpack.c.b16 %v58, %v54
  %v87 = vpack.c.b16 %v63, %v59
  %v88 = vpack.c.b16 %v64, %v60
  %v89 = vpack.c.b16 %v65, %v61
  %v90 = vpack.c.b16 %v66, %v62
  %v91 = vpack.c.b16 %v71, %v67
  %v92 = vpack.c.b16 %v72, %v68
  %v93 = vpack.c.b16 %v73, %v69
  %v94 = vpack.c.b16 %v74, %v70
  %v95 = vpack.c.b16 %v79, %v75
  %v96 = vpack.c.b16 %v80, %v76
  %v97 = vpack.c.b16 %v81, %v77
  %v98 = vpack.c.b16 %v82, %v78
  %vm115 = vcmask 523264
  %v117 = vsel %vm115, %v18, 0
  %119 = vmatprep.subr.bf16.mxu0 %v84
  %120 = vmatpush1.bf16.msra.mxu0 %v83
  %121 = vmatprep.subr.bf16.mxu0 %v88
  %122 = vmatpush1.bf16.msra.mxu0 %v87
  %123 = vmatprep.subr.bf16.mxu0 %v92
  %124 = vmatpush1.bf16.msra.mxu0 %v91
  %125 = vmatprep.subr.bf16.mxu0 %v96
  %126 = vmatpush1.bf16.msra.mxu0 %v95
  %127 = vmatprep.subr.bf16.mxu0 0
  %128 = vmatpush1.bf16.msra.mxu0 0
  %129 = vmatprep.subr.bf16.mxu0 0
  %130 = vmatpush1.bf16.msra.mxu0 0
  %131 = vmatprep.subr.bf16.mxu0 0
  %132 = vmatpush1.bf16.msra.mxu0 0
  %133 = vmatprep.subr.bf16.mxu0 0
  %134 = vmatpush1.bf16.msra.mxu0 0
  %135 = vmatprep.subr.bf16.mxu0 0
  %136 = vmatpush1.bf16.msra.mxu0 0
  %137 = vmatprep.subr.bf16.mxu0 0
  %138 = vmatpush1.bf16.msra.mxu0 0
  %139 = vmatprep.subr.bf16.mxu0 0
  %140 = vmatpush1.bf16.msra.mxu0 0
  %141 = vmatprep.subr.bf16.mxu0 0
  %142 = vmatpush1.bf16.msra.mxu0 0
  %143 = vmatprep.subr.bf16.mxu0 0
  %144 = vmatpush1.bf16.msra.mxu0 0
  %145 = vmatprep.subr.bf16.mxu0 0
  %146 = vmatpush1.bf16.msra.mxu0 0
  %147 = vmatprep.subr.bf16.mxu0 0
  %148 = vmatpush1.bf16.msra.mxu0 0
  %149 = vmatprep.subr.bf16.mxu0 0
  %150 = vmatpush1.bf16.msra.mxu0 0
  %151 = vmatprep.mubr.bf16.mxu0 0
  %152 = vmatmul.mubr.bf16.gmra.mrb[0].mxu0 %v117
  %v153 = vpop.f32.mrb[0].mxu0
  %v154 = vadd.f32 0.0, %v153
  %v155 = vpop.f32.mrb[0].mxu0
  %v156 = vadd.f32 0.0, %v155
  %v157 = vpop.f32.mrb[0].mxu0
  %v158 = vpop.f32.mrb[0].mxu0
  %159 = vdwg.mxu0
  %160 = vmatprep.subr.bf16.mxu0 %v86
  %161 = vmatpush1.bf16.msra.mxu0 %v85
  %162 = vmatprep.subr.bf16.mxu0 %v90
  %163 = vmatpush1.bf16.msra.mxu0 %v89
  %164 = vmatprep.subr.bf16.mxu0 %v94
  %165 = vmatpush1.bf16.msra.mxu0 %v93
  %166 = vmatprep.subr.bf16.mxu0 %v98
  %167 = vmatpush1.bf16.msra.mxu0 %v97
  %168 = vmatprep.subr.bf16.mxu0 0
  %169 = vmatpush1.bf16.msra.mxu0 0
  %170 = vmatprep.subr.bf16.mxu0 0
  %171 = vmatpush1.bf16.msra.mxu0 0
  %172 = vmatprep.subr.bf16.mxu0 0
  %173 = vmatpush1.bf16.msra.mxu0 0
  %174 = vmatprep.subr.bf16.mxu0 0
  %175 = vmatpush1.bf16.msra.mxu0 0
  %176 = vmatprep.subr.bf16.mxu0 0
  %177 = vmatpush1.bf16.msra.mxu0 0
  %178 = vmatprep.subr.bf16.mxu0 0
  %179 = vmatpush1.bf16.msra.mxu0 0
  %180 = vmatprep.subr.bf16.mxu0 0
  %181 = vmatpush1.bf16.msra.mxu0 0
  %182 = vmatprep.subr.bf16.mxu0 0
  %183 = vmatpush1.bf16.msra.mxu0 0
  %184 = vmatprep.subr.bf16.mxu0 0
  %185 = vmatpush1.bf16.msra.mxu0 0
  %186 = vmatprep.subr.bf16.mxu0 0
  %187 = vmatpush1.bf16.msra.mxu0 0
  %188 = vmatprep.subr.bf16.mxu0 0
  %189 = vmatpush1.bf16.msra.mxu0 0
  %190 = vmatprep.subr.bf16.mxu0 0
  %191 = vmatpush1.bf16.msra.mxu0 0
  %192 = vmatprep.mubr.bf16.mxu0 0
  %193 = vmatmul.mubr.bf16.gmra.mrb[0].mxu0 %v117
  %v194 = vpop.f32.mrb[0].mxu0
  %v195 = vadd.f32 0.0, %v194
  %v196 = vpop.f32.mrb[0].mxu0
  %v197 = vadd.f32 0.0, %v196
  %v198 = vpop.f32.mrb[0].mxu0
  %v199 = vpop.f32.mrb[0].mxu0
  %200 = vdwg.mxu0
  %v201 = vadd.f32 %v154, %v156
  %v202 = vadd.f32 %v201, %v195
  %v203 = vadd.f32 %v202, %v197
  %204 = vadd.xlane.f32.xlu0 %v203
  %v205 = vpop.xlane.xlu0 %204
  %s206 = scalar_lea.vmem %s1, 4
  %v207 = vld [vmem:[%s206] sm:$0xf]
  %s208 = scalar_lea.vmem %s0, 128
  %v209 = vld [vmem:[%s208] sm:$0xff]
  %v210 = vld [vmem:[%s208 + $0x8] sm:$0xff]
  %v211 = vld [vmem:[%s208 + $0x10] sm:$0xff]
  %v212 = vld [vmem:[%s208 + $0x18] sm:$0xff]
  %v213 = vld [vmem:[%s208 + $0x20] sm:$0xff]
  %v214 = vld [vmem:[%s208 + $0x28] sm:$0xff]
  %v215 = vld [vmem:[%s208 + $0x30] sm:$0xff]
  %v216 = vld [vmem:[%s208 + $0x38] sm:$0xff]
  %v217 = vld [vmem:[%s208 + $0x40] sm:$0xff]
  %v218 = vld [vmem:[%s208 + $0x48] sm:$0xff]
  %v219 = vld [vmem:[%s208 + $0x50] sm:$0xff]
  %v220 = vld [vmem:[%s208 + $0x58] sm:$0xff]
  %v221 = vld [vmem:[%s208 + $0x60] sm:$0xff]
  %v222 = vld [vmem:[%s208 + $0x68] sm:$0xff]
  %v223 = vld [vmem:[%s208 + $0x70] sm:$0xff]
  %v224 = vld [vmem:[%s208 + $0x78] sm:$0xff]
  %v241 = vunpack.c.l.b16 %v209
  %v242 = vunpack.c.h.b16 %v209
  %v243 = vunpack.c.l.b16 %v210
  %v244 = vunpack.c.h.b16 %v210
  %v245 = vunpack.c.l.b16 %v211
  %v246 = vunpack.c.h.b16 %v211
  %v247 = vunpack.c.l.b16 %v212
  %v248 = vunpack.c.h.b16 %v212
  %v249 = vunpack.c.l.b16 %v213
  %v250 = vunpack.c.h.b16 %v213
  %v251 = vunpack.c.l.b16 %v214
  %v252 = vunpack.c.h.b16 %v214
  %v253 = vunpack.c.l.b16 %v215
  %v254 = vunpack.c.h.b16 %v215
  %v255 = vunpack.c.l.b16 %v216
  %v256 = vunpack.c.h.b16 %v216
  %v257 = vunpack.c.l.b16 %v217
  %v258 = vunpack.c.h.b16 %v217
  %v259 = vunpack.c.l.b16 %v218
  %v260 = vunpack.c.h.b16 %v218
  %v261 = vunpack.c.l.b16 %v219
  %v262 = vunpack.c.h.b16 %v219
  %v263 = vunpack.c.l.b16 %v220
  %v264 = vunpack.c.h.b16 %v220
  %v265 = vunpack.c.l.b16 %v221
  %v266 = vunpack.c.h.b16 %v221
  %v267 = vunpack.c.l.b16 %v222
  %v268 = vunpack.c.h.b16 %v222
  %v269 = vunpack.c.l.b16 %v223
  %v270 = vunpack.c.h.b16 %v223
  %v271 = vunpack.c.l.b16 %v224
  %v272 = vunpack.c.h.b16 %v224
  %v273 = vpack.c.b16 %v245, %v241
  %v274 = vpack.c.b16 %v246, %v242
  %v275 = vpack.c.b16 %v247, %v243
  %v276 = vpack.c.b16 %v248, %v244
  %v277 = vpack.c.b16 %v253, %v249
  %v278 = vpack.c.b16 %v254, %v250
  %v279 = vpack.c.b16 %v255, %v251
  %v280 = vpack.c.b16 %v256, %v252
  %v281 = vpack.c.b16 %v261, %v257
  %v282 = vpack.c.b16 %v262, %v258
  %v283 = vpack.c.b16 %v263, %v259
  %v284 = vpack.c.b16 %v264, %v260
  %v285 = vpack.c.b16 %v269, %v265
  %v286 = vpack.c.b16 %v270, %v266
  %v287 = vpack.c.b16 %v271, %v267
  %v288 = vpack.c.b16 %v272, %v268
  %v306 = vsel %vm115, %v207, 0
  %308 = vmatprep.subr.bf16.mxu0 %v274
  %309 = vmatpush1.bf16.msra.mxu0 %v273
  %310 = vmatprep.subr.bf16.mxu0 %v278
  %311 = vmatpush1.bf16.msra.mxu0 %v277
  %312 = vmatprep.subr.bf16.mxu0 %v282
  %313 = vmatpush1.bf16.msra.mxu0 %v281
  %314 = vmatprep.subr.bf16.mxu0 %v286
  %315 = vmatpush1.bf16.msra.mxu0 %v285
  %316 = vmatprep.subr.bf16.mxu0 0
  %317 = vmatpush1.bf16.msra.mxu0 0
  %318 = vmatprep.subr.bf16.mxu0 0
  %319 = vmatpush1.bf16.msra.mxu0 0
  %320 = vmatprep.subr.bf16.mxu0 0
  %321 = vmatpush1.bf16.msra.mxu0 0
  %322 = vmatprep.subr.bf16.mxu0 0
  %323 = vmatpush1.bf16.msra.mxu0 0
  %324 = vmatprep.subr.bf16.mxu0 0
  %325 = vmatpush1.bf16.msra.mxu0 0
  %326 = vmatprep.subr.bf16.mxu0 0
  %327 = vmatpush1.bf16.msra.mxu0 0
  %328 = vmatprep.subr.bf16.mxu0 0
  %329 = vmatpush1.bf16.msra.mxu0 0
  %330 = vmatprep.subr.bf16.mxu0 0
  %331 = vmatpush1.bf16.msra.mxu0 0
  %332 = vmatprep.subr.bf16.mxu0 0
  %333 = vmatpush1.bf16.msra.mxu0 0
  %334 = vmatprep.subr.bf16.mxu0 0
  %335 = vmatpush1.bf16.msra.mxu0 0
  %336 = vmatprep.subr.bf16.mxu0 0
  %337 = vmatpush1.bf16.msra.mxu0 0
  %338 = vmatprep.subr.bf16.mxu0 0
  %339 = vmatpush1.bf16.msra.mxu0 0
  %340 = vmatprep.mubr.bf16.mxu0 0
  %341 = vmatmul.mubr.bf16.gmra.mrb[0].mxu0 %v306
  %v342 = vpop.f32.mrb[0].mxu0
  %v343 = vadd.f32 0.0, %v342
  %v344 = vpop.f32.mrb[0].mxu0
  %v345 = vadd.f32 0.0, %v344
  %v346 = vpop.f32.mrb[0].mxu0
  %v347 = vpop.f32.mrb[0].mxu0
  %348 = vdwg.mxu0
  %349 = vmatprep.subr.bf16.mxu0 %v276
  %350 = vmatpush1.bf16.msra.mxu0 %v275
  %351 = vmatprep.subr.bf16.mxu0 %v280
  %352 = vmatpush1.bf16.msra.mxu0 %v279
  %353 = vmatprep.subr.bf16.mxu0 %v284
  %354 = vmatpush1.bf16.msra.mxu0 %v283
  %355 = vmatprep.subr.bf16.mxu0 %v288
  %356 = vmatpush1.bf16.msra.mxu0 %v287
  %357 = vmatprep.subr.bf16.mxu0 0
  %358 = vmatpush1.bf16.msra.mxu0 0
  %359 = vmatprep.subr.bf16.mxu0 0
  %360 = vmatpush1.bf16.msra.mxu0 0
  %361 = vmatprep.subr.bf16.mxu0 0
  %362 = vmatpush1.bf16.msra.mxu0 0
  %363 = vmatprep.subr.bf16.mxu0 0
  %364 = vmatpush1.bf16.msra.mxu0 0
  %365 = vmatprep.subr.bf16.mxu0 0
  %366 = vmatpush1.bf16.msra.mxu0 0
  %367 = vmatprep.subr.bf16.mxu0 0
  %368 = vmatpush1.bf16.msra.mxu0 0
  %369 = vmatprep.subr.bf16.mxu0 0
  %370 = vmatpush1.bf16.msra.mxu0 0
  %371 = vmatprep.subr.bf16.mxu0 0
  %372 = vmatpush1.bf16.msra.mxu0 0
  %373 = vmatprep.subr.bf16.mxu0 0
  %374 = vmatpush1.bf16.msra.mxu0 0
  %375 = vmatprep.subr.bf16.mxu0 0
  %376 = vmatpush1.bf16.msra.mxu0 0
  %377 = vmatprep.subr.bf16.mxu0 0
  %378 = vmatpush1.bf16.msra.mxu0 0
  %379 = vmatprep.subr.bf16.mxu0 0
  %380 = vmatpush1.bf16.msra.mxu0 0
  %381 = vmatprep.mubr.bf16.mxu0 0
  %382 = vmatmul.mubr.bf16.gmra.mrb[0].mxu0 %v306
  %v383 = vpop.f32.mrb[0].mxu0
  %v384 = vadd.f32 0.0, %v383
  %v385 = vpop.f32.mrb[0].mxu0
  %v386 = vadd.f32 0.0, %v385
  %v387 = vpop.f32.mrb[0].mxu0
  %v388 = vpop.f32.mrb[0].mxu0
  %389 = vdwg.mxu0
  %v390 = vadd.f32 %v343, %v345
  %v391 = vadd.f32 %v390, %v384
  %v392 = vadd.f32 %v391, %v386
  %393 = vadd.xlane.f32.xlu0 %v392
  %v394 = vpop.xlane.xlu0 %393
  %v395 = vadd.f32 %v205, %v394
  %s396 = scalar_lea.vmem %s1, 8
  %v397 = vld [vmem:[%s396] sm:$0xf]
  %s398 = scalar_lea.vmem %s0, 256
  %v399 = vld [vmem:[%s398] sm:$0xff]
  %v400 = vld [vmem:[%s398 + $0x8] sm:$0xff]
  %v401 = vld [vmem:[%s398 + $0x10] sm:$0xff]
  %v402 = vld [vmem:[%s398 + $0x18] sm:$0xff]
  %v403 = vld [vmem:[%s398 + $0x20] sm:$0xff]
  %v404 = vld [vmem:[%s398 + $0x28] sm:$0xff]
  %v405 = vld [vmem:[%s398 + $0x30] sm:$0xff]
  %v406 = vld [vmem:[%s398 + $0x38] sm:$0xff]
  %v407 = vld [vmem:[%s398 + $0x40] sm:$0xff]
  %v408 = vld [vmem:[%s398 + $0x48] sm:$0xff]
  %v409 = vld [vmem:[%s398 + $0x50] sm:$0xff]
  %v410 = vld [vmem:[%s398 + $0x58] sm:$0xff]
  %v411 = vld [vmem:[%s398 + $0x60] sm:$0xff]
  %v412 = vld [vmem:[%s398 + $0x68] sm:$0xff]
  %v413 = vld [vmem:[%s398 + $0x70] sm:$0xff]
  %v414 = vld [vmem:[%s398 + $0x78] sm:$0xff]
  %v431 = vunpack.c.l.b16 %v399
  %v432 = vunpack.c.h.b16 %v399
  %v433 = vunpack.c.l.b16 %v400
  %v434 = vunpack.c.h.b16 %v400
  %v435 = vunpack.c.l.b16 %v401
  %v436 = vunpack.c.h.b16 %v401
  %v437 = vunpack.c.l.b16 %v402
  %v438 = vunpack.c.h.b16 %v402
  %v439 = vunpack.c.l.b16 %v403
  %v440 = vunpack.c.h.b16 %v403
  %v441 = vunpack.c.l.b16 %v404
  %v442 = vunpack.c.h.b16 %v404
  %v443 = vunpack.c.l.b16 %v405
  %v444 = vunpack.c.h.b16 %v405
  %v445 = vunpack.c.l.b16 %v406
  %v446 = vunpack.c.h.b16 %v406
  %v447 = vunpack.c.l.b16 %v407
  %v448 = vunpack.c.h.b16 %v407
  %v449 = vunpack.c.l.b16 %v408
  %v450 = vunpack.c.h.b16 %v408
  %v451 = vunpack.c.l.b16 %v409
  %v452 = vunpack.c.h.b16 %v409
  %v453 = vunpack.c.l.b16 %v410
  %v454 = vunpack.c.h.b16 %v410
  %v455 = vunpack.c.l.b16 %v411
  %v456 = vunpack.c.h.b16 %v411
  %v457 = vunpack.c.l.b16 %v412
  %v458 = vunpack.c.h.b16 %v412
  %v459 = vunpack.c.l.b16 %v413
  %v460 = vunpack.c.h.b16 %v413
  %v461 = vunpack.c.l.b16 %v414
  %v462 = vunpack.c.h.b16 %v414
  %v463 = vpack.c.b16 %v435, %v431
  %v464 = vpack.c.b16 %v436, %v432
  %v465 = vpack.c.b16 %v437, %v433
  %v466 = vpack.c.b16 %v438, %v434
  %v467 = vpack.c.b16 %v443, %v439
  %v468 = vpack.c.b16 %v444, %v440
  %v469 = vpack.c.b16 %v445, %v441
  %v470 = vpack.c.b16 %v446, %v442
  %v471 = vpack.c.b16 %v451, %v447
  %v472 = vpack.c.b16 %v452, %v448
  %v473 = vpack.c.b16 %v453, %v449
  %v474 = vpack.c.b16 %v454, %v450
  %v475 = vpack.c.b16 %v459, %v455
  %v476 = vpack.c.b16 %v460, %v456
  %v477 = vpack.c.b16 %v461, %v457
  %v478 = vpack.c.b16 %v462, %v458
  %v496 = vsel %vm115, %v397, 0
  %498 = vmatprep.subr.bf16.mxu0 %v464
  %499 = vmatpush1.bf16.msra.mxu0 %v463
  %500 = vmatprep.subr.bf16.mxu0 %v468
  %501 = vmatpush1.bf16.msra.mxu0 %v467
  %502 = vmatprep.subr.bf16.mxu0 %v472
  %503 = vmatpush1.bf16.msra.mxu0 %v471
  %504 = vmatprep.subr.bf16.mxu0 %v476
  %505 = vmatpush1.bf16.msra.mxu0 %v475
  %506 = vmatprep.subr.bf16.mxu0 0
  %507 = vmatpush1.bf16.msra.mxu0 0
  %508 = vmatprep.subr.bf16.mxu0 0
  %509 = vmatpush1.bf16.msra.mxu0 0
  %510 = vmatprep.subr.bf16.mxu0 0
  %511 = vmatpush1.bf16.msra.mxu0 0
  %512 = vmatprep.subr.bf16.mxu0 0
  %513 = vmatpush1.bf16.msra.mxu0 0
  %514 = vmatprep.subr.bf16.mxu0 0
  %515 = vmatpush1.bf16.msra.mxu0 0
  %516 = vmatprep.subr.bf16.mxu0 0
  %517 = vmatpush1.bf16.msra.mxu0 0
  %518 = vmatprep.subr.bf16.mxu0 0
  %519 = vmatpush1.bf16.msra.mxu0 0
  %520 = vmatprep.subr.bf16.mxu0 0
  %521 = vmatpush1.bf16.msra.mxu0 0
  %522 = vmatprep.subr.bf16.mxu0 0
  %523 = vmatpush1.bf16.msra.mxu0 0
  %524 = vmatprep.subr.bf16.mxu0 0
  %525 = vmatpush1.bf16.msra.mxu0 0
  %526 = vmatprep.subr.bf16.mxu0 0
  %527 = vmatpush1.bf16.msra.mxu0 0
  %528 = vmatprep.subr.bf16.mxu0 0
  %529 = vmatpush1.bf16.msra.mxu0 0
  %530 = vmatprep.mubr.bf16.mxu0 0
  %531 = vmatmul.mubr.bf16.gmra.mrb[0].mxu0 %v496
  %v532 = vpop.f32.mrb[0].mxu0
  %v533 = vadd.f32 0.0, %v532
  %v534 = vpop.f32.mrb[0].mxu0
  %v535 = vadd.f32 0.0, %v534
  %v536 = vpop.f32.mrb[0].mxu0
  %v537 = vpop.f32.mrb[0].mxu0
  %538 = vdwg.mxu0
  %539 = vmatprep.subr.bf16.mxu0 %v466
  %540 = vmatpush1.bf16.msra.mxu0 %v465
  %541 = vmatprep.subr.bf16.mxu0 %v470
  %542 = vmatpush1.bf16.msra.mxu0 %v469
  %543 = vmatprep.subr.bf16.mxu0 %v474
  %544 = vmatpush1.bf16.msra.mxu0 %v473
  %545 = vmatprep.subr.bf16.mxu0 %v478
  %546 = vmatpush1.bf16.msra.mxu0 %v477
  %547 = vmatprep.subr.bf16.mxu0 0
  %548 = vmatpush1.bf16.msra.mxu0 0
  %549 = vmatprep.subr.bf16.mxu0 0
  %550 = vmatpush1.bf16.msra.mxu0 0
  %551 = vmatprep.subr.bf16.mxu0 0
  %552 = vmatpush1.bf16.msra.mxu0 0
  %553 = vmatprep.subr.bf16.mxu0 0
  %554 = vmatpush1.bf16.msra.mxu0 0
  %555 = vmatprep.subr.bf16.mxu0 0
  %556 = vmatpush1.bf16.msra.mxu0 0
  %557 = vmatprep.subr.bf16.mxu0 0
  %558 = vmatpush1.bf16.msra.mxu0 0
  %559 = vmatprep.subr.bf16.mxu0 0
  %560 = vmatpush1.bf16.msra.mxu0 0
  %561 = vmatprep.subr.bf16.mxu0 0
  %562 = vmatpush1.bf16.msra.mxu0 0
  %563 = vmatprep.subr.bf16.mxu0 0
  %564 = vmatpush1.bf16.msra.mxu0 0
  %565 = vmatprep.subr.bf16.mxu0 0
  %566 = vmatpush1.bf16.msra.mxu0 0
  %567 = vmatprep.subr.bf16.mxu0 0
  %568 = vmatpush1.bf16.msra.mxu0 0
  %569 = vmatprep.subr.bf16.mxu0 0
  %570 = vmatpush1.bf16.msra.mxu0 0
  %571 = vmatprep.mubr.bf16.mxu0 0
  %572 = vmatmul.mubr.bf16.gmra.mrb[0].mxu0 %v496
  %v573 = vpop.f32.mrb[0].mxu0
  %v574 = vadd.f32 0.0, %v573
  %v575 = vpop.f32.mrb[0].mxu0
  %v576 = vadd.f32 0.0, %v575
  %v577 = vpop.f32.mrb[0].mxu0
  %v578 = vpop.f32.mrb[0].mxu0
  %579 = vdwg.mxu0
  %v580 = vadd.f32 %v533, %v535
  %v581 = vadd.f32 %v580, %v574
  %v582 = vadd.f32 %v581, %v576
  %583 = vadd.xlane.f32.xlu0 %v582
  %v584 = vpop.xlane.xlu0 %583
  %v585 = vadd.f32 %v395, %v584
  %s586 = scalar_lea.vmem %s1, 12
  %v587 = vld [vmem:[%s586] sm:$0xf]
  %s588 = scalar_lea.vmem %s0, 384
  %v589 = vld [vmem:[%s588] sm:$0xff]
  %v590 = vld [vmem:[%s588 + $0x8] sm:$0xff]
  %v591 = vld [vmem:[%s588 + $0x10] sm:$0xff]
  %v592 = vld [vmem:[%s588 + $0x18] sm:$0xff]
  %v593 = vld [vmem:[%s588 + $0x20] sm:$0xff]
  %v594 = vld [vmem:[%s588 + $0x28] sm:$0xff]
  %v595 = vld [vmem:[%s588 + $0x30] sm:$0xff]
  %v596 = vld [vmem:[%s588 + $0x38] sm:$0xff]
  %v597 = vld [vmem:[%s588 + $0x40] sm:$0xff]
  %v598 = vld [vmem:[%s588 + $0x48] sm:$0xff]
  %v599 = vld [vmem:[%s588 + $0x50] sm:$0xff]
  %v600 = vld [vmem:[%s588 + $0x58] sm:$0xff]
  %v601 = vld [vmem:[%s588 + $0x60] sm:$0xff]
  %v602 = vld [vmem:[%s588 + $0x68] sm:$0xff]
  %v603 = vld [vmem:[%s588 + $0x70] sm:$0xff]
  %v604 = vld [vmem:[%s588 + $0x78] sm:$0xff]
  %v621 = vunpack.c.l.b16 %v589
  %v622 = vunpack.c.h.b16 %v589
  %v623 = vunpack.c.l.b16 %v590
  %v624 = vunpack.c.h.b16 %v590
  %v625 = vunpack.c.l.b16 %v591
  %v626 = vunpack.c.h.b16 %v591
  %v627 = vunpack.c.l.b16 %v592
  %v628 = vunpack.c.h.b16 %v592
  %v629 = vunpack.c.l.b16 %v593
  %v630 = vunpack.c.h.b16 %v593
  %v631 = vunpack.c.l.b16 %v594
  %v632 = vunpack.c.h.b16 %v594
  %v633 = vunpack.c.l.b16 %v595
  %v634 = vunpack.c.h.b16 %v595
  %v635 = vunpack.c.l.b16 %v596
  %v636 = vunpack.c.h.b16 %v596
  %v637 = vunpack.c.l.b16 %v597
  %v638 = vunpack.c.h.b16 %v597
  %v639 = vunpack.c.l.b16 %v598
  %v640 = vunpack.c.h.b16 %v598
  %v641 = vunpack.c.l.b16 %v599
  %v642 = vunpack.c.h.b16 %v599
  %v643 = vunpack.c.l.b16 %v600
  %v644 = vunpack.c.h.b16 %v600
  %v645 = vunpack.c.l.b16 %v601
  %v646 = vunpack.c.h.b16 %v601
  %v647 = vunpack.c.l.b16 %v602
  %v648 = vunpack.c.h.b16 %v602
  %v649 = vunpack.c.l.b16 %v603
  %v650 = vunpack.c.h.b16 %v603
  %v651 = vunpack.c.l.b16 %v604
  %v652 = vunpack.c.h.b16 %v604
  %v653 = vpack.c.b16 %v625, %v621
  %v654 = vpack.c.b16 %v626, %v622
  %v655 = vpack.c.b16 %v627, %v623
  %v656 = vpack.c.b16 %v628, %v624
  %v657 = vpack.c.b16 %v633, %v629
  %v658 = vpack.c.b16 %v634, %v630
  %v659 = vpack.c.b16 %v635, %v631
  %v660 = vpack.c.b16 %v636, %v632
  %v661 = vpack.c.b16 %v641, %v637
  %v662 = vpack.c.b16 %v642, %v638
  %v663 = vpack.c.b16 %v643, %v639
  %v664 = vpack.c.b16 %v644, %v640
  %v665 = vpack.c.b16 %v649, %v645
  %v666 = vpack.c.b16 %v650, %v646
  %v667 = vpack.c.b16 %v651, %v647
  %v668 = vpack.c.b16 %v652, %v648
  %v686 = vsel %vm115, %v587, 0
  %688 = vmatprep.subr.bf16.mxu0 %v654
  %689 = vmatpush1.bf16.msra.mxu0 %v653
  %690 = vmatprep.subr.bf16.mxu0 %v658
  %691 = vmatpush1.bf16.msra.mxu0 %v657
  %692 = vmatprep.subr.bf16.mxu0 %v662
  %693 = vmatpush1.bf16.msra.mxu0 %v661
  %694 = vmatprep.subr.bf16.mxu0 %v666
  %695 = vmatpush1.bf16.msra.mxu0 %v665
  %696 = vmatprep.subr.bf16.mxu0 0
  %697 = vmatpush1.bf16.msra.mxu0 0
  %698 = vmatprep.subr.bf16.mxu0 0
  %699 = vmatpush1.bf16.msra.mxu0 0
  %700 = vmatprep.subr.bf16.mxu0 0
  %701 = vmatpush1.bf16.msra.mxu0 0
  %702 = vmatprep.subr.bf16.mxu0 0
  %703 = vmatpush1.bf16.msra.mxu0 0
  %704 = vmatprep.subr.bf16.mxu0 0
  %705 = vmatpush1.bf16.msra.mxu0 0
  %706 = vmatprep.subr.bf16.mxu0 0
  %707 = vmatpush1.bf16.msra.mxu0 0
  %708 = vmatprep.subr.bf16.mxu0 0
  %709 = vmatpush1.bf16.msra.mxu0 0
  %710 = vmatprep.subr.bf16.mxu0 0
  %711 = vmatpush1.bf16.msra.mxu0 0
  %712 = vmatprep.subr.bf16.mxu0 0
  %713 = vmatpush1.bf16.msra.mxu0 0
  %714 = vmatprep.subr.bf16.mxu0 0
  %715 = vmatpush1.bf16.msra.mxu0 0
  %716 = vmatprep.subr.bf16.mxu0 0
  %717 = vmatpush1.bf16.msra.mxu0 0
  %718 = vmatprep.subr.bf16.mxu0 0
  %719 = vmatpush1.bf16.msra.mxu0 0
  %720 = vmatprep.mubr.bf16.mxu0 0
  %721 = vmatmul.mubr.bf16.gmra.mrb[0].mxu0 %v686
  %v722 = vpop.f32.mrb[0].mxu0
  %v723 = vadd.f32 0.0, %v722
  %v724 = vpop.f32.mrb[0].mxu0
  %v725 = vadd.f32 0.0, %v724
  %v726 = vpop.f32.mrb[0].mxu0
  %v727 = vpop.f32.mrb[0].mxu0
  %728 = vdwg.mxu0
  %729 = vmatprep.subr.bf16.mxu0 %v656
  %730 = vmatpush1.bf16.msra.mxu0 %v655
  %731 = vmatprep.subr.bf16.mxu0 %v660
  %732 = vmatpush1.bf16.msra.mxu0 %v659
  %733 = vmatprep.subr.bf16.mxu0 %v664
  %734 = vmatpush1.bf16.msra.mxu0 %v663
  %735 = vmatprep.subr.bf16.mxu0 %v668
  %736 = vmatpush1.bf16.msra.mxu0 %v667
  %737 = vmatprep.subr.bf16.mxu0 0
  %738 = vmatpush1.bf16.msra.mxu0 0
  %739 = vmatprep.subr.bf16.mxu0 0
  %740 = vmatpush1.bf16.msra.mxu0 0
  %741 = vmatprep.subr.bf16.mxu0 0
  %742 = vmatpush1.bf16.msra.mxu0 0
  %743 = vmatprep.subr.bf16.mxu0 0
  %744 = vmatpush1.bf16.msra.mxu0 0
  %745 = vmatprep.subr.bf16.mxu0 0
  %746 = vmatpush1.bf16.msra.mxu0 0
  %747 = vmatprep.subr.bf16.mxu0 0
  %748 = vmatpush1.bf16.msra.mxu0 0
  %749 = vmatprep.subr.bf16.mxu0 0
  %750 = vmatpush1.bf16.msra.mxu0 0
  %751 = vmatprep.subr.bf16.mxu0 0
  %752 = vmatpush1.bf16.msra.mxu0 0
  %753 = vmatprep.subr.bf16.mxu0 0
  %754 = vmatpush1.bf16.msra.mxu0 0
  %755 = vmatprep.subr.bf16.mxu0 0
  %756 = vmatpush1.bf16.msra.mxu0 0
  %757 = vmatprep.subr.bf16.mxu0 0
  %758 = vmatpush1.bf16.msra.mxu0 0
  %759 = vmatprep.subr.bf16.mxu0 0
  %760 = vmatpush1.bf16.msra.mxu0 0
  %761 = vmatprep.mubr.bf16.mxu0 0
  %762 = vmatmul.mubr.bf16.gmra.mrb[0].mxu0 %v686
  %v763 = vpop.f32.mrb[0].mxu0
  %v764 = vadd.f32 0.0, %v763
  %v765 = vpop.f32.mrb[0].mxu0
  %v766 = vadd.f32 0.0, %v765
  %v767 = vpop.f32.mrb[0].mxu0
  %v768 = vpop.f32.mrb[0].mxu0
  %769 = vdwg.mxu0
  %v770 = vadd.f32 %v723, %v725
  %v771 = vadd.f32 %v770, %v764
  %v772 = vadd.f32 %v771, %v766
  %773 = vadd.xlane.f32.xlu0 %v772
  %v774 = vpop.xlane.xlu0 %773
  %v775 = vadd.f32 %v585, %v774
  %v776 = vmul.f32 %v775, 0.00048828125
  %v777 = vsub.f32 %v154, %v776
  %v778 = vsub.f32 %v156, %v776
  %v779 = vsub.f32 %v195, %v776
  %v780 = vsub.f32 %v197, %v776
  %v781 = vmul.f32 %v777, %v777
  %v782 = vmul.f32 %v778, %v778
  %v783 = vmul.f32 %v779, %v779
  %v784 = vmul.f32 %v780, %v780
  %v785 = vadd.f32 %v781, %v782
  %v786 = vadd.f32 %v785, %v783
  %v787 = vadd.f32 %v786, %v784
  %788 = vadd.xlane.f32.xlu0 %v787
  %v789 = vpop.xlane.xlu0 %788
  %v790 = vsub.f32 %v343, %v776
  %v791 = vsub.f32 %v345, %v776
  %v792 = vsub.f32 %v384, %v776
  %v793 = vsub.f32 %v386, %v776
  %v794 = vmul.f32 %v790, %v790
  %v795 = vmul.f32 %v791, %v791
  %v796 = vmul.f32 %v792, %v792
  %v797 = vmul.f32 %v793, %v793
  %v798 = vadd.f32 %v794, %v795
  %v799 = vadd.f32 %v798, %v796
  %v800 = vadd.f32 %v799, %v797
  %801 = vadd.xlane.f32.xlu0 %v800
  %v802 = vpop.xlane.xlu0 %801
  %v803 = vadd.f32 %v789, %v802
  %v804 = vsub.f32 %v533, %v776
  %v805 = vsub.f32 %v535, %v776
  %v806 = vsub.f32 %v574, %v776
  %v807 = vsub.f32 %v576, %v776
  %v808 = vmul.f32 %v804, %v804
  %v809 = vmul.f32 %v805, %v805
  %v810 = vmul.f32 %v806, %v806
  %v811 = vmul.f32 %v807, %v807
  %v812 = vadd.f32 %v808, %v809
  %v813 = vadd.f32 %v812, %v810
  %v814 = vadd.f32 %v813, %v811
  %815 = vadd.xlane.f32.xlu0 %v814
  %v816 = vpop.xlane.xlu0 %815
  %v817 = vadd.f32 %v803, %v816
  %v818 = vsub.f32 %v723, %v776
  %v819 = vsub.f32 %v725, %v776
  %v820 = vsub.f32 %v764, %v776
  %v821 = vsub.f32 %v766, %v776
  %v822 = vmul.f32 %v818, %v818
  %v823 = vmul.f32 %v819, %v819
  %v824 = vmul.f32 %v820, %v820
  %v825 = vmul.f32 %v821, %v821
  %v826 = vadd.f32 %v822, %v823
  %v827 = vadd.f32 %v826, %v824
  %v828 = vadd.f32 %v827, %v825
  %829 = vadd.xlane.f32.xlu0 %v828
  %v830 = vpop.xlane.xlu0 %829
  %v831 = vadd.f32 %v817, %v830
  %v832 = vmul.f32 %v831, 0.00048828125
  %v833 = vadd.f32 %v832, 1e-05
  %v834 = vrsqrt.pop %v833
  %v835 = vld [vmem:[%s2] sm:$0xff]
  %v836 = vmul.f32 %v835, %v834
  %v837 = vld [vmem:[%s3] sm:$0xff]
  %v838 = vmul.f32 %v776, %v836
  %v839 = vsub.f32 %v837, %v838
  %841 = vset.pattern.permute.xlu0 0
  %842 = vperm.xlu0 %841, %v836
  %v843 = vpop.permute.xlu0 %842
  %v845 = vmul.f32 %v154, %v843
  %v846 = vmul.f32 %v156, %v843
  %v847 = vmul.f32 %v195, %v843
  %v848 = vmul.f32 %v197, %v843
  %850 = vset.pattern.permute.xlu0 0
  %851 = vperm.xlu0 %850, %v839
  %v852 = vpop.permute.xlu0 %851
  %v854 = vadd.f32 %v845, %v852
  %v855 = vadd.f32 %v846, %v852
  %v856 = vadd.f32 %v847, %v852
  %v857 = vadd.f32 %v848, %v852
  %v858 = vmax.f32 %v854, 0.0
  %v859 = vmax.f32 %v855, 0.0
  %v860 = vmax.f32 %v856, 0.0
  %v861 = vmax.f32 %v857, 0.0
  %v862 = vpack.c.bf16 %v858, %v858
  %v863 = vpack.c.bf16 %v859, %v859
  %v864 = vpack.c.bf16 %v860, %v860
  %v865 = vpack.c.bf16 %v861, %v861
  %v870 = vunpack.c.l.b16 %v862
  %v871 = vunpack.c.l.b16 %v863
  %v872 = vunpack.c.l.b16 %v864
  %v873 = vunpack.c.l.b16 %v865
  %v874 = vpack.c.b16 %v871, %v870
  %v875 = vpack.c.b16 %v873, %v872
  %878 = vst [vmem:[%s4] sm:$0xff] %v874
  %879 = vst [vmem:[%s4 + $0x8] sm:$0xff] %v875
  %v880 = vmul.f32 %v343, %v843
  %v881 = vmul.f32 %v345, %v843
  %v882 = vmul.f32 %v384, %v843
  %v883 = vmul.f32 %v386, %v843
  %v884 = vadd.f32 %v880, %v852
  %v885 = vadd.f32 %v881, %v852
  %v886 = vadd.f32 %v882, %v852
  %v887 = vadd.f32 %v883, %v852
  %v888 = vmax.f32 %v884, 0.0
  %v889 = vmax.f32 %v885, 0.0
  %v890 = vmax.f32 %v886, 0.0
  %v891 = vmax.f32 %v887, 0.0
  %v892 = vpack.c.bf16 %v888, %v888
  %v893 = vpack.c.bf16 %v889, %v889
  %v894 = vpack.c.bf16 %v890, %v890
  %v895 = vpack.c.bf16 %v891, %v891
  %v900 = vunpack.c.l.b16 %v892
  %v901 = vunpack.c.l.b16 %v893
  %v902 = vunpack.c.l.b16 %v894
  %v903 = vunpack.c.l.b16 %v895
  %v904 = vpack.c.b16 %v901, %v900
  %v905 = vpack.c.b16 %v903, %v902
  %s908 = scalar_lea.vmem %s4, 16
  %909 = vst [vmem:[%s908] sm:$0xff] %v904
  %910 = vst [vmem:[%s908 + $0x8] sm:$0xff] %v905
  %v911 = vmul.f32 %v533, %v843
  %v912 = vmul.f32 %v535, %v843
  %v913 = vmul.f32 %v574, %v843
  %v914 = vmul.f32 %v576, %v843
  %v915 = vadd.f32 %v911, %v852
  %v916 = vadd.f32 %v912, %v852
  %v917 = vadd.f32 %v913, %v852
  %v918 = vadd.f32 %v914, %v852
  %v919 = vmax.f32 %v915, 0.0
  %v920 = vmax.f32 %v916, 0.0
  %v921 = vmax.f32 %v917, 0.0
  %v922 = vmax.f32 %v918, 0.0
  %v923 = vpack.c.bf16 %v919, %v919
  %v924 = vpack.c.bf16 %v920, %v920
  %v925 = vpack.c.bf16 %v921, %v921
  %v926 = vpack.c.bf16 %v922, %v922
  %v931 = vunpack.c.l.b16 %v923
  %v932 = vunpack.c.l.b16 %v924
  %v933 = vunpack.c.l.b16 %v925
  %v934 = vunpack.c.l.b16 %v926
  %v935 = vpack.c.b16 %v932, %v931
  %v936 = vpack.c.b16 %v934, %v933
  %s939 = scalar_lea.vmem %s4, 32
  %940 = vst [vmem:[%s939] sm:$0xff] %v935
  %941 = vst [vmem:[%s939 + $0x8] sm:$0xff] %v936
  %v942 = vmul.f32 %v723, %v843
  %v943 = vmul.f32 %v725, %v843
  %v944 = vmul.f32 %v764, %v843
  %v945 = vmul.f32 %v766, %v843
  %v946 = vadd.f32 %v942, %v852
  %v947 = vadd.f32 %v943, %v852
  %v948 = vadd.f32 %v944, %v852
  %v949 = vadd.f32 %v945, %v852
  %v950 = vmax.f32 %v946, 0.0
  %v951 = vmax.f32 %v947, 0.0
  %v952 = vmax.f32 %v948, 0.0
  %v953 = vmax.f32 %v949, 0.0
  %v954 = vpack.c.bf16 %v950, %v950
  %v955 = vpack.c.bf16 %v951, %v951
  %v956 = vpack.c.bf16 %v952, %v952
  %v957 = vpack.c.bf16 %v953, %v953
  %v962 = vunpack.c.l.b16 %v954
  %v963 = vunpack.c.l.b16 %v955
  %v964 = vunpack.c.l.b16 %v956
  %v965 = vunpack.c.l.b16 %v957
  %v966 = vpack.c.b16 %v963, %v962
  %v967 = vpack.c.b16 %v965, %v964
  %s970 = scalar_lea.vmem %s4, 48
  %971 = vst [vmem:[%s970] sm:$0xff] %v966
  %972 = vst [vmem:[%s970 + $0x8] sm:$0xff] %v967
  // Predicated region
  $region18: #{generator_forward.8} parent=0 // pred_check
    _
  $region19: #{generator_forward.8} parent=0 // pred_check_branch
    %974 = sbr.rel (0) target = $region21
  $region20: #{generator_forward.8} parent=0 // pred_region
    _
  $region21: #{generator_forward.8} parent=0 // pred_fallthru
    _
  // Predicated region
  $region22: #{generator_forward.8} parent=0 // pred_check
    _
  $region23: #{generator_forward.8} parent=0 // pred_check_branch
    %976 = sbr.rel (0) target = $region25
  $region24: #{generator_forward.8} parent=0 // pred_region
    _
  $region25: #{generator_forward.8} parent=0 // pred_fallthru
    _

// kernel: generator_forward.9
$region0: #{generator_forward.9}
  #allocation0 [shape = 'u32[]', space=smem, size = 0x4, offset = 0x4, fixed_abs, tag = 'smem constant byte address 0x4 - core index']
  #allocation1 [shape = 'u32[144,128]{1,0:T(1,128)}', space=vmem, size = 0x12000, scoped, tag = 'internal scratch']
  %s0 = inlined_call_operand.vmem [shape: bf16[4,32,2048], index: 0, kind: input, shape index: {}]
  %s1 = inlined_call_operand.vmem [shape: bf16[4,8,32], index: 1, kind: input, shape index: {}]
  %s2 = inlined_call_operand.vmem [shape: f32[4,8,2048], index: 2, kind: output, shape index: {}]
  %s3 = sld [smem:[#allocation0]]
  $region41: #{generator_forward.9} parent=0
    _
  %s5 = ssub.s32 1, %s3
  %s6 = scalar_select 0, %s5, %s3
  loop: start=0, step=1, limit=6
  $region2: #{generator_forward.9} parent=0 // loop_pre_header
    _
  $region3: #{generator_forward.9} parent=0 // loop_header
    %s8 = sphi 0, %s12
    %p9 = scmp.ge.s32.totalorder %s8, 6
    %s18 = sphi 0, %s20
    %s21 = sphi 0, %s18
    %s22 = sphi 0, %s21
    %s38 = sphi 0, %s22
    %s44 = sphi 0, %s46
    %s47 = sphi 0, %s44
    %s48 = sphi 0, %s47
    %s64 = sphi 0, %s48
    %s70 = sphi 0, %s72
    %s73 = sphi 0, %s70
    %s74 = sphi 0, %s73
    %s90 = sphi 0, %s74
  $region4: #{generator_forward.9} parent=0 // loop_header_branch
    %11 = sbr.rel (%p9) target = $region8
  $region5: #{generator_forward.9} parent=0 // loop_body
    %s13 = ssub.s32 %s8, 1
    %s14 = ssub.s32 %s8, 2
    %s15 = sadd.s32 %s8, 1
    %s16 = ssub.s32 %s8, %s15
    %p17 = scmp.eq.s32.totalorder %s16, 0
    %s19 = sadd.s32 %s18, 1
    %s20 = scalar_select %p17, %s18, %s19
    %p23 = pneg %p17
    %p24 = scmp.eq.s32.totalorder %s8, 3
    %p25 = por %p23, %p24
    %p26 = scmp.ne.s32.totalorder %s18, %s21
    %p27 = scmp.eq.s32.totalorder %s8, 0
    %p28 = por %p26, %p27
    %p29 = scmp.ne.s32.totalorder %s18, %s21
    %p30 = scmp.eq.s32.totalorder %s13, 3
    %p31 = por %p29, %p30
    %p32 = scmp.ne.s32.totalorder %s21, %s22
    %p33 = scmp.eq.s32.totalorder %s13, 0
    %p34 = por %p32, %p33
    %p35 = scmp.ne.s32.totalorder %s21, %s22
    %p36 = scmp.eq.s32.totalorder %s14, 3
    %p37 = por %p35, %p36
    %p39 = scmp.ne.s32.totalorder %s22, %s38
    %p40 = scmp.eq.s32.totalorder %s14, 0
    %p41 = por %p39, %p40
    %s42 = ssub.s32 %s8, %s15
    %p43 = scmp.eq.s32.totalorder %s42, 0
    %s45 = sadd.s32 %s44, 1
    %s46 = scalar_select %p43, %s44, %s45
    %p49 = pneg %p43
    %p50 = scmp.eq.s32.totalorder %s8, 3
    %p51 = por %p49, %p50
    %p52 = scmp.ne.s32.totalorder %s44, %s47
    %p53 = scmp.eq.s32.totalorder %s8, 0
    %p54 = por %p52, %p53
    %p55 = scmp.ne.s32.totalorder %s44, %s47
    %p56 = scmp.eq.s32.totalorder %s13, 3
    %p57 = por %p55, %p56
    %p58 = scmp.ne.s32.totalorder %s47, %s48
    %p59 = scmp.eq.s32.totalorder %s13, 0
    %p60 = por %p58, %p59
    %p61 = scmp.ne.s32.totalorder %s47, %s48
    %p62 = scmp.eq.s32.totalorder %s14, 3
    %p63 = por %p61, %p62
    %p65 = scmp.ne.s32.totalorder %s48, %s64
    %p66 = scmp.eq.s32.totalorder %s14, 0
    %p67 = por %p65, %p66
    %s68 = ssub.s32 %s8, %s15
    %p69 = scmp.eq.s32.totalorder %s68, 0
    %s71 = sadd.s32 %s70, 1
    %s72 = scalar_select %p69, %s70, %s71
    %p75 = pneg %p69
    %p76 = scmp.eq.s32.totalorder %s8, 3
    %p77 = por %p75, %p76
    %p78 = scmp.ne.s32.totalorder %s70, %s73
    %p79 = scmp.eq.s32.totalorder %s8, 0
    %p80 = por %p78, %p79
    %p81 = scmp.ne.s32.totalorder %s70, %s73
    %p82 = scmp.eq.s32.totalorder %s13, 3
    %p83 = por %p81, %p82
    %p84 = scmp.ne.s32.totalorder %s73, %s74
    %p85 = scmp.eq.s32.totalorder %s13, 0
    %p86 = por %p84, %p85
    %p87 = scmp.ne.s32.totalorder %s73, %s74
    %p88 = scmp.eq.s32.totalorder %s14, 3
    %p89 = por %p87, %p88
    %p91 = scmp.ne.s32.totalorder %s74, %s90
    %p92 = scmp.eq.s32.totalorder %s14, 0
    %p93 = por %p91, %p92
    %p94 = scmp.le.s32.totalorder 1, %s8
    %p95 = scmp.lt.s32.totalorder %s8, 5
    %p96 = pnand %p94, %p95
    %p97 = pneg %p96
    // Predicated region
    $region9: #{generator_forward.9} parent=5 // pred_check
      _
    $region10: #{generator_forward.9} parent=5 // pred_check_branch
      %99 = sbr.rel (%p96) target = $region12
    $region11: #{generator_forward.9} parent=5 // pred_region
      %s100 = ssub.s32 %s8, 1
    $region12: #{generator_forward.9} parent=5 // pred_fallthru
      _
    %p101 = scmp.lt.s32.totalorder %s8, 4
    // Predicated region
    $region13: #{generator_forward.9} parent=5 // pred_check
      %p102 = pneg %p101
    $region14: #{generator_forward.9} parent=5 // pred_check_branch
      %104 = sbr.rel (%p102) target = $region16
    $region15: #{generator_forward.9} parent=5 // pred_region
      // Predicated region
      $region17: #{generator_forward.9} parent=15 // pred_check
        %p105 = pneg %p28
      $region18: #{generator_forward.9} parent=15 // pred_check_branch
        %107 = sbr.rel (%p105) target = $region20
      $region19: #{generator_forward.9} parent=15 // pred_region
        %p108 = scmp.lt.s32.totalorder %s8, 3
        %s109 = scalar_select %p108, %s8, 3
        %s110 = smul.addr %s109, 64
        %s111 = smul.addr %s110, 4
        %s112 = scalar_lea.vmem %s0, %s111
      $region20: #{generator_forward.9} parent=15 // pred_fallthru
        _
      // Predicated region
      $region21: #{generator_forward.9} parent=15 // pred_check
        %p113 = pneg %p54
      $region22: #{generator_forward.9} parent=15 // pred_check_branch
        %115 = sbr.rel (%p113) target = $region24
      $region23: #{generator_forward.9} parent=15 // pred_region
        %p116 = scmp.lt.s32.totalorder %s8, 3
        %s117 = scalar_select %p116, %s8, 3
        %s118 = smul.addr %s117, 4
        %s119 = scalar_lea.vmem %s1, %s118
      $region24: #{generator_forward.9} parent=15 // pred_fallthru
        _
    $region16: #{generator_forward.9} parent=5 // pred_fallthru
      _
    %p120 = scmp.le.s32.totalorder 1, %s8
    %p121 = scmp.lt.s32.totalorder %s8, 5
    %p122 = pnand %p120, %p121
    %p123 = pneg %p122
    // Predicated region
    $region25: #{generator_forward.9} parent=5 // pred_check
      _
    $region26: #{generator_forward.9} parent=5 // pred_check_branch
      %125 = sbr.rel (%p122) target = $region28
    $region27: #{generator_forward.9} parent=5 // pred_region
      %s126 = ssub.s32 %s8, 1
      %p127 = scmp.lt.s32.totalorder %s13, 3
      %s128 = scalar_select %p127, %s13, 3
      %s129 = smul.addr %s128, 64
      %s130 = smul.addr %s129, 4
      %s131 = scalar_lea.vmem %s0, %s130
      %p132 = pneg %p34
      %p133 = pneg %p31
      %p134 = scmp.lt.s32.totalorder %s13, 3
      %s135 = scalar_select %p134, %s13, 3
      %s136 = smul.addr %s135, 4
      %s137 = scalar_lea.vmem %s1, %s136
      %p138 = pneg %p60
      %p139 = pneg %p57
      %p140 = pneg %p86
      %p141 = pneg %p83
      %p142 = scmp.lt.s32.totalorder %s13, 3
      %s143 = scalar_select %p142, %s13, 3
      %s144 = smul.addr %s143, 16
      %s145 = smul.addr %s144, 8
      %s146 = scalar_lea.vmem %s2, %s145
      %p147 = scmp.lt.s32.totalorder %s13, 3
      %s148 = scalar_select %p147, %s13, 3
      %s149 = smul.addr %s148, 64
      %s150 = smul.addr %s149, 4
      %s151 = scalar_lea.vmem %s0, %s150
      %p152 = scmp.lt.s32.totalorder %s13, 3
      %s153 = scalar_select %p152, %s13, 3
      %s154 = smul.addr %s153, 4
      %s155 = scalar_lea.vmem %s1, %s154
      %p156 = scmp.lt.s32.totalorder %s13, 3
      %s157 = scalar_select %p156, %s13, 3
      %s158 = smul.addr %s157, 16
      %s159 = smul.addr %s158, 8
      %s160 = scalar_lea.vmem %s2, %s159
      %v162 = vld [vmem:[%s155] sm:$0xf]
      %v163 = vld [vmem:[%s151] sm:$0xff]
      %v164 = vld [vmem:[%s151 + $0x8] sm:$0xff]
      %v165 = vld [vmem:[%s151 + $0x10] sm:$0xff]
      %v166 = vld [vmem:[%s151 + $0x18] sm:$0xff]
      %v167 = vld [vmem:[%s151 + $0x20] sm:$0xff]
      %v168 = vld [vmem:[%s151 + $0x28] sm:$0xff]
      %v169 = vld [vmem:[%s151 + $0x30] sm:$0xff]
      %v170 = vld [vmem:[%s151 + $0x38] sm:$0xff]
      %v171 = vld [vmem:[%s151 + $0x40] sm:$0xff]
      %v172 = vld [vmem:[%s151 + $0x48] sm:$0xff]
      %v173 = vld [vmem:[%s151 + $0x50] sm:$0xff]
      %v174 = vld [vmem:[%s151 + $0x58] sm:$0xff]
      %v175 = vld [vmem:[%s151 + $0x60] sm:$0xff]
      %v176 = vld [vmem:[%s151 + $0x68] sm:$0xff]
      %v177 = vld [vmem:[%s151 + $0x70] sm:$0xff]
      %v178 = vld [vmem:[%s151 + $0x78] sm:$0xff]
      %v179 = vld [vmem:[%s151 + $0x80] sm:$0xff]
      %v180 = vld [vmem:[%s151 + $0x88] sm:$0xff]
      %v181 = vld [vmem:[%s151 + $0x90] sm:$0xff]
      %v182 = vld [vmem:[%s151 + $0x98] sm:$0xff]
      %v183 = vld [vmem:[%s151 + $0xa0] sm:$0xff]
      %v184 = vld [vmem:[%s151 + $0xa8] sm:$0xff]
      %v185 = vld [vmem:[%s151 + $0xb0] sm:$0xff]
      %v186 = vld [vmem:[%s151 + $0xb8] sm:$0xff]
      %v187 = vld [vmem:[%s151 + $0xc0] sm:$0xff]
      %v188 = vld [vmem:[%s151 + $0xc8] sm:$0xff]
      %v189 = vld [vmem:[%s151 + $0xd0] sm:$0xff]
      %v190 = vld [vmem:[%s151 + $0xd8] sm:$0xff]
      %v191 = vld [vmem:[%s151 + $0xe0] sm:$0xff]
      %v192 = vld [vmem:[%s151 + $0xe8] sm:$0xff]
      %v193 = vld [vmem:[%s151 + $0xf0] sm:$0xff]
      %v194 = vld [vmem:[%s151 + $0xf8] sm:$0xff]
      %v227 = vunpack.c.l.b16 %v163
      %v228 = vunpack.c.h.b16 %v163
      %v229 = vunpack.c.l.b16 %v164
      %v230 = vunpack.c.h.b16 %v164
      %v231 = vunpack.c.l.b16 %v165
      %v232 = vunpack.c.h.b16 %v165
      %v233 = vunpack.c.l.b16 %v166
      %v234 = vunpack.c.h.b16 %v166
      %v235 = vunpack.c.l.b16 %v167
      %v236 = vunpack.c.h.b16 %v167
      %v237 = vunpack.c.l.b16 %v168
      %v238 = vunpack.c.h.b16 %v168
      %v239 = vunpack.c.l.b16 %v169
      %v240 = vunpack.c.h.b16 %v169
      %v241 = vunpack.c.l.b16 %v170
      %v242 = vunpack.c.h.b16 %v170
      %v243 = vunpack.c.l.b16 %v171
      %v244 = vunpack.c.h.b16 %v171
      %v245 = vunpack.c.l.b16 %v172
      %v246 = vunpack.c.h.b16 %v172
      %v247 = vunpack.c.l.b16 %v173
      %v248 = vunpack.c.h.b16 %v173
      %v249 = vunpack.c.l.b16 %v174
      %v250 = vunpack.c.h.b16 %v174
      %v251 = vunpack.c.l.b16 %v175
      %v252 = vunpack.c.h.b16 %v175
      %v253 = vunpack.c.l.b16 %v176
      %v254 = vunpack.c.h.b16 %v176
      %v255 = vunpack.c.l.b16 %v177
      %v256 = vunpack.c.h.b16 %v177
      %v257 = vunpack.c.l.b16 %v178
      %v258 = vunpack.c.h.b16 %v178
      %v259 = vunpack.c.l.b16 %v179
      %v260 = vunpack.c.h.b16 %v179
      %v261 = vunpack.c.l.b16 %v180
      %v262 = vunpack.c.h.b16 %v180
      %v263 = vunpack.c.l.b16 %v181
      %v264 = vunpack.c.h.b16 %v181
      %v265 = vunpack.c.l.b16 %v182
      %v266 = vunpack.c.h.b16 %v182
      %v267 = vunpack.c.l.b16 %v183
      %v268 = vunpack.c.h.b16 %v183
      %v269 = vunpack.c.l.b16 %v184
      %v270 = vunpack.c.h.b16 %v184
      %v271 = vunpack.c.l.b16 %v185
      %v272 = vunpack.c.h.b16 %v185
      %v273 = vunpack.c.l.b16 %v186
      %v274 = vunpack.c.h.b16 %v186
      %v275 = vunpack.c.l.b16 %v187
      %v276 = vunpack.c.h.b16 %v187
      %v277 = vunpack.c.l.b16 %v188
      %v278 = vunpack.c.h.b16 %v188
      %v279 = vunpack.c.l.b16 %v189
      %v280 = vunpack.c.h.b16 %v189
      %v281 = vunpack.c.l.b16 %v190
      %v282 = vunpack.c.h.b16 %v190
      %v283 = vunpack.c.l.b16 %v191
      %v284 = vunpack.c.h.b16 %v191
      %v285 = vunpack.c.l.b16 %v192
      %v286 = vunpack.c.h.b16 %v192
      %v287 = vunpack.c.l.b16 %v193
      %v288 = vunpack.c.h.b16 %v193
      %v289 = vunpack.c.l.b16 %v194
      %v290 = vunpack.c.h.b16 %v194
      %v291 = vpack.c.b16 %v243, %v227
      %v292 = vpack.c.b16 %v244, %v228
      %v293 = vpack.c.b16 %v245, %v229
      %v294 = vpack.c.b16 %v246, %v230
      %v295 = vpack.c.b16 %v247, %v231
      %v296 = vpack.c.b16 %v248, %v232
      %v297 = vpack.c.b16 %v249, %v233
      %v298 = vpack.c.b16 %v250, %v234
      %v299 = vpack.c.b16 %v251, %v235
      %v300 = vpack.c.b16 %v252, %v236
      %v301 = vpack.c.b16 %v253, %v237
      %v302 = vpack.c.b16 %v254, %v238
      %v303 = vpack.c.b16 %v255, %v239
      %v304 = vpack.c.b16 %v256, %v240
      %v305 = vpack.c.b16 %v257, %v241
      %v306 = vpack.c.b16 %v258, %v242
      %v307 = vpack.c.b16 %v275, %v259
      %v308 = vpack.c.b16 %v276, %v260
      %v309 = vpack.c.b16 %v277, %v261
      %v310 = vpack.c.b16 %v278, %v262
      %v311 = vpack.c.b16 %v279, %v263
      %v312 = vpack.c.b16 %v280, %v264
      %v313 = vpack.c.b16 %v281, %v265
      %v314 = vpack.c.b16 %v282, %v266
      %v315 = vpack.c.b16 %v283, %v267
      %v316 = vpack.c.b16 %v284, %v268
      %v317 = vpack.c.b16 %v285, %v269
      %v318 = vpack.c.b16 %v286, %v270
      %v319 = vpack.c.b16 %v287, %v271
      %v320 = vpack.c.b16 %v288, %v272
      %v321 = vpack.c.b16 %v289, %v273
      %v322 = vpack.c.b16 %v290, %v274
      %vm355 = vcmask 261120
      %v357 = vsel %vm355, %v162, 0
      %359 = vmatprep.subr.bf16.mxu0 %v292
      %360 = vmatpush1.bf16.msra.mxu0 %v291
      %361 = vmatprep.subr.bf16.mxu0 %v308
      %362 = vmatpush1.bf16.msra.mxu0 %v307
      %363 = vmatprep.subr.bf16.mxu0 0
      %364 = vmatpush1.bf16.msra.mxu0 0
      %365 = vmatprep.subr.bf16.mxu0 0
      %366 = vmatpush1.bf16.msra.mxu0 0
      %367 = vmatprep.subr.bf16.mxu0 0
      %368 = vmatpush1.bf16.msra.mxu0 0
      %369 = vmatprep.subr.bf16.mxu0 0
      %370 = vmatpush1.bf16.msra.mxu0 0
      %371 = vmatprep.subr.bf16.mxu0 0
      %372 = vmatpush1.bf16.msra.mxu0 0
      %373 = vmatprep.subr.bf16.mxu0 0
      %374 = vmatpush1.bf16.msra.mxu0 0
      %375 = vmatprep.subr.bf16.mxu0 0
      %376 = vmatpush1.bf16.msra.mxu0 0
      %377 = vmatprep.subr.bf16.mxu0 0
      %378 = vmatpush1.bf16.msra.mxu0 0
      %379 = vmatprep.subr.bf16.mxu0 0
      %380 = vmatpush1.bf16.msra.mxu0 0
      %381 = vmatprep.subr.bf16.mxu0 0
      %382 = vmatpush1.bf16.msra.mxu0 0
      %383 = vmatprep.subr.bf16.mxu0 0
      %384 = vmatpush1.bf16.msra.mxu0 0
      %385 = vmatprep.subr.bf16.mxu0 0
      %386 = vmatpush1.bf16.msra.mxu0 0
      %387 = vmatprep.subr.bf16.mxu0 0
      %388 = vmatpush1.bf16.msra.mxu0 0
      %389 = vmatprep.subr.bf16.mxu0 0
      %390 = vmatpush1.bf16.msra.mxu0 0
      %391 = vmatprep.mubr.bf16.mxu0 0
      %392 = vmatmul.mubr.bf16.gmra.mrb[0].mxu0 %v357
      %v393 = vpop.f32.mrb[0].mxu0
      %v394 = vadd.f32 0.0, %v393
      %v395 = vpop.f32.mrb[0].mxu0
      %v396 = vadd.f32 0.0, %v395
      %v397 = vpop.f32.mrb[0].mxu0
      %v398 = vpop.f32.mrb[0].mxu0
      %399 = vdwg.mxu0
      %400 = vmatprep.subr.bf16.mxu0 %v294
      %401 = vmatpush1.bf16.msra.mxu0 %v293
      %402 = vmatprep.subr.bf16.mxu0 %v310
      %403 = vmatpush1.bf16.msra.mxu0 %v309
      %404 = vmatprep.subr.bf16.mxu0 0
      %405 = vmatpush1.bf16.msra.mxu0 0
      %406 = vmatprep.subr.bf16.mxu0 0
      %407 = vmatpush1.bf16.msra.mxu0 0
      %408 = vmatprep.subr.bf16.mxu0 0
      %409 = vmatpush1.bf16.msra.mxu0 0
      %410 = vmatprep.subr.bf16.mxu0 0
      %411 = vmatpush1.bf16.msra.mxu0 0
      %412 = vmatprep.subr.bf16.mxu0 0
      %413 = vmatpush1.bf16.msra.mxu0 0
      %414 = vmatprep.subr.bf16.mxu0 0
      %415 = vmatpush1.bf16.msra.mxu0 0
      %416 = vmatprep.subr.bf16.mxu0 0
      %417 = vmatpush1.bf16.msra.mxu0 0
      %418 = vmatprep.subr.bf16.mxu0 0
      %419 = vmatpush1.bf16.msra.mxu0 0
      %420 = vmatprep.subr.bf16.mxu0 0
      %421 = vmatpush1.bf16.msra.mxu0 0
      %422 = vmatprep.subr.bf16.mxu0 0
      %423 = vmatpush1.bf16.msra.mxu0 0
      %424 = vmatprep.subr.bf16.mxu0 0
      %425 = vmatpush1.bf16.msra.mxu0 0
      %426 = vmatprep.subr.bf16.mxu0 0
      %427 = vmatpush1.bf16.msra.mxu0 0
      %428 = vmatprep.subr.bf16.mxu0 0
      %429 = vmatpush1.bf16.msra.mxu0 0
      %430 = vmatprep.subr.bf16.mxu0 0
      %431 = vmatpush1.bf16.msra.mxu0 0
      %432 = vmatprep.mubr.bf16.mxu0 0
      %433 = vmatmul.mubr.bf16.gmra.mrb[0].mxu0 %v357
      %v434 = vpop.f32.mrb[0].mxu0
      %v435 = vadd.f32 0.0, %v434
      %v436 = vpop.f32.mrb[0].mxu0
      %v437 = vadd.f32 0.0, %v436
      %v438 = vpop.f32.mrb[0].mxu0
      %v439 = vpop.f32.mrb[0].mxu0
      %440 = vdwg.mxu0
      %441 = vmatprep.subr.bf16.mxu0 %v296
      %442 = vmatpush1.bf16.msra.mxu0 %v295
      %443 = vmatprep.subr.bf16.mxu0 %v312
      %444 = vmatpush1.bf16.msra.mxu0 %v311
      %445 = vmatprep.subr.bf16.mxu0 0
      %446 = vmatpush1.bf16.msra.mxu0 0
      %447 = vmatprep.subr.bf16.mxu0 0
      %448 = vmatpush1.bf16.msra.mxu0 0
      %449 = vmatprep.subr.bf16.mxu0 0
      %450 = vmatpush1.bf16.msra.mxu0 0
      %451 = vmatprep.subr.bf16.mxu0 0
      %452 = vmatpush1.bf16.msra.mxu0 0
      %453 = vmatprep.subr.bf16.mxu0 0
      %454 = vmatpush1.bf16.msra.mxu0 0
      %455 = vmatprep.subr.bf16.mxu0 0
      %456 = vmatpush1.bf16.msra.mxu0 0
      %457 = vmatprep.subr.bf16.mxu0 0
      %458 = vmatpush1.bf16.msra.mxu0 0
      %459 = vmatprep.subr.bf16.mxu0 0
      %460 = vmatpush1.bf16.msra.mxu0 0
      %461 = vmatprep.subr.bf16.mxu0 0
      %462 = vmatpush1.bf16.msra.mxu0 0
      %463 = vmatprep.subr.bf16.mxu0 0
      %464 = vmatpush1.bf16.msra.mxu0 0
      %465 = vmatprep.subr.bf16.mxu0 0
      %466 = vmatpush1.bf16.msra.mxu0 0
      %467 = vmatprep.subr.bf16.mxu0 0
      %468 = vmatpush1.bf16.msra.mxu0 0
      %469 = vmatprep.subr.bf16.mxu0 0
      %470 = vmatpush1.bf16.msra.mxu0 0
      %471 = vmatprep.subr.bf16.mxu0 0
      %472 = vmatpush1.bf16.msra.mxu0 0
      %473 = vmatprep.mubr.bf16.mxu0 0
      %474 = vmatmul.mubr.bf16.gmra.mrb[0].mxu0 %v357
      %v475 = vpop.f32.mrb[0].mxu0
      %v476 = vadd.f32 0.0, %v475
      %v477 = vpop.f32.mrb[0].mxu0
      %v478 = vadd.f32 0.0, %v477
      %v479 = vpop.f32.mrb[0].mxu0
      %v480 = vpop.f32.mrb[0].mxu0
      %481 = vdwg.mxu0
      %482 = vmatprep.subr.bf16.mxu0 %v298
      %483 = vmatpush1.bf16.msra.mxu0 %v297
      %484 = vmatprep.subr.bf16.mxu0 %v314
      %485 = vmatpush1.bf16.msra.mxu0 %v313
      %486 = vmatprep.subr.bf16.mxu0 0
      %487 = vmatpush1.bf16.msra.mxu0 0
      %488 = vmatprep.subr.bf16.mxu0 0
      %489 = vmatpush1.bf16.msra.mxu0 0
      %490 = vmatprep.subr.bf16.mxu0 0
      %491 = vmatpush1.bf16.msra.mxu0 0
      %492 = vmatprep.subr.bf16.mxu0 0
      %493 = vmatpush1.bf16.msra.mxu0 0
      %494 = vmatprep.subr.bf16.mxu0 0
      %495 = vmatpush1.bf16.msra.mxu0 0
      %496 = vmatprep.subr.bf16.mxu0 0
      %497 = vmatpush1.bf16.msra.mxu0 0
      %498 = vmatprep.subr.bf16.mxu0 0
      %499 = vmatpush1.bf16.msra.mxu0 0
      %500 = vmatprep.subr.bf16.mxu0 0
      %501 = vmatpush1.bf16.msra.mxu0 0
      %502 = vmatprep.subr.bf16.mxu0 0
      %503 = vmatpush1.bf16.msra.mxu0 0
      %504 = vmatprep.subr.bf16.mxu0 0
      %505 = vmatpush1.bf16.msra.mxu0 0
      %506 = vmatprep.subr.bf16.mxu0 0
      %507 = vmatpush1.bf16.msra.mxu0 0
      %508 = vmatprep.subr.bf16.mxu0 0
      %509 = vmatpush1.bf16.msra.mxu0 0
      %510 = vmatprep.subr.bf16.mxu0 0
      %511 = vmatpush1.bf16.msra.mxu0 0
      %512 = vmatprep.subr.bf16.mxu0 0
      %513 = vmatpush1.bf16.msra.mxu0 0
      %514 = vmatprep.mubr.bf16.mxu0 0
      %515 = vmatmul.mubr.bf16.gmra.mrb[0].mxu0 %v357
      %v516 = vpop.f32.mrb[0].mxu0
      %v517 = vadd.f32 0.0, %v516
      %v518 = vpop.f32.mrb[0].mxu0
      %v519 = vadd.f32 0.0, %v518
      %v520 = vpop.f32.mrb[0].mxu0
      %v521 = vpop.f32.mrb[0].mxu0
      %522 = vdwg.mxu0
      %523 = vmatprep.subr.bf16.mxu0 %v300
      %524 = vmatpush1.bf16.msra.mxu0 %v299
      %525 = vmatprep.subr.bf16.mxu0 %v316
      %526 = vmatpush1.bf16.msra.mxu0 %v315
      %527 = vmatprep.subr.bf16.mxu0 0
      %528 = vmatpush1.bf16.msra.mxu0 0
      %529 = vmatprep.subr.bf16.mxu0 0
      %530 = vmatpush1.bf16.msra.mxu0 0
      %531 = vmatprep.subr.bf16.mxu0 0
      %532 = vmatpush1.bf16.msra.mxu0 0
      %533 = vmatprep.subr.bf16.mxu0 0
      %534 = vmatpush1.bf16.msra.mxu0 0
      %535 = vmatprep.subr.bf16.mxu0 0
      %536 = vmatpush1.bf16.msra.mxu0 0
      %537 = vmatprep.subr.bf16.mxu0 0
      %538 = vmatpush1.bf16.msra.mxu0 0
      %539 = vmatprep.subr.bf16.mxu0 0
      %540 = vmatpush1.bf16.msra.mxu0 0
      %541 = vmatprep.subr.bf16.mxu0 0
      %542 = vmatpush1.bf16.msra.mxu0 0
      %543 = vmatprep.subr.bf16.mxu0 0
      %544 = vmatpush1.bf16.msra.mxu0 0
      %545 = vmatprep.subr.bf16.mxu0 0
      %546 = vmatpush1.bf16.msra.mxu0 0
      %547 = vmatprep.subr.bf16.mxu0 0
      %548 = vmatpush1.bf16.msra.mxu0 0
      %549 = vmatprep.subr.bf16.mxu0 0
      %550 = vmatpush1.bf16.msra.mxu0 0
      %551 = vmatprep.subr.bf16.mxu0 0
      %552 = vmatpush1.bf16.msra.mxu0 0
      %553 = vmatprep.subr.bf16.mxu0 0
      %554 = vmatpush1.bf16.msra.mxu0 0
      %555 = vmatprep.mubr.bf16.mxu0 0
      %556 = vmatmul.mubr.bf16.gmra.mrb[0].mxu0 %v357
      %v557 = vpop.f32.mrb[0].mxu0
      %v558 = vadd.f32 0.0, %v557
      %v559 = vpop.f32.mrb[0].mxu0
      %v560 = vadd.f32 0.0, %v559
      %v561 = vpop.f32.mrb[0].mxu0
      %v562 = vpop.f32.mrb[0].mxu0
      %563 = vdwg.mxu0
      %564 = vmatprep.subr.bf16.mxu0 %v302
      %565 = vmatpush1.bf16.msra.mxu0 %v301
      %566 = vmatprep.subr.bf16.mxu0 %v318
      %567 = vmatpush1.bf16.msra.mxu0 %v317
      %568 = vmatprep.subr.bf16.mxu0 0
      %569 = vmatpush1.bf16.msra.mxu0 0
      %570 = vmatprep.subr.bf16.mxu0 0
      %571 = vmatpush1.bf16.msra.mxu0 0
      %572 = vmatprep.subr.bf16.mxu0 0
      %573 = vmatpush1.bf16.msra.mxu0 0
      %574 = vmatprep.subr.bf16.mxu0 0
      %575 = vmatpush1.bf16.msra.mxu0 0
      %576 = vmatprep.subr.bf16.mxu0 0
      %577 = vmatpush1.bf16.msra.mxu0 0
      %578 = vmatprep.subr.bf16.mxu0 0
      %579 = vmatpush1.bf16.msra.mxu0 0
      %580 = vmatprep.subr.bf16.mxu0 0
      %581 = vmatpush1.bf16.msra.mxu0 0
      %582 = vmatprep.subr.bf16.mxu0 0
      %583 = vmatpush1.bf16.msra.mxu0 0
      %584 = vmatprep.subr.bf16.mxu0 0
      %585 = vmatpush1.bf16.msra.mxu0 0
      %586 = vmatprep.subr.bf16.mxu0 0
      %587 = vmatpush1.bf16.msra.mxu0 0
      %588 = vmatprep.subr.bf16.mxu0 0
      %589 = vmatpush1.bf16.msra.mxu0 0
      %590 = vmatprep.subr.bf16.mxu0 0
      %591 = vmatpush1.bf16.msra.mxu0 0
      %592 = vmatprep.subr.bf16.mxu0 0
      %593 = vmatpush1.bf16.msra.mxu0 0
      %594 = vmatprep.subr.bf16.mxu0 0
      %595 = vmatpush1.bf16.msra.mxu0 0
      %596 = vmatprep.mubr.bf16.mxu0 0
      %597 = vmatmul.mubr.bf16.gmra.mrb[0].mxu0 %v357
      %v598 = vpop.f32.mrb[0].mxu0
      %v599 = vadd.f32 0.0, %v598
      %v600 = vpop.f32.mrb[0].mxu0
      %v601 = vadd.f32 0.0, %v600
      %v602 = vpop.f32.mrb[0].mxu0
      %v603 = vpop.f32.mrb[0].mxu0
      %604 = vdwg.mxu0
      %605 = vmatprep.subr.bf16.mxu0 %v304
      %606 = vmatpush1.bf16.msra.mxu0 %v303
      %607 = vmatprep.subr.bf16.mxu0 %v320
      %608 = vmatpush1.bf16.msra.mxu0 %v319
      %609 = vmatprep.subr.bf16.mxu0 0
      %610 = vmatpush1.bf16.msra.mxu0 0
      %611 = vmatprep.subr.bf16.mxu0 0
      %612 = vmatpush1.bf16.msra.mxu0 0
      %613 = vmatprep.subr.bf16.mxu0 0
      %614 = vmatpush1.bf16.msra.mxu0 0
      %615 = vmatprep.subr.bf16.mxu0 0
      %616 = vmatpush1.bf16.msra.mxu0 0
      %617 = vmatprep.subr.bf16.mxu0 0
      %618 = vmatpush1.bf16.msra.mxu0 0
      %619 = vmatprep.subr.bf16.mxu0 0
      %620 = vmatpush1.bf16.msra.mxu0 0
      %621 = vmatprep.subr.bf16.mxu0 0
      %622 = vmatpush1.bf16.msra.mxu0 0
      %623 = vmatprep.subr.bf16.mxu0 0
      %624 = vmatpush1.bf16.msra.mxu0 0
      %625 = vmatprep.subr.bf16.mxu0 0
      %626 = vmatpush1.bf16.msra.mxu0 0
      %627 = vmatprep.subr.bf16.mxu0 0
      %628 = vmatpush1.bf16.msra.mxu0 0
      %629 = vmatprep.subr.bf16.mxu0 0
      %630 = vmatpush1.bf16.msra.mxu0 0
      %631 = vmatprep.subr.bf16.mxu0 0
      %632 = vmatpush1.bf16.msra.mxu0 0
      %633 = vmatprep.subr.bf16.mxu0 0
      %634 = vmatpush1.bf16.msra.mxu0 0
      %635 = vmatprep.subr.bf16.mxu0 0
      %636 = vmatpush1.bf16.msra.mxu0 0
      %637 = vmatprep.mubr.bf16.mxu0 0
      %638 = vmatmul.mubr.bf16.gmra.mrb[0].mxu0 %v357
      %v639 = vpop.f32.mrb[0].mxu0
      %v640 = vadd.f32 0.0, %v639
      %v641 = vpop.f32.mrb[0].mxu0
      %v642 = vadd.f32 0.0, %v641
      %v643 = vpop.f32.mrb[0].mxu0
      %v644 = vpop.f32.mrb[0].mxu0
      %645 = vdwg.mxu0
      %646 = vmatprep.subr.bf16.mxu0 %v306
      %647 = vmatpush1.bf16.msra.mxu0 %v305
      %648 = vmatprep.subr.bf16.mxu0 %v322
      %649 = vmatpush1.bf16.msra.mxu0 %v321
      %650 = vmatprep.subr.bf16.mxu0 0
      %651 = vmatpush1.bf16.msra.mxu0 0
      %652 = vmatprep.subr.bf16.mxu0 0
      %653 = vmatpush1.bf16.msra.mxu0 0
      %654 = vmatprep.subr.bf16.mxu0 0
      %655 = vmatpush1.bf16.msra.mxu0 0
      %656 = vmatprep.subr.bf16.mxu0 0
      %657 = vmatpush1.bf16.msra.mxu0 0
      %658 = vmatprep.subr.bf16.mxu0 0
      %659 = vmatpush1.bf16.msra.mxu0 0
      %660 = vmatprep.subr.bf16.mxu0 0
      %661 = vmatpush1.bf16.msra.mxu0 0
      %662 = vmatprep.subr.bf16.mxu0 0
      %663 = vmatpush1.bf16.msra.mxu0 0
      %664 = vmatprep.subr.bf16.mxu0 0
      %665 = vmatpush1.bf16.msra.mxu0 0
      %666 = vmatprep.subr.bf16.mxu0 0
      %667 = vmatpush1.bf16.msra.mxu0 0
      %668 = vmatprep.subr.bf16.mxu0 0
      %669 = vmatpush1.bf16.msra.mxu0 0
      %670 = vmatprep.subr.bf16.mxu0 0
      %671 = vmatpush1.bf16.msra.mxu0 0
      %672 = vmatprep.subr.bf16.mxu0 0
      %673 = vmatpush1.bf16.msra.mxu0 0
      %674 = vmatprep.subr.bf16.mxu0 0
      %675 = vmatpush1.bf16.msra.mxu0 0
      %676 = vmatprep.subr.bf16.mxu0 0
      %677 = vmatpush1.bf16.msra.mxu0 0
      %678 = vmatprep.mubr.bf16.mxu0 0
      %679 = vmatmul.mubr.bf16.gmra.mrb[0].mxu0 %v357
      %v680 = vpop.f32.mrb[0].mxu0
      %v681 = vadd.f32 0.0, %v680
      %v682 = vpop.f32.mrb[0].mxu0
      %v683 = vadd.f32 0.0, %v682
      %v684 = vpop.f32.mrb[0].mxu0
      %v685 = vpop.f32.mrb[0].mxu0
      %686 = vdwg.mxu0
      %v687 = vtanh.pop %v394
      %v688 = vtanh.pop %v396
      %v689 = vtanh.pop %v435
      %v690 = vtanh.pop %v437
      %v691 = vtanh.pop %v476
      %v692 = vtanh.pop %v478
      %v693 = vtanh.pop %v517
      %v694 = vtanh.pop %v519
      %v695 = vtanh.pop %v558
      %v696 = vtanh.pop %v560
      %v697 = vtanh.pop %v599
      %v698 = vtanh.pop %v601
      %v699 = vtanh.pop %v640
      %v700 = vtanh.pop %v642
      %v701 = vtanh.pop %v681
      %v702 = vtanh.pop %v683
      %703 = vst [vmem:[%s160] sm:$0xff] %v687
      %704 = vst [vmem:[%s160 + $0x8] sm:$0xff] %v688
      %705 = vst [vmem:[%s160 + $0x10] sm:$0xff] %v689
      %706 = vst [vmem:[%s160 + $0x18] sm:$0xff] %v690
      %707 = vst [vmem:[%s160 + $0x20] sm:$0xff] %v691
      %708 = vst [vmem:[%s160 + $0x28] sm:$0xff] %v692
      %709 = vst [vmem:[%s160 + $0x30] sm:$0xff] %v693
      %710 = vst [vmem:[%s160 + $0x38] sm:$0xff] %v694
      %711 = vst [vmem:[%s160 + $0x40] sm:$0xff] %v695
      %712 = vst [vmem:[%s160 + $0x48] sm:$0xff] %v696
      %713 = vst [vmem:[%s160 + $0x50] sm:$0xff] %v697
      %714 = vst [vmem:[%s160 + $0x58] sm:$0xff] %v698
      %715 = vst [vmem:[%s160 + $0x60] sm:$0xff] %v699
      %716 = vst [vmem:[%s160 + $0x68] sm:$0xff] %v700
      %717 = vst [vmem:[%s160 + $0x70] sm:$0xff] %v701
      %718 = vst [vmem:[%s160 + $0x78] sm:$0xff] %v702
      %p719 = scmp.lt.s32.totalorder %s13, 3
      %s720 = scalar_select %p719, %s13, 3
      %s721 = smul.addr %s720, 16
      %s722 = smul.addr %s721, 8
      %s723 = scalar_lea.vmem %s2, %s722
      // Predicated region
      $region29: #{generator_forward.9} parent=27 // pred_check
        %p724 = pneg %p83
      $region30: #{generator_forward.9} parent=27 // pred_check_branch
        %726 = sbr.rel (%p724) target = $region32
      $region31: #{generator_forward.9} parent=27 // pred_region
        _
      $region32: #{generator_forward.9} parent=27 // pred_fallthru
        _
    $region28: #{generator_forward.9} parent=5 // pred_fallthru
      _
    %p727 = scmp.le.s32.totalorder 2, %s8
    // Predicated region
    $region33: #{generator_forward.9} parent=5 // pred_check
      %p728 = pneg %p727
    $region34: #{generator_forward.9} parent=5 // pred_check_branch
      %730 = sbr.rel (%p728) target = $region36
    $region35: #{generator_forward.9} parent=5 // pred_region
      %s731 = ssub.s32 %s8, 2
      // Predicated region
      $region37: #{generator_forward.9} parent=35 // pred_check
        %p732 = pneg %p89
      $region38: #{generator_forward.9} parent=35 // pred_check_branch
        %734 = sbr.rel (%p732) target = $region40
      $region39: #{generator_forward.9} parent=35 // pred_region
        %p735 = scmp.lt.s32.totalorder %s14, 3
        %s736 = scalar_select %p735, %s14, 3
        %s737 = smul.addr %s736, 16
        %s738 = smul.addr %s737, 8
        %s739 = scalar_lea.vmem %s2, %s738
      $region40: #{generator_forward.9} parent=35 // pred_fallthru
        _
    $region36: #{generator_forward.9} parent=5 // pred_fallthru
      _
  $region6: #{generator_forward.9} parent=0 // loop_footer
    %s12 = sadd.s32 1, %s8
  $region7: #{generator_forward.9} parent=0 // loop_footer_branch
    %7 = sbr.rel target = $region3
  $region8: #{generator_forward.9} parent=0 // loop_exit
    _

</llo_original>
